<compile_context>
chip_gen: v5e
topology: v5e:2x2
jax: 0.10.0
libtpu: 0.0.40
codegen_flags: <defaults>
</compile_context>

<pallas_src>
import functools
import math

import jax
import jax.numpy as jnp
from jax.experimental import pallas as pl

# ----- small, ViT-consistent configuration -----
B = 2          # batch
C = 3          # image channels (RGB, as ViT expects)
IMG = 16       # spatial size
PATCH = 4      # patch size -> 4x4 = 16 patches
DIM = 32       # embed dim ("hidden")
HEADS = 4      # attention heads
DH = DIM // HEADS
DEPTH = 2      # transformer blocks
MLP = 4 * DIM  # mlp hidden dim
NUM_CLASSES = 2
N_PATCH = (IMG // PATCH) ** 2
T = N_PATCH + 1          # +1 cls token
T_PAD = 24               # tokens padded to a multiple of 8 sublanes
LN_EPS = 1e-6


def _layernorm(x, g, b):
    mu = jnp.mean(x, axis=-1, keepdims=True)
    xc = x - mu
    var = jnp.mean(xc * xc, axis=-1, keepdims=True)
    return xc * jax.lax.rsqrt(var + LN_EPS) * g + b


def _gelu_exact(x):
    return 0.5 * x * (1.0 + jax.lax.erf(x * (1.0 / math.sqrt(2.0))))


def _vit_kernel(xp_ref, pe_w_ref, add_tok_ref,
                ln1_g_ref, ln1_b_ref, qkv_w_ref, qkv_b_ref,
                proj_w_ref, proj_b_ref, ln2_g_ref, ln2_b_ref,
                fc1_w_ref, fc1_b_ref, fc2_w_ref, fc2_b_ref,
                nf_g_ref, nf_b_ref, head_w_ref, head_b_ref,
                out_ref, *, batch):
    f32 = jnp.float32
    scale = 1.0 / math.sqrt(DH)

    # key-validity mask: columns >= T are padded tokens, excluded from softmax
    kmask = jax.lax.broadcasted_iota(jnp.int32, (T_PAD, T_PAD), 1) < T

    # Patch embedding (conv-as-matmul) + cls token + positional embedding.
    # add_tok already carries cls+pos / pe_b+pos / zeros per padded row.
    tok = jnp.dot(xp_ref[...], pe_w_ref[...], preferred_element_type=f32)
    tok = tok + add_tok_ref[...]                        # (batch*T_PAD, DIM)

    for l in range(DEPTH):
        # --- attention sub-block (pre-norm), fused with output projection ---
        h = _layernorm(tok, ln1_g_ref[l], ln1_b_ref[l])
        qkv = jnp.dot(h, qkv_w_ref[l], preferred_element_type=f32) + qkv_b_ref[l]
        proj_w = proj_w_ref[l]                          # (DIM, DIM)
        o_rows = []
        for b in range(batch):
            r0 = b * T_PAD
            acc = jnp.zeros((T_PAD, DIM), f32)
            for hh in range(HEADS):
                c = hh * DH
                q = qkv[r0:r0 + T_PAD, c:c + DH]
                k = qkv[r0:r0 + T_PAD, DIM + c:DIM + c + DH]
                v = qkv[r0:r0 + T_PAD, 2 * DIM + c:2 * DIM + c + DH]
                s = jax.lax.dot_general(q, k, (((1,), (1,)), ((), ())),
                                        preferred_element_type=f32) * scale
                s = jnp.where(kmask, s, -1e30)
                m = jnp.max(s, axis=-1, keepdims=True)
                p = jnp.exp(s - m)
                p = p / jnp.sum(p, axis=-1, keepdims=True)
                av = jnp.dot(p, v, preferred_element_type=f32)      # (T_PAD, DH)
                # fold the lane-sparse head output straight into the projection
                acc = acc + jnp.dot(av, proj_w[c:c + DH, :],
                                    preferred_element_type=f32)
            o_rows.append(acc)
        o = jnp.concatenate(o_rows, axis=0) + proj_b_ref[l]
        tok = tok + o

        # --- MLP sub-block (pre-norm) ---
        h = _layernorm(tok, ln2_g_ref[l], ln2_b_ref[l])
        h = jnp.dot(h, fc1_w_ref[l], preferred_element_type=f32) + fc1_b_ref[l]
        h = _gelu_exact(h)
        h = jnp.dot(h, fc2_w_ref[l], preferred_element_type=f32) + fc2_b_ref[l]
        tok = tok + h

    # --- final LayerNorm on the cls rows only, fused with the classifier ---
    nf_g = nf_g_ref[...]
    nf_b = nf_b_ref[...]
    head_w = head_w_ref[...]
    head_b = head_b_ref[...]
    for b in range(batch):
        cls_b = tok[b * T_PAD:b * T_PAD + 1, :]          # (1, DIM)
        cls_b = _layernorm(cls_b, nf_g, nf_b)
        # head = Sequential(Dropout(0.4), Linear(DIM, 2)); dropout = id in eval
        logits_b = jnp.dot(cls_b, head_w, preferred_element_type=f32) + head_b
        out_ref[b:b + 1, :] = logits_b.astype(out_ref.dtype)


# ---------------- parameters (deterministic synthetic init, kernel-ready) ----

def init_params(key):
    keys = iter(jax.random.split(key, 16))

    def nrm(shape, scale=0.02):
        return (scale * jax.random.normal(next(keys), shape)).astype(jnp.float32)

    return dict(
        pe_w=nrm((C * PATCH * PATCH, DIM)),              # conv-as-matmul weight
        pe_b=jnp.zeros((DIM,), jnp.float32),
        cls=nrm((1, 1, DIM)),
        pos=nrm((1, T, DIM)),
        ln1_g=jnp.ones((DEPTH, 1, DIM), jnp.float32),
        ln1_b=jnp.zeros((DEPTH, 1, DIM), jnp.float32),
        qkv_w=nrm((DEPTH, DIM, 3 * DIM)),
        qkv_b=jnp.zeros((DEPTH, 1, 3 * DIM), jnp.float32),
        proj_w=nrm((DEPTH, DIM, DIM)),
        proj_b=jnp.zeros((DEPTH, 1, DIM), jnp.float32),
        ln2_g=jnp.ones((DEPTH, 1, DIM), jnp.float32),
        ln2_b=jnp.zeros((DEPTH, 1, DIM), jnp.float32),
        fc1_w=nrm((DEPTH, DIM, MLP)),
        fc1_b=jnp.zeros((DEPTH, 1, MLP), jnp.float32),
        fc2_w=nrm((DEPTH, MLP, DIM)),
        fc2_b=jnp.zeros((DEPTH, 1, DIM), jnp.float32),
        norm_g=jnp.ones((1, DIM), jnp.float32),
        norm_b=jnp.zeros((1, DIM), jnp.float32),
        head_w=nrm((DIM, NUM_CLASSES)),
        head_b=jnp.zeros((1, NUM_CLASSES), jnp.float32),
    )


# ---------------- forward pass ----------------

@jax.jit
def vit_forward(params, x):
    # x: (B, C, H, W) NCHW, same as the PyTorch module.
    Bb, Cc, H, W = x.shape
    P = PATCH
    assert Cc * P * P == params["pe_w"].shape[0]

    # Layout glue (one-time, outside the kernel): unfold patches into padded
    # token rows. Row 0 of each batch (cls) and rows T..T_PAD-1 stay zero.
    xp = x.reshape(Bb, Cc, H // P, P, W // P, P)
    xp = xp.transpose(0, 2, 4, 1, 3, 5).reshape(Bb, N_PATCH, Cc * P * P)
    xp_pad = jnp.zeros((Bb, T_PAD, Cc * P * P), jnp.float32).at[:, 1:T, :].set(xp)
    xp_pad = xp_pad.reshape(Bb * T_PAD, Cc * P * P)

    # Additive token-init tensor: row0 = cls + pos0, rows 1..T-1 = pe_b + pos,
    # padded rows = 0.  Tiled over batch so the kernel does a single add.
    add_tok = jnp.zeros((T_PAD, DIM), jnp.float32)
    add_tok = add_tok.at[0].set(params["cls"].reshape(DIM) + params["pos"][0, 0])
    add_tok = add_tok.at[1:T].set(params["pe_b"][None, :] + params["pos"][0, 1:T])
    add_tok = jnp.tile(add_tok, (Bb, 1))                 # (Bb*T_PAD, DIM)

    kernel = functools.partial(_vit_kernel, batch=Bb)
    return pl.pallas_call(
        kernel,
        out_shape=jax.ShapeDtypeStruct((Bb, NUM_CLASSES), jnp.float32),
        # no grid / BlockSpecs: single invocation, all operands resident in VMEM
    )(xp_pad, params["pe_w"], add_tok,
      params["ln1_g"], params["ln1_b"], params["qkv_w"], params["qkv_b"],
      params["proj_w"], params["proj_b"], params["ln2_g"], params["ln2_b"],
      params["fc1_w"], params["fc1_b"], params["fc2_w"], params["fc2_b"],
      params["norm_g"], params["norm_b"], params["head_w"], params["head_b"])


if __name__ == "__main__":
    key = jax.random.PRNGKey(0)
    pkey, xkey = jax.random.split(key)
    params = init_params(pkey)
    x = jax.random.normal(xkey, (B, C, IMG, IMG), dtype=jnp.float32)

    logits = vit_forward(params, x)
    jax.block_until_ready(logits)
    assert logits.shape == (B, NUM_CLASSES) and logits.dtype == jnp.float32
    print("KERNEL_OK")
</pallas_src>

<mosaic_0001>
module attributes {stable_mosaic.version = 11 : i64} {
  func.func @_vit_kernel(%arg0: memref<48x48xf32, #tpu.memory_space<vmem>>, %arg1: memref<48x32xf32, #tpu.memory_space<vmem>>, %arg2: memref<48x32xf32, #tpu.memory_space<vmem>>, %arg3: memref<2x1x32xf32, #tpu.memory_space<vmem>>, %arg4: memref<2x1x32xf32, #tpu.memory_space<vmem>>, %arg5: memref<2x32x96xf32, #tpu.memory_space<vmem>>, %arg6: memref<2x1x96xf32, #tpu.memory_space<vmem>>, %arg7: memref<2x32x32xf32, #tpu.memory_space<vmem>>, %arg8: memref<2x1x32xf32, #tpu.memory_space<vmem>>, %arg9: memref<2x1x32xf32, #tpu.memory_space<vmem>>, %arg10: memref<2x1x32xf32, #tpu.memory_space<vmem>>, %arg11: memref<2x32x128xf32, #tpu.memory_space<vmem>>, %arg12: memref<2x1x128xf32, #tpu.memory_space<vmem>>, %arg13: memref<2x128x32xf32, #tpu.memory_space<vmem>>, %arg14: memref<2x1x32xf32, #tpu.memory_space<vmem>>, %arg15: memref<1x32xf32, #tpu.memory_space<vmem>>, %arg16: memref<1x32xf32, #tpu.memory_space<vmem>>, %arg17: memref<32x2xf32, #tpu.memory_space<vmem>>, %arg18: memref<1x2xf32, #tpu.memory_space<vmem>>, %arg19: memref<2x2xf32, #tpu.memory_space<vmem>>) attributes {dimension_semantics = [], scalar_prefetch = 0 : i64, scratch_operands = 0 : i64, tpu.core_type = #tpu.core_type<tc>} {
    %0 = tpu.iota {dimensions = array<i32: 1>} : vector<24x24xi32>
    %c17_i32 = arith.constant 17 : i32
    %1 = vector.broadcast %c17_i32 : i32 to vector<24x24xi32>
    %2 = arith.cmpi slt, %0, %1 : vector<24x24xi32>
    %c0 = arith.constant 0 : index
    %c0_0 = arith.constant 0 : index
    %3 = vector.load %arg0[%c0, %c0_0] : memref<48x48xf32, #tpu.memory_space<vmem>>, vector<48x48xf32>
    %c0_1 = arith.constant 0 : index
    %c0_2 = arith.constant 0 : index
    %4 = vector.load %arg1[%c0_1, %c0_2] : memref<48x32xf32, #tpu.memory_space<vmem>>, vector<48x32xf32>
    %cst = arith.constant dense<0.000000e+00> : vector<48x32xf32>
    %5 = tpu.matmul %3, %4, %cst {dimension_numbers = #tpu.dot_dimension_numbers<[1], [0], [0], [1], [0, 0, 1, 1], [], []>} : vector<48x48xf32>, vector<48x32xf32>, vector<48x32xf32> -> vector<48x32xf32>
    %c0_3 = arith.constant 0 : index
    %c0_4 = arith.constant 0 : index
    %6 = vector.load %arg2[%c0_3, %c0_4] : memref<48x32xf32, #tpu.memory_space<vmem>>, vector<48x32xf32>
    %7 = arith.addf %5, %6 : vector<48x32xf32>
    %c0_5 = arith.constant 0 : index
    %c0_6 = arith.constant 0 : index
    %c0_7 = arith.constant 0 : index
    %8 = vector.load %arg3[%c0_5, %c0_6, %c0_7] : memref<2x1x32xf32, #tpu.memory_space<vmem>>, vector<1x1x32xf32>
    %9 = vector.shape_cast %8 : vector<1x1x32xf32> to vector<1x32xf32>
    %c0_8 = arith.constant 0 : index
    %c0_9 = arith.constant 0 : index
    %c0_10 = arith.constant 0 : index
    %10 = vector.load %arg4[%c0_8, %c0_9, %c0_10] : memref<2x1x32xf32, #tpu.memory_space<vmem>>, vector<1x1x32xf32>
    %11 = vector.shape_cast %10 : vector<1x1x32xf32> to vector<1x32xf32>
    %cst_11 = arith.constant dense<0.000000e+00> : vector<48xf32>
    %12 = vector.multi_reduction <add>, %7, %cst_11 [1] : vector<48x32xf32> to vector<48xf32>
    %13 = vector.shape_cast %12 : vector<48xf32> to vector<48x1xf32>
    %cst_12 = arith.constant 3.200000e+01 : f32
    %14 = vector.broadcast %cst_12 : f32 to vector<48x1xf32>
    %15 = arith.divf %13, %14 : vector<48x1xf32>
    %16 = vector.broadcast %15 : vector<48x1xf32> to vector<48x32xf32>
    %17 = arith.subf %7, %16 : vector<48x32xf32>
    %18 = arith.mulf %17, %17 : vector<48x32xf32>
    %cst_13 = arith.constant dense<0.000000e+00> : vector<48xf32>
    %19 = vector.multi_reduction <add>, %18, %cst_13 [1] : vector<48x32xf32> to vector<48xf32>
    %20 = vector.shape_cast %19 : vector<48xf32> to vector<48x1xf32>
    %cst_14 = arith.constant 3.200000e+01 : f32
    %21 = vector.broadcast %cst_14 : f32 to vector<48x1xf32>
    %22 = arith.divf %20, %21 : vector<48x1xf32>
    %cst_15 = arith.constant 9.99999997E-7 : f32
    %23 = vector.broadcast %cst_15 : f32 to vector<48x1xf32>
    %24 = arith.addf %22, %23 : vector<48x1xf32>
    %25 = math.rsqrt %24 : vector<48x1xf32>
    %26 = vector.broadcast %25 : vector<48x1xf32> to vector<48x32xf32>
    %27 = arith.mulf %17, %26 : vector<48x32xf32>
    %28 = vector.broadcast %9 : vector<1x32xf32> to vector<48x32xf32>
    %29 = arith.mulf %27, %28 : vector<48x32xf32>
    %30 = vector.broadcast %11 : vector<1x32xf32> to vector<48x32xf32>
    %31 = arith.addf %29, %30 : vector<48x32xf32>
    %c0_16 = arith.constant 0 : index
    %c0_17 = arith.constant 0 : index
    %c0_18 = arith.constant 0 : index
    %32 = vector.load %arg5[%c0_16, %c0_17, %c0_18] : memref<2x32x96xf32, #tpu.memory_space<vmem>>, vector<1x32x96xf32>
    %33 = vector.shape_cast %32 : vector<1x32x96xf32> to vector<32x96xf32>
    %cst_19 = arith.constant dense<0.000000e+00> : vector<48x96xf32>
    %34 = tpu.matmul %31, %33, %cst_19 {dimension_numbers = #tpu.dot_dimension_numbers<[1], [0], [0], [1], [0, 0, 1, 1], [], []>} : vector<48x32xf32>, vector<32x96xf32>, vector<48x96xf32> -> vector<48x96xf32>
    %c0_20 = arith.constant 0 : index
    %c0_21 = arith.constant 0 : index
    %c0_22 = arith.constant 0 : index
    %35 = vector.load %arg6[%c0_20, %c0_21, %c0_22] : memref<2x1x96xf32, #tpu.memory_space<vmem>>, vector<1x1x96xf32>
    %36 = vector.shape_cast %35 : vector<1x1x96xf32> to vector<1x96xf32>
    %37 = vector.broadcast %36 : vector<1x96xf32> to vector<48x96xf32>
    %38 = arith.addf %34, %37 : vector<48x96xf32>
    %c0_23 = arith.constant 0 : index
    %c0_24 = arith.constant 0 : index
    %c0_25 = arith.constant 0 : index
    %39 = vector.load %arg7[%c0_23, %c0_24, %c0_25] : memref<2x32x32xf32, #tpu.memory_space<vmem>>, vector<1x32x32xf32>
    %40 = vector.shape_cast %39 : vector<1x32x32xf32> to vector<32x32xf32>
    %cst_26 = arith.constant 0.000000e+00 : f32
    %41 = vector.broadcast %cst_26 : f32 to vector<24x32xf32>
    %42 = vector.extract_strided_slice %38 {offsets = [0, 0], sizes = [24, 8], strides = [1, 1]} : vector<48x96xf32> to vector<24x8xf32>
    %43 = vector.extract_strided_slice %38 {offsets = [0, 32], sizes = [24, 8], strides = [1, 1]} : vector<48x96xf32> to vector<24x8xf32>
    %44 = vector.extract_strided_slice %38 {offsets = [0, 64], sizes = [24, 8], strides = [1, 1]} : vector<48x96xf32> to vector<24x8xf32>
    %cst_27 = arith.constant dense<0.000000e+00> : vector<24x24xf32>
    %45 = tpu.matmul %42, %43, %cst_27 {dimension_numbers = #tpu.dot_dimension_numbers<[1], [1], [0], [0], [0, 0, 1, 0], [], []>} : vector<24x8xf32>, vector<24x8xf32>, vector<24x24xf32> -> vector<24x24xf32>
    %cst_28 = arith.constant 0.353553385 : f32
    %46 = vector.broadcast %cst_28 : f32 to vector<24x24xf32>
    %47 = arith.mulf %45, %46 : vector<24x24xf32>
    %cst_29 = arith.constant -1.000000e+30 : f32
    %48 = vector.broadcast %cst_29 : f32 to vector<24x24xf32>
    %49 = arith.select %2, %47, %48 : vector<24x24xi1>, vector<24x24xf32>
    %cst_30 = arith.constant dense<0xFF800000> : vector<24xf32>
    %50 = vector.multi_reduction <maximumf>, %49, %cst_30 [1] : vector<24x24xf32> to vector<24xf32>
    %51 = vector.shape_cast %50 : vector<24xf32> to vector<24x1xf32>
    %52 = vector.broadcast %51 : vector<24x1xf32> to vector<24x24xf32>
    %53 = arith.subf %49, %52 : vector<24x24xf32>
    %54 = math.exp %53 : vector<24x24xf32>
    %cst_31 = arith.constant dense<0.000000e+00> : vector<24xf32>
    %55 = vector.multi_reduction <add>, %54, %cst_31 [1] : vector<24x24xf32> to vector<24xf32>
    %56 = vector.shape_cast %55 : vector<24xf32> to vector<24x1xf32>
    %57 = vector.broadcast %56 : vector<24x1xf32> to vector<24x24xf32>
    %58 = arith.divf %54, %57 : vector<24x24xf32>
    %cst_32 = arith.constant dense<0.000000e+00> : vector<24x8xf32>
    %59 = tpu.matmul %58, %44, %cst_32 {dimension_numbers = #tpu.dot_dimension_numbers<[1], [0], [0], [1], [0, 0, 1, 1], [], []>} : vector<24x24xf32>, vector<24x8xf32>, vector<24x8xf32> -> vector<24x8xf32>
    %60 = vector.extract_strided_slice %40 {offsets = [0, 0], sizes = [8, 32], strides = [1, 1]} : vector<32x32xf32> to vector<8x32xf32>
    %cst_33 = arith.constant dense<0.000000e+00> : vector<24x32xf32>
    %61 = tpu.matmul %59, %60, %cst_33 {dimension_numbers = #tpu.dot_dimension_numbers<[1], [0], [0], [1], [0, 0, 1, 1], [], []>} : vector<24x8xf32>, vector<8x32xf32>, vector<24x32xf32> -> vector<24x32xf32>
    %62 = arith.addf %41, %61 : vector<24x32xf32>
    %63 = vector.extract_strided_slice %38 {offsets = [0, 8], sizes = [24, 8], strides = [1, 1]} : vector<48x96xf32> to vector<24x8xf32>
    %64 = vector.extract_strided_slice %38 {offsets = [0, 40], sizes = [24, 8], strides = [1, 1]} : vector<48x96xf32> to vector<24x8xf32>
    %65 = vector.extract_strided_slice %38 {offsets = [0, 72], sizes = [24, 8], strides = [1, 1]} : vector<48x96xf32> to vector<24x8xf32>
    %cst_34 = arith.constant dense<0.000000e+00> : vector<24x24xf32>
    %66 = tpu.matmul %63, %64, %cst_34 {dimension_numbers = #tpu.dot_dimension_numbers<[1], [1], [0], [0], [0, 0, 1, 0], [], []>} : vector<24x8xf32>, vector<24x8xf32>, vector<24x24xf32> -> vector<24x24xf32>
    %cst_35 = arith.constant 0.353553385 : f32
    %67 = vector.broadcast %cst_35 : f32 to vector<24x24xf32>
    %68 = arith.mulf %66, %67 : vector<24x24xf32>
    %cst_36 = arith.constant -1.000000e+30 : f32
    %69 = vector.broadcast %cst_36 : f32 to vector<24x24xf32>
    %70 = arith.select %2, %68, %69 : vector<24x24xi1>, vector<24x24xf32>
    %cst_37 = arith.constant dense<0xFF800000> : vector<24xf32>
    %71 = vector.multi_reduction <maximumf>, %70, %cst_37 [1] : vector<24x24xf32> to vector<24xf32>
    %72 = vector.shape_cast %71 : vector<24xf32> to vector<24x1xf32>
    %73 = vector.broadcast %72 : vector<24x1xf32> to vector<24x24xf32>
    %74 = arith.subf %70, %73 : vector<24x24xf32>
    %75 = math.exp %74 : vector<24x24xf32>
    %cst_38 = arith.constant dense<0.000000e+00> : vector<24xf32>
    %76 = vector.multi_reduction <add>, %75, %cst_38 [1] : vector<24x24xf32> to vector<24xf32>
    %77 = vector.shape_cast %76 : vector<24xf32> to vector<24x1xf32>
    %78 = vector.broadcast %77 : vector<24x1xf32> to vector<24x24xf32>
    %79 = arith.divf %75, %78 : vector<24x24xf32>
    %cst_39 = arith.constant dense<0.000000e+00> : vector<24x8xf32>
    %80 = tpu.matmul %79, %65, %cst_39 {dimension_numbers = #tpu.dot_dimension_numbers<[1], [0], [0], [1], [0, 0, 1, 1], [], []>} : vector<24x24xf32>, vector<24x8xf32>, vector<24x8xf32> -> vector<24x8xf32>
    %81 = vector.extract_strided_slice %40 {offsets = [8, 0], sizes = [8, 32], strides = [1, 1]} : vector<32x32xf32> to vector<8x32xf32>
    %cst_40 = arith.constant dense<0.000000e+00> : vector<24x32xf32>
    %82 = tpu.matmul %80, %81, %cst_40 {dimension_numbers = #tpu.dot_dimension_numbers<[1], [0], [0], [1], [0, 0, 1, 1], [], []>} : vector<24x8xf32>, vector<8x32xf32>, vector<24x32xf32> -> vector<24x32xf32>
    %83 = arith.addf %62, %82 : vector<24x32xf32>
    %84 = vector.extract_strided_slice %38 {offsets = [0, 16], sizes = [24, 8], strides = [1, 1]} : vector<48x96xf32> to vector<24x8xf32>
    %85 = vector.extract_strided_slice %38 {offsets = [0, 48], sizes = [24, 8], strides = [1, 1]} : vector<48x96xf32> to vector<24x8xf32>
    %86 = vector.extract_strided_slice %38 {offsets = [0, 80], sizes = [24, 8], strides = [1, 1]} : vector<48x96xf32> to vector<24x8xf32>
    %cst_41 = arith.constant dense<0.000000e+00> : vector<24x24xf32>
    %87 = tpu.matmul %84, %85, %cst_41 {dimension_numbers = #tpu.dot_dimension_numbers<[1], [1], [0], [0], [0, 0, 1, 0], [], []>} : vector<24x8xf32>, vector<24x8xf32>, vector<24x24xf32> -> vector<24x24xf32>
    %cst_42 = arith.constant 0.353553385 : f32
    %88 = vector.broadcast %cst_42 : f32 to vector<24x24xf32>
    %89 = arith.mulf %87, %88 : vector<24x24xf32>
    %cst_43 = arith.constant -1.000000e+30 : f32
    %90 = vector.broadcast %cst_43 : f32 to vector<24x24xf32>
    %91 = arith.select %2, %89, %90 : vector<24x24xi1>, vector<24x24xf32>
    %cst_44 = arith.constant dense<0xFF800000> : vector<24xf32>
    %92 = vector.multi_reduction <maximumf>, %91, %cst_44 [1] : vector<24x24xf32> to vector<24xf32>
    %93 = vector.shape_cast %92 : vector<24xf32> to vector<24x1xf32>
    %94 = vector.broadcast %93 : vector<24x1xf32> to vector<24x24xf32>
    %95 = arith.subf %91, %94 : vector<24x24xf32>
    %96 = math.exp %95 : vector<24x24xf32>
    %cst_45 = arith.constant dense<0.000000e+00> : vector<24xf32>
    %97 = vector.multi_reduction <add>, %96, %cst_45 [1] : vector<24x24xf32> to vector<24xf32>
    %98 = vector.shape_cast %97 : vector<24xf32> to vector<24x1xf32>
    %99 = vector.broadcast %98 : vector<24x1xf32> to vector<24x24xf32>
    %100 = arith.divf %96, %99 : vector<24x24xf32>
    %cst_46 = arith.constant dense<0.000000e+00> : vector<24x8xf32>
    %101 = tpu.matmul %100, %86, %cst_46 {dimension_numbers = #tpu.dot_dimension_numbers<[1], [0], [0], [1], [0, 0, 1, 1], [], []>} : vector<24x24xf32>, vector<24x8xf32>, vector<24x8xf32> -> vector<24x8xf32>
    %102 = vector.extract_strided_slice %40 {offsets = [16, 0], sizes = [8, 32], strides = [1, 1]} : vector<32x32xf32> to vector<8x32xf32>
    %cst_47 = arith.constant dense<0.000000e+00> : vector<24x32xf32>
    %103 = tpu.matmul %101, %102, %cst_47 {dimension_numbers = #tpu.dot_dimension_numbers<[1], [0], [0], [1], [0, 0, 1, 1], [], []>} : vector<24x8xf32>, vector<8x32xf32>, vector<24x32xf32> -> vector<24x32xf32>
    %104 = arith.addf %83, %103 : vector<24x32xf32>
    %105 = vector.extract_strided_slice %38 {offsets = [0, 24], sizes = [24, 8], strides = [1, 1]} : vector<48x96xf32> to vector<24x8xf32>
    %106 = vector.extract_strided_slice %38 {offsets = [0, 56], sizes = [24, 8], strides = [1, 1]} : vector<48x96xf32> to vector<24x8xf32>
    %107 = vector.extract_strided_slice %38 {offsets = [0, 88], sizes = [24, 8], strides = [1, 1]} : vector<48x96xf32> to vector<24x8xf32>
    %cst_48 = arith.constant dense<0.000000e+00> : vector<24x24xf32>
    %108 = tpu.matmul %105, %106, %cst_48 {dimension_numbers = #tpu.dot_dimension_numbers<[1], [1], [0], [0], [0, 0, 1, 0], [], []>} : vector<24x8xf32>, vector<24x8xf32>, vector<24x24xf32> -> vector<24x24xf32>
    %cst_49 = arith.constant 0.353553385 : f32
    %109 = vector.broadcast %cst_49 : f32 to vector<24x24xf32>
    %110 = arith.mulf %108, %109 : vector<24x24xf32>
    %cst_50 = arith.constant -1.000000e+30 : f32
    %111 = vector.broadcast %cst_50 : f32 to vector<24x24xf32>
    %112 = arith.select %2, %110, %111 : vector<24x24xi1>, vector<24x24xf32>
    %cst_51 = arith.constant dense<0xFF800000> : vector<24xf32>
    %113 = vector.multi_reduction <maximumf>, %112, %cst_51 [1] : vector<24x24xf32> to vector<24xf32>
    %114 = vector.shape_cast %113 : vector<24xf32> to vector<24x1xf32>
    %115 = vector.broadcast %114 : vector<24x1xf32> to vector<24x24xf32>
    %116 = arith.subf %112, %115 : vector<24x24xf32>
    %117 = math.exp %116 : vector<24x24xf32>
    %cst_52 = arith.constant dense<0.000000e+00> : vector<24xf32>
    %118 = vector.multi_reduction <add>, %117, %cst_52 [1] : vector<24x24xf32> to vector<24xf32>
    %119 = vector.shape_cast %118 : vector<24xf32> to vector<24x1xf32>
    %120 = vector.broadcast %119 : vector<24x1xf32> to vector<24x24xf32>
    %121 = arith.divf %117, %120 : vector<24x24xf32>
    %cst_53 = arith.constant dense<0.000000e+00> : vector<24x8xf32>
    %122 = tpu.matmul %121, %107, %cst_53 {dimension_numbers = #tpu.dot_dimension_numbers<[1], [0], [0], [1], [0, 0, 1, 1], [], []>} : vector<24x24xf32>, vector<24x8xf32>, vector<24x8xf32> -> vector<24x8xf32>
    %123 = vector.extract_strided_slice %40 {offsets = [24, 0], sizes = [8, 32], strides = [1, 1]} : vector<32x32xf32> to vector<8x32xf32>
    %cst_54 = arith.constant dense<0.000000e+00> : vector<24x32xf32>
    %124 = tpu.matmul %122, %123, %cst_54 {dimension_numbers = #tpu.dot_dimension_numbers<[1], [0], [0], [1], [0, 0, 1, 1], [], []>} : vector<24x8xf32>, vector<8x32xf32>, vector<24x32xf32> -> vector<24x32xf32>
    %125 = arith.addf %104, %124 : vector<24x32xf32>
    %cst_55 = arith.constant 0.000000e+00 : f32
    %126 = vector.broadcast %cst_55 : f32 to vector<24x32xf32>
    %127 = vector.extract_strided_slice %38 {offsets = [24, 0], sizes = [24, 8], strides = [1, 1]} : vector<48x96xf32> to vector<24x8xf32>
    %128 = vector.extract_strided_slice %38 {offsets = [24, 32], sizes = [24, 8], strides = [1, 1]} : vector<48x96xf32> to vector<24x8xf32>
    %129 = vector.extract_strided_slice %38 {offsets = [24, 64], sizes = [24, 8], strides = [1, 1]} : vector<48x96xf32> to vector<24x8xf32>
    %cst_56 = arith.constant dense<0.000000e+00> : vector<24x24xf32>
    %130 = tpu.matmul %127, %128, %cst_56 {dimension_numbers = #tpu.dot_dimension_numbers<[1], [1], [0], [0], [0, 0, 1, 0], [], []>} : vector<24x8xf32>, vector<24x8xf32>, vector<24x24xf32> -> vector<24x24xf32>
    %cst_57 = arith.constant 0.353553385 : f32
    %131 = vector.broadcast %cst_57 : f32 to vector<24x24xf32>
    %132 = arith.mulf %130, %131 : vector<24x24xf32>
    %cst_58 = arith.constant -1.000000e+30 : f32
    %133 = vector.broadcast %cst_58 : f32 to vector<24x24xf32>
    %134 = arith.select %2, %132, %133 : vector<24x24xi1>, vector<24x24xf32>
    %cst_59 = arith.constant dense<0xFF800000> : vector<24xf32>
    %135 = vector.multi_reduction <maximumf>, %134, %cst_59 [1] : vector<24x24xf32> to vector<24xf32>
    %136 = vector.shape_cast %135 : vector<24xf32> to vector<24x1xf32>
    %137 = vector.broadcast %136 : vector<24x1xf32> to vector<24x24xf32>
    %138 = arith.subf %134, %137 : vector<24x24xf32>
    %139 = math.exp %138 : vector<24x24xf32>
    %cst_60 = arith.constant dense<0.000000e+00> : vector<24xf32>
    %140 = vector.multi_reduction <add>, %139, %cst_60 [1] : vector<24x24xf32> to vector<24xf32>
    %141 = vector.shape_cast %140 : vector<24xf32> to vector<24x1xf32>
    %142 = vector.broadcast %141 : vector<24x1xf32> to vector<24x24xf32>
    %143 = arith.divf %139, %142 : vector<24x24xf32>
    %cst_61 = arith.constant dense<0.000000e+00> : vector<24x8xf32>
    %144 = tpu.matmul %143, %129, %cst_61 {dimension_numbers = #tpu.dot_dimension_numbers<[1], [0], [0], [1], [0, 0, 1, 1], [], []>} : vector<24x24xf32>, vector<24x8xf32>, vector<24x8xf32> -> vector<24x8xf32>
    %145 = vector.extract_strided_slice %40 {offsets = [0, 0], sizes = [8, 32], strides = [1, 1]} : vector<32x32xf32> to vector<8x32xf32>
    %cst_62 = arith.constant dense<0.000000e+00> : vector<24x32xf32>
    %146 = tpu.matmul %144, %145, %cst_62 {dimension_numbers = #tpu.dot_dimension_numbers<[1], [0], [0], [1], [0, 0, 1, 1], [], []>} : vector<24x8xf32>, vector<8x32xf32>, vector<24x32xf32> -> vector<24x32xf32>
    %147 = arith.addf %126, %146 : vector<24x32xf32>
    %148 = vector.extract_strided_slice %38 {offsets = [24, 8], sizes = [24, 8], strides = [1, 1]} : vector<48x96xf32> to vector<24x8xf32>
    %149 = vector.extract_strided_slice %38 {offsets = [24, 40], sizes = [24, 8], strides = [1, 1]} : vector<48x96xf32> to vector<24x8xf32>
    %150 = vector.extract_strided_slice %38 {offsets = [24, 72], sizes = [24, 8], strides = [1, 1]} : vector<48x96xf32> to vector<24x8xf32>
    %cst_63 = arith.constant dense<0.000000e+00> : vector<24x24xf32>
    %151 = tpu.matmul %148, %149, %cst_63 {dimension_numbers = #tpu.dot_dimension_numbers<[1], [1], [0], [0], [0, 0, 1, 0], [], []>} : vector<24x8xf32>, vector<24x8xf32>, vector<24x24xf32> -> vector<24x24xf32>
    %cst_64 = arith.constant 0.353553385 : f32
    %152 = vector.broadcast %cst_64 : f32 to vector<24x24xf32>
    %153 = arith.mulf %151, %152 : vector<24x24xf32>
    %cst_65 = arith.constant -1.000000e+30 : f32
    %154 = vector.broadcast %cst_65 : f32 to vector<24x24xf32>
    %155 = arith.select %2, %153, %154 : vector<24x24xi1>, vector<24x24xf32>
    %cst_66 = arith.constant dense<0xFF800000> : vector<24xf32>
    %156 = vector.multi_reduction <maximumf>, %155, %cst_66 [1] : vector<24x24xf32> to vector<24xf32>
    %157 = vector.shape_cast %156 : vector<24xf32> to vector<24x1xf32>
    %158 = vector.broadcast %157 : vector<24x1xf32> to vector<24x24xf32>
    %159 = arith.subf %155, %158 : vector<24x24xf32>
    %160 = math.exp %159 : vector<24x24xf32>
    %cst_67 = arith.constant dense<0.000000e+00> : vector<24xf32>
    %161 = vector.multi_reduction <add>, %160, %cst_67 [1] : vector<24x24xf32> to vector<24xf32>
    %162 = vector.shape_cast %161 : vector<24xf32> to vector<24x1xf32>
    %163 = vector.broadcast %162 : vector<24x1xf32> to vector<24x24xf32>
    %164 = arith.divf %160, %163 : vector<24x24xf32>
    %cst_68 = arith.constant dense<0.000000e+00> : vector<24x8xf32>
    %165 = tpu.matmul %164, %150, %cst_68 {dimension_numbers = #tpu.dot_dimension_numbers<[1], [0], [0], [1], [0, 0, 1, 1], [], []>} : vector<24x24xf32>, vector<24x8xf32>, vector<24x8xf32> -> vector<24x8xf32>
    %166 = vector.extract_strided_slice %40 {offsets = [8, 0], sizes = [8, 32], strides = [1, 1]} : vector<32x32xf32> to vector<8x32xf32>
    %cst_69 = arith.constant dense<0.000000e+00> : vector<24x32xf32>
    %167 = tpu.matmul %165, %166, %cst_69 {dimension_numbers = #tpu.dot_dimension_numbers<[1], [0], [0], [1], [0, 0, 1, 1], [], []>} : vector<24x8xf32>, vector<8x32xf32>, vector<24x32xf32> -> vector<24x32xf32>
    %168 = arith.addf %147, %167 : vector<24x32xf32>
    %169 = vector.extract_strided_slice %38 {offsets = [24, 16], sizes = [24, 8], strides = [1, 1]} : vector<48x96xf32> to vector<24x8xf32>
    %170 = vector.extract_strided_slice %38 {offsets = [24, 48], sizes = [24, 8], strides = [1, 1]} : vector<48x96xf32> to vector<24x8xf32>
    %171 = vector.extract_strided_slice %38 {offsets = [24, 80], sizes = [24, 8], strides = [1, 1]} : vector<48x96xf32> to vector<24x8xf32>
    %cst_70 = arith.constant dense<0.000000e+00> : vector<24x24xf32>
    %172 = tpu.matmul %169, %170, %cst_70 {dimension_numbers = #tpu.dot_dimension_numbers<[1], [1], [0], [0], [0, 0, 1, 0], [], []>} : vector<24x8xf32>, vector<24x8xf32>, vector<24x24xf32> -> vector<24x24xf32>
    %cst_71 = arith.constant 0.353553385 : f32
    %173 = vector.broadcast %cst_71 : f32 to vector<24x24xf32>
    %174 = arith.mulf %172, %173 : vector<24x24xf32>
    %cst_72 = arith.constant -1.000000e+30 : f32
    %175 = vector.broadcast %cst_72 : f32 to vector<24x24xf32>
    %176 = arith.select %2, %174, %175 : vector<24x24xi1>, vector<24x24xf32>
    %cst_73 = arith.constant dense<0xFF800000> : vector<24xf32>
    %177 = vector.multi_reduction <maximumf>, %176, %cst_73 [1] : vector<24x24xf32> to vector<24xf32>
    %178 = vector.shape_cast %177 : vector<24xf32> to vector<24x1xf32>
    %179 = vector.broadcast %178 : vector<24x1xf32> to vector<24x24xf32>
    %180 = arith.subf %176, %179 : vector<24x24xf32>
    %181 = math.exp %180 : vector<24x24xf32>
    %cst_74 = arith.constant dense<0.000000e+00> : vector<24xf32>
    %182 = vector.multi_reduction <add>, %181, %cst_74 [1] : vector<24x24xf32> to vector<24xf32>
    %183 = vector.shape_cast %182 : vector<24xf32> to vector<24x1xf32>
    %184 = vector.broadcast %183 : vector<24x1xf32> to vector<24x24xf32>
    %185 = arith.divf %181, %184 : vector<24x24xf32>
    %cst_75 = arith.constant dense<0.000000e+00> : vector<24x8xf32>
    %186 = tpu.matmul %185, %171, %cst_75 {dimension_numbers = #tpu.dot_dimension_numbers<[1], [0], [0], [1], [0, 0, 1, 1], [], []>} : vector<24x24xf32>, vector<24x8xf32>, vector<24x8xf32> -> vector<24x8xf32>
    %187 = vector.extract_strided_slice %40 {offsets = [16, 0], sizes = [8, 32], strides = [1, 1]} : vector<32x32xf32> to vector<8x32xf32>
    %cst_76 = arith.constant dense<0.000000e+00> : vector<24x32xf32>
    %188 = tpu.matmul %186, %187, %cst_76 {dimension_numbers = #tpu.dot_dimension_numbers<[1], [0], [0], [1], [0, 0, 1, 1], [], []>} : vector<24x8xf32>, vector<8x32xf32>, vector<24x32xf32> -> vector<24x32xf32>
    %189 = arith.addf %168, %188 : vector<24x32xf32>
    %190 = vector.extract_strided_slice %38 {offsets = [24, 24], sizes = [24, 8], strides = [1, 1]} : vector<48x96xf32> to vector<24x8xf32>
    %191 = vector.extract_strided_slice %38 {offsets = [24, 56], sizes = [24, 8], strides = [1, 1]} : vector<48x96xf32> to vector<24x8xf32>
    %192 = vector.extract_strided_slice %38 {offsets = [24, 88], sizes = [24, 8], strides = [1, 1]} : vector<48x96xf32> to vector<24x8xf32>
    %cst_77 = arith.constant dense<0.000000e+00> : vector<24x24xf32>
    %193 = tpu.matmul %190, %191, %cst_77 {dimension_numbers = #tpu.dot_dimension_numbers<[1], [1], [0], [0], [0, 0, 1, 0], [], []>} : vector<24x8xf32>, vector<24x8xf32>, vector<24x24xf32> -> vector<24x24xf32>
    %cst_78 = arith.constant 0.353553385 : f32
    %194 = vector.broadcast %cst_78 : f32 to vector<24x24xf32>
    %195 = arith.mulf %193, %194 : vector<24x24xf32>
    %cst_79 = arith.constant -1.000000e+30 : f32
    %196 = vector.broadcast %cst_79 : f32 to vector<24x24xf32>
    %197 = arith.select %2, %195, %196 : vector<24x24xi1>, vector<24x24xf32>
    %cst_80 = arith.constant dense<0xFF800000> : vector<24xf32>
    %198 = vector.multi_reduction <maximumf>, %197, %cst_80 [1] : vector<24x24xf32> to vector<24xf32>
    %199 = vector.shape_cast %198 : vector<24xf32> to vector<24x1xf32>
    %200 = vector.broadcast %199 : vector<24x1xf32> to vector<24x24xf32>
    %201 = arith.subf %197, %200 : vector<24x24xf32>
    %202 = math.exp %201 : vector<24x24xf32>
    %cst_81 = arith.constant dense<0.000000e+00> : vector<24xf32>
    %203 = vector.multi_reduction <add>, %202, %cst_81 [1] : vector<24x24xf32> to vector<24xf32>
    %204 = vector.shape_cast %203 : vector<24xf32> to vector<24x1xf32>
    %205 = vector.broadcast %204 : vector<24x1xf32> to vector<24x24xf32>
    %206 = arith.divf %202, %205 : vector<24x24xf32>
    %cst_82 = arith.constant dense<0.000000e+00> : vector<24x8xf32>
    %207 = tpu.matmul %206, %192, %cst_82 {dimension_numbers = #tpu.dot_dimension_numbers<[1], [0], [0], [1], [0, 0, 1, 1], [], []>} : vector<24x24xf32>, vector<24x8xf32>, vector<24x8xf32> -> vector<24x8xf32>
    %208 = vector.extract_strided_slice %40 {offsets = [24, 0], sizes = [8, 32], strides = [1, 1]} : vector<32x32xf32> to vector<8x32xf32>
    %cst_83 = arith.constant dense<0.000000e+00> : vector<24x32xf32>
    %209 = tpu.matmul %207, %208, %cst_83 {dimension_numbers = #tpu.dot_dimension_numbers<[1], [0], [0], [1], [0, 0, 1, 1], [], []>} : vector<24x8xf32>, vector<8x32xf32>, vector<24x32xf32> -> vector<24x32xf32>
    %210 = arith.addf %189, %209 : vector<24x32xf32>
    %211 = tpu.concatenate %125, %210 in 0 : vector<24x32xf32>, vector<24x32xf32> -> vector<48x32xf32>
    %c0_84 = arith.constant 0 : index
    %c0_85 = arith.constant 0 : index
    %c0_86 = arith.constant 0 : index
    %212 = vector.load %arg8[%c0_84, %c0_85, %c0_86] : memref<2x1x32xf32, #tpu.memory_space<vmem>>, vector<1x1x32xf32>
    %213 = vector.shape_cast %212 : vector<1x1x32xf32> to vector<1x32xf32>
    %214 = vector.broadcast %213 : vector<1x32xf32> to vector<48x32xf32>
    %215 = arith.addf %211, %214 : vector<48x32xf32>
    %216 = arith.addf %7, %215 : vector<48x32xf32>
    %c0_87 = arith.constant 0 : index
    %c0_88 = arith.constant 0 : index
    %c0_89 = arith.constant 0 : index
    %217 = vector.load %arg9[%c0_87, %c0_88, %c0_89] : memref<2x1x32xf32, #tpu.memory_space<vmem>>, vector<1x1x32xf32>
    %218 = vector.shape_cast %217 : vector<1x1x32xf32> to vector<1x32xf32>
    %c0_90 = arith.constant 0 : index
    %c0_91 = arith.constant 0 : index
    %c0_92 = arith.constant 0 : index
    %219 = vector.load %arg10[%c0_90, %c0_91, %c0_92] : memref<2x1x32xf32, #tpu.memory_space<vmem>>, vector<1x1x32xf32>
    %220 = vector.shape_cast %219 : vector<1x1x32xf32> to vector<1x32xf32>
    %cst_93 = arith.constant dense<0.000000e+00> : vector<48xf32>
    %221 = vector.multi_reduction <add>, %216, %cst_93 [1] : vector<48x32xf32> to vector<48xf32>
    %222 = vector.shape_cast %221 : vector<48xf32> to vector<48x1xf32>
    %cst_94 = arith.constant 3.200000e+01 : f32
    %223 = vector.broadcast %cst_94 : f32 to vector<48x1xf32>
    %224 = arith.divf %222, %223 : vector<48x1xf32>
    %225 = vector.broadcast %224 : vector<48x1xf32> to vector<48x32xf32>
    %226 = arith.subf %216, %225 : vector<48x32xf32>
    %227 = arith.mulf %226, %226 : vector<48x32xf32>
    %cst_95 = arith.constant dense<0.000000e+00> : vector<48xf32>
    %228 = vector.multi_reduction <add>, %227, %cst_95 [1] : vector<48x32xf32> to vector<48xf32>
    %229 = vector.shape_cast %228 : vector<48xf32> to vector<48x1xf32>
    %cst_96 = arith.constant 3.200000e+01 : f32
    %230 = vector.broadcast %cst_96 : f32 to vector<48x1xf32>
    %231 = arith.divf %229, %230 : vector<48x1xf32>
    %cst_97 = arith.constant 9.99999997E-7 : f32
    %232 = vector.broadcast %cst_97 : f32 to vector<48x1xf32>
    %233 = arith.addf %231, %232 : vector<48x1xf32>
    %234 = math.rsqrt %233 : vector<48x1xf32>
    %235 = vector.broadcast %234 : vector<48x1xf32> to vector<48x32xf32>
    %236 = arith.mulf %226, %235 : vector<48x32xf32>
    %237 = vector.broadcast %218 : vector<1x32xf32> to vector<48x32xf32>
    %238 = arith.mulf %236, %237 : vector<48x32xf32>
    %239 = vector.broadcast %220 : vector<1x32xf32> to vector<48x32xf32>
    %240 = arith.addf %238, %239 : vector<48x32xf32>
    %c0_98 = arith.constant 0 : index
    %c0_99 = arith.constant 0 : index
    %c0_100 = arith.constant 0 : index
    %241 = vector.load %arg11[%c0_98, %c0_99, %c0_100] : memref<2x32x128xf32, #tpu.memory_space<vmem>>, vector<1x32x128xf32>
    %242 = vector.shape_cast %241 : vector<1x32x128xf32> to vector<32x128xf32>
    %cst_101 = arith.constant dense<0.000000e+00> : vector<48x128xf32>
    %243 = tpu.matmul %240, %242, %cst_101 {dimension_numbers = #tpu.dot_dimension_numbers<[1], [0], [0], [1], [0, 0, 1, 1], [], []>} : vector<48x32xf32>, vector<32x128xf32>, vector<48x128xf32> -> vector<48x128xf32>
    %c0_102 = arith.constant 0 : index
    %c0_103 = arith.constant 0 : index
    %c0_104 = arith.constant 0 : index
    %244 = vector.load %arg12[%c0_102, %c0_103, %c0_104] : memref<2x1x128xf32, #tpu.memory_space<vmem>>, vector<1x1x128xf32>
    %245 = vector.shape_cast %244 : vector<1x1x128xf32> to vector<1x128xf32>
    %246 = vector.broadcast %245 : vector<1x128xf32> to vector<48x128xf32>
    %247 = arith.addf %243, %246 : vector<48x128xf32>
    %cst_105 = arith.constant 5.000000e-01 : f32
    %248 = vector.broadcast %cst_105 : f32 to vector<48x128xf32>
    %249 = arith.mulf %248, %247 : vector<48x128xf32>
    %cst_106 = arith.constant 0.707106769 : f32
    %250 = vector.broadcast %cst_106 : f32 to vector<48x128xf32>
    %251 = arith.mulf %247, %250 : vector<48x128xf32>
    %252 = math.erf %251 : vector<48x128xf32>
    %cst_107 = arith.constant 1.000000e+00 : f32
    %253 = vector.broadcast %cst_107 : f32 to vector<48x128xf32>
    %254 = arith.addf %253, %252 : vector<48x128xf32>
    %255 = arith.mulf %249, %254 : vector<48x128xf32>
    %c0_108 = arith.constant 0 : index
    %c0_109 = arith.constant 0 : index
    %c0_110 = arith.constant 0 : index
    %256 = vector.load %arg13[%c0_108, %c0_109, %c0_110] : memref<2x128x32xf32, #tpu.memory_space<vmem>>, vector<1x128x32xf32>
    %257 = vector.shape_cast %256 : vector<1x128x32xf32> to vector<128x32xf32>
    %cst_111 = arith.constant dense<0.000000e+00> : vector<48x32xf32>
    %258 = tpu.matmul %255, %257, %cst_111 {dimension_numbers = #tpu.dot_dimension_numbers<[1], [0], [0], [1], [0, 0, 1, 1], [], []>} : vector<48x128xf32>, vector<128x32xf32>, vector<48x32xf32> -> vector<48x32xf32>
    %c0_112 = arith.constant 0 : index
    %c0_113 = arith.constant 0 : index
    %c0_114 = arith.constant 0 : index
    %259 = vector.load %arg14[%c0_112, %c0_113, %c0_114] : memref<2x1x32xf32, #tpu.memory_space<vmem>>, vector<1x1x32xf32>
    %260 = vector.shape_cast %259 : vector<1x1x32xf32> to vector<1x32xf32>
    %261 = vector.broadcast %260 : vector<1x32xf32> to vector<48x32xf32>
    %262 = arith.addf %258, %261 : vector<48x32xf32>
    %263 = arith.addf %216, %262 : vector<48x32xf32>
    %c1 = arith.constant 1 : index
    %c0_115 = arith.constant 0 : index
    %c0_116 = arith.constant 0 : index
    %264 = vector.load %arg3[%c1, %c0_115, %c0_116] : memref<2x1x32xf32, #tpu.memory_space<vmem>>, vector<1x1x32xf32>
    %265 = vector.shape_cast %264 : vector<1x1x32xf32> to vector<1x32xf32>
    %c1_117 = arith.constant 1 : index
    %c0_118 = arith.constant 0 : index
    %c0_119 = arith.constant 0 : index
    %266 = vector.load %arg4[%c1_117, %c0_118, %c0_119] : memref<2x1x32xf32, #tpu.memory_space<vmem>>, vector<1x1x32xf32>
    %267 = vector.shape_cast %266 : vector<1x1x32xf32> to vector<1x32xf32>
    %cst_120 = arith.constant dense<0.000000e+00> : vector<48xf32>
    %268 = vector.multi_reduction <add>, %263, %cst_120 [1] : vector<48x32xf32> to vector<48xf32>
    %269 = vector.shape_cast %268 : vector<48xf32> to vector<48x1xf32>
    %cst_121 = arith.constant 3.200000e+01 : f32
    %270 = vector.broadcast %cst_121 : f32 to vector<48x1xf32>
    %271 = arith.divf %269, %270 : vector<48x1xf32>
    %272 = vector.broadcast %271 : vector<48x1xf32> to vector<48x32xf32>
    %273 = arith.subf %263, %272 : vector<48x32xf32>
    %274 = arith.mulf %273, %273 : vector<48x32xf32>
    %cst_122 = arith.constant dense<0.000000e+00> : vector<48xf32>
    %275 = vector.multi_reduction <add>, %274, %cst_122 [1] : vector<48x32xf32> to vector<48xf32>
    %276 = vector.shape_cast %275 : vector<48xf32> to vector<48x1xf32>
    %cst_123 = arith.constant 3.200000e+01 : f32
    %277 = vector.broadcast %cst_123 : f32 to vector<48x1xf32>
    %278 = arith.divf %276, %277 : vector<48x1xf32>
    %cst_124 = arith.constant 9.99999997E-7 : f32
    %279 = vector.broadcast %cst_124 : f32 to vector<48x1xf32>
    %280 = arith.addf %278, %279 : vector<48x1xf32>
    %281 = math.rsqrt %280 : vector<48x1xf32>
    %282 = vector.broadcast %281 : vector<48x1xf32> to vector<48x32xf32>
    %283 = arith.mulf %273, %282 : vector<48x32xf32>
    %284 = vector.broadcast %265 : vector<1x32xf32> to vector<48x32xf32>
    %285 = arith.mulf %283, %284 : vector<48x32xf32>
    %286 = vector.broadcast %267 : vector<1x32xf32> to vector<48x32xf32>
    %287 = arith.addf %285, %286 : vector<48x32xf32>
    %c1_125 = arith.constant 1 : index
    %c0_126 = arith.constant 0 : index
    %c0_127 = arith.constant 0 : index
    %288 = vector.load %arg5[%c1_125, %c0_126, %c0_127] : memref<2x32x96xf32, #tpu.memory_space<vmem>>, vector<1x32x96xf32>
    %289 = vector.shape_cast %288 : vector<1x32x96xf32> to vector<32x96xf32>
    %cst_128 = arith.constant dense<0.000000e+00> : vector<48x96xf32>
    %290 = tpu.matmul %287, %289, %cst_128 {dimension_numbers = #tpu.dot_dimension_numbers<[1], [0], [0], [1], [0, 0, 1, 1], [], []>} : vector<48x32xf32>, vector<32x96xf32>, vector<48x96xf32> -> vector<48x96xf32>
    %c1_129 = arith.constant 1 : index
    %c0_130 = arith.constant 0 : index
    %c0_131 = arith.constant 0 : index
    %291 = vector.load %arg6[%c1_129, %c0_130, %c0_131] : memref<2x1x96xf32, #tpu.memory_space<vmem>>, vector<1x1x96xf32>
    %292 = vector.shape_cast %291 : vector<1x1x96xf32> to vector<1x96xf32>
    %293 = vector.broadcast %292 : vector<1x96xf32> to vector<48x96xf32>
    %294 = arith.addf %290, %293 : vector<48x96xf32>
    %c1_132 = arith.constant 1 : index
    %c0_133 = arith.constant 0 : index
    %c0_134 = arith.constant 0 : index
    %295 = vector.load %arg7[%c1_132, %c0_133, %c0_134] : memref<2x32x32xf32, #tpu.memory_space<vmem>>, vector<1x32x32xf32>
    %296 = vector.shape_cast %295 : vector<1x32x32xf32> to vector<32x32xf32>
    %cst_135 = arith.constant 0.000000e+00 : f32
    %297 = vector.broadcast %cst_135 : f32 to vector<24x32xf32>
    %298 = vector.extract_strided_slice %294 {offsets = [0, 0], sizes = [24, 8], strides = [1, 1]} : vector<48x96xf32> to vector<24x8xf32>
    %299 = vector.extract_strided_slice %294 {offsets = [0, 32], sizes = [24, 8], strides = [1, 1]} : vector<48x96xf32> to vector<24x8xf32>
    %300 = vector.extract_strided_slice %294 {offsets = [0, 64], sizes = [24, 8], strides = [1, 1]} : vector<48x96xf32> to vector<24x8xf32>
    %cst_136 = arith.constant dense<0.000000e+00> : vector<24x24xf32>
    %301 = tpu.matmul %298, %299, %cst_136 {dimension_numbers = #tpu.dot_dimension_numbers<[1], [1], [0], [0], [0, 0, 1, 0], [], []>} : vector<24x8xf32>, vector<24x8xf32>, vector<24x24xf32> -> vector<24x24xf32>
    %cst_137 = arith.constant 0.353553385 : f32
    %302 = vector.broadcast %cst_137 : f32 to vector<24x24xf32>
    %303 = arith.mulf %301, %302 : vector<24x24xf32>
    %cst_138 = arith.constant -1.000000e+30 : f32
    %304 = vector.broadcast %cst_138 : f32 to vector<24x24xf32>
    %305 = arith.select %2, %303, %304 : vector<24x24xi1>, vector<24x24xf32>
    %cst_139 = arith.constant dense<0xFF800000> : vector<24xf32>
    %306 = vector.multi_reduction <maximumf>, %305, %cst_139 [1] : vector<24x24xf32> to vector<24xf32>
    %307 = vector.shape_cast %306 : vector<24xf32> to vector<24x1xf32>
    %308 = vector.broadcast %307 : vector<24x1xf32> to vector<24x24xf32>
    %309 = arith.subf %305, %308 : vector<24x24xf32>
    %310 = math.exp %309 : vector<24x24xf32>
    %cst_140 = arith.constant dense<0.000000e+00> : vector<24xf32>
    %311 = vector.multi_reduction <add>, %310, %cst_140 [1] : vector<24x24xf32> to vector<24xf32>
    %312 = vector.shape_cast %311 : vector<24xf32> to vector<24x1xf32>
    %313 = vector.broadcast %312 : vector<24x1xf32> to vector<24x24xf32>
    %314 = arith.divf %310, %313 : vector<24x24xf32>
    %cst_141 = arith.constant dense<0.000000e+00> : vector<24x8xf32>
    %315 = tpu.matmul %314, %300, %cst_141 {dimension_numbers = #tpu.dot_dimension_numbers<[1], [0], [0], [1], [0, 0, 1, 1], [], []>} : vector<24x24xf32>, vector<24x8xf32>, vector<24x8xf32> -> vector<24x8xf32>
    %316 = vector.extract_strided_slice %296 {offsets = [0, 0], sizes = [8, 32], strides = [1, 1]} : vector<32x32xf32> to vector<8x32xf32>
    %cst_142 = arith.constant dense<0.000000e+00> : vector<24x32xf32>
    %317 = tpu.matmul %315, %316, %cst_142 {dimension_numbers = #tpu.dot_dimension_numbers<[1], [0], [0], [1], [0, 0, 1, 1], [], []>} : vector<24x8xf32>, vector<8x32xf32>, vector<24x32xf32> -> vector<24x32xf32>
    %318 = arith.addf %297, %317 : vector<24x32xf32>
    %319 = vector.extract_strided_slice %294 {offsets = [0, 8], sizes = [24, 8], strides = [1, 1]} : vector<48x96xf32> to vector<24x8xf32>
    %320 = vector.extract_strided_slice %294 {offsets = [0, 40], sizes = [24, 8], strides = [1, 1]} : vector<48x96xf32> to vector<24x8xf32>
    %321 = vector.extract_strided_slice %294 {offsets = [0, 72], sizes = [24, 8], strides = [1, 1]} : vector<48x96xf32> to vector<24x8xf32>
    %cst_143 = arith.constant dense<0.000000e+00> : vector<24x24xf32>
    %322 = tpu.matmul %319, %320, %cst_143 {dimension_numbers = #tpu.dot_dimension_numbers<[1], [1], [0], [0], [0, 0, 1, 0], [], []>} : vector<24x8xf32>, vector<24x8xf32>, vector<24x24xf32> -> vector<24x24xf32>
    %cst_144 = arith.constant 0.353553385 : f32
    %323 = vector.broadcast %cst_144 : f32 to vector<24x24xf32>
    %324 = arith.mulf %322, %323 : vector<24x24xf32>
    %cst_145 = arith.constant -1.000000e+30 : f32
    %325 = vector.broadcast %cst_145 : f32 to vector<24x24xf32>
    %326 = arith.select %2, %324, %325 : vector<24x24xi1>, vector<24x24xf32>
    %cst_146 = arith.constant dense<0xFF800000> : vector<24xf32>
    %327 = vector.multi_reduction <maximumf>, %326, %cst_146 [1] : vector<24x24xf32> to vector<24xf32>
    %328 = vector.shape_cast %327 : vector<24xf32> to vector<24x1xf32>
    %329 = vector.broadcast %328 : vector<24x1xf32> to vector<24x24xf32>
    %330 = arith.subf %326, %329 : vector<24x24xf32>
    %331 = math.exp %330 : vector<24x24xf32>
    %cst_147 = arith.constant dense<0.000000e+00> : vector<24xf32>
    %332 = vector.multi_reduction <add>, %331, %cst_147 [1] : vector<24x24xf32> to vector<24xf32>
    %333 = vector.shape_cast %332 : vector<24xf32> to vector<24x1xf32>
    %334 = vector.broadcast %333 : vector<24x1xf32> to vector<24x24xf32>
    %335 = arith.divf %331, %334 : vector<24x24xf32>
    %cst_148 = arith.constant dense<0.000000e+00> : vector<24x8xf32>
    %336 = tpu.matmul %335, %321, %cst_148 {dimension_numbers = #tpu.dot_dimension_numbers<[1], [0], [0], [1], [0, 0, 1, 1], [], []>} : vector<24x24xf32>, vector<24x8xf32>, vector<24x8xf32> -> vector<24x8xf32>
    %337 = vector.extract_strided_slice %296 {offsets = [8, 0], sizes = [8, 32], strides = [1, 1]} : vector<32x32xf32> to vector<8x32xf32>
    %cst_149 = arith.constant dense<0.000000e+00> : vector<24x32xf32>
    %338 = tpu.matmul %336, %337, %cst_149 {dimension_numbers = #tpu.dot_dimension_numbers<[1], [0], [0], [1], [0, 0, 1, 1], [], []>} : vector<24x8xf32>, vector<8x32xf32>, vector<24x32xf32> -> vector<24x32xf32>
    %339 = arith.addf %318, %338 : vector<24x32xf32>
    %340 = vector.extract_strided_slice %294 {offsets = [0, 16], sizes = [24, 8], strides = [1, 1]} : vector<48x96xf32> to vector<24x8xf32>
    %341 = vector.extract_strided_slice %294 {offsets = [0, 48], sizes = [24, 8], strides = [1, 1]} : vector<48x96xf32> to vector<24x8xf32>
    %342 = vector.extract_strided_slice %294 {offsets = [0, 80], sizes = [24, 8], strides = [1, 1]} : vector<48x96xf32> to vector<24x8xf32>
    %cst_150 = arith.constant dense<0.000000e+00> : vector<24x24xf32>
    %343 = tpu.matmul %340, %341, %cst_150 {dimension_numbers = #tpu.dot_dimension_numbers<[1], [1], [0], [0], [0, 0, 1, 0], [], []>} : vector<24x8xf32>, vector<24x8xf32>, vector<24x24xf32> -> vector<24x24xf32>
    %cst_151 = arith.constant 0.353553385 : f32
    %344 = vector.broadcast %cst_151 : f32 to vector<24x24xf32>
    %345 = arith.mulf %343, %344 : vector<24x24xf32>
    %cst_152 = arith.constant -1.000000e+30 : f32
    %346 = vector.broadcast %cst_152 : f32 to vector<24x24xf32>
    %347 = arith.select %2, %345, %346 : vector<24x24xi1>, vector<24x24xf32>
    %cst_153 = arith.constant dense<0xFF800000> : vector<24xf32>
    %348 = vector.multi_reduction <maximumf>, %347, %cst_153 [1] : vector<24x24xf32> to vector<24xf32>
    %349 = vector.shape_cast %348 : vector<24xf32> to vector<24x1xf32>
    %350 = vector.broadcast %349 : vector<24x1xf32> to vector<24x24xf32>
    %351 = arith.subf %347, %350 : vector<24x24xf32>
    %352 = math.exp %351 : vector<24x24xf32>
    %cst_154 = arith.constant dense<0.000000e+00> : vector<24xf32>
    %353 = vector.multi_reduction <add>, %352, %cst_154 [1] : vector<24x24xf32> to vector<24xf32>
    %354 = vector.shape_cast %353 : vector<24xf32> to vector<24x1xf32>
    %355 = vector.broadcast %354 : vector<24x1xf32> to vector<24x24xf32>
    %356 = arith.divf %352, %355 : vector<24x24xf32>
    %cst_155 = arith.constant dense<0.000000e+00> : vector<24x8xf32>
    %357 = tpu.matmul %356, %342, %cst_155 {dimension_numbers = #tpu.dot_dimension_numbers<[1], [0], [0], [1], [0, 0, 1, 1], [], []>} : vector<24x24xf32>, vector<24x8xf32>, vector<24x8xf32> -> vector<24x8xf32>
    %358 = vector.extract_strided_slice %296 {offsets = [16, 0], sizes = [8, 32], strides = [1, 1]} : vector<32x32xf32> to vector<8x32xf32>
    %cst_156 = arith.constant dense<0.000000e+00> : vector<24x32xf32>
    %359 = tpu.matmul %357, %358, %cst_156 {dimension_numbers = #tpu.dot_dimension_numbers<[1], [0], [0], [1], [0, 0, 1, 1], [], []>} : vector<24x8xf32>, vector<8x32xf32>, vector<24x32xf32> -> vector<24x32xf32>
    %360 = arith.addf %339, %359 : vector<24x32xf32>
    %361 = vector.extract_strided_slice %294 {offsets = [0, 24], sizes = [24, 8], strides = [1, 1]} : vector<48x96xf32> to vector<24x8xf32>
    %362 = vector.extract_strided_slice %294 {offsets = [0, 56], sizes = [24, 8], strides = [1, 1]} : vector<48x96xf32> to vector<24x8xf32>
    %363 = vector.extract_strided_slice %294 {offsets = [0, 88], sizes = [24, 8], strides = [1, 1]} : vector<48x96xf32> to vector<24x8xf32>
    %cst_157 = arith.constant dense<0.000000e+00> : vector<24x24xf32>
    %364 = tpu.matmul %361, %362, %cst_157 {dimension_numbers = #tpu.dot_dimension_numbers<[1], [1], [0], [0], [0, 0, 1, 0], [], []>} : vector<24x8xf32>, vector<24x8xf32>, vector<24x24xf32> -> vector<24x24xf32>
    %cst_158 = arith.constant 0.353553385 : f32
    %365 = vector.broadcast %cst_158 : f32 to vector<24x24xf32>
    %366 = arith.mulf %364, %365 : vector<24x24xf32>
    %cst_159 = arith.constant -1.000000e+30 : f32
    %367 = vector.broadcast %cst_159 : f32 to vector<24x24xf32>
    %368 = arith.select %2, %366, %367 : vector<24x24xi1>, vector<24x24xf32>
    %cst_160 = arith.constant dense<0xFF800000> : vector<24xf32>
    %369 = vector.multi_reduction <maximumf>, %368, %cst_160 [1] : vector<24x24xf32> to vector<24xf32>
    %370 = vector.shape_cast %369 : vector<24xf32> to vector<24x1xf32>
    %371 = vector.broadcast %370 : vector<24x1xf32> to vector<24x24xf32>
    %372 = arith.subf %368, %371 : vector<24x24xf32>
    %373 = math.exp %372 : vector<24x24xf32>
    %cst_161 = arith.constant dense<0.000000e+00> : vector<24xf32>
    %374 = vector.multi_reduction <add>, %373, %cst_161 [1] : vector<24x24xf32> to vector<24xf32>
    %375 = vector.shape_cast %374 : vector<24xf32> to vector<24x1xf32>
    %376 = vector.broadcast %375 : vector<24x1xf32> to vector<24x24xf32>
    %377 = arith.divf %373, %376 : vector<24x24xf32>
    %cst_162 = arith.constant dense<0.000000e+00> : vector<24x8xf32>
    %378 = tpu.matmul %377, %363, %cst_162 {dimension_numbers = #tpu.dot_dimension_numbers<[1], [0], [0], [1], [0, 0, 1, 1], [], []>} : vector<24x24xf32>, vector<24x8xf32>, vector<24x8xf32> -> vector<24x8xf32>
    %379 = vector.extract_strided_slice %296 {offsets = [24, 0], sizes = [8, 32], strides = [1, 1]} : vector<32x32xf32> to vector<8x32xf32>
    %cst_163 = arith.constant dense<0.000000e+00> : vector<24x32xf32>
    %380 = tpu.matmul %378, %379, %cst_163 {dimension_numbers = #tpu.dot_dimension_numbers<[1], [0], [0], [1], [0, 0, 1, 1], [], []>} : vector<24x8xf32>, vector<8x32xf32>, vector<24x32xf32> -> vector<24x32xf32>
    %381 = arith.addf %360, %380 : vector<24x32xf32>
    %cst_164 = arith.constant 0.000000e+00 : f32
    %382 = vector.broadcast %cst_164 : f32 to vector<24x32xf32>
    %383 = vector.extract_strided_slice %294 {offsets = [24, 0], sizes = [24, 8], strides = [1, 1]} : vector<48x96xf32> to vector<24x8xf32>
    %384 = vector.extract_strided_slice %294 {offsets = [24, 32], sizes = [24, 8], strides = [1, 1]} : vector<48x96xf32> to vector<24x8xf32>
    %385 = vector.extract_strided_slice %294 {offsets = [24, 64], sizes = [24, 8], strides = [1, 1]} : vector<48x96xf32> to vector<24x8xf32>
    %cst_165 = arith.constant dense<0.000000e+00> : vector<24x24xf32>
    %386 = tpu.matmul %383, %384, %cst_165 {dimension_numbers = #tpu.dot_dimension_numbers<[1], [1], [0], [0], [0, 0, 1, 0], [], []>} : vector<24x8xf32>, vector<24x8xf32>, vector<24x24xf32> -> vector<24x24xf32>
    %cst_166 = arith.constant 0.353553385 : f32
    %387 = vector.broadcast %cst_166 : f32 to vector<24x24xf32>
    %388 = arith.mulf %386, %387 : vector<24x24xf32>
    %cst_167 = arith.constant -1.000000e+30 : f32
    %389 = vector.broadcast %cst_167 : f32 to vector<24x24xf32>
    %390 = arith.select %2, %388, %389 : vector<24x24xi1>, vector<24x24xf32>
    %cst_168 = arith.constant dense<0xFF800000> : vector<24xf32>
    %391 = vector.multi_reduction <maximumf>, %390, %cst_168 [1] : vector<24x24xf32> to vector<24xf32>
    %392 = vector.shape_cast %391 : vector<24xf32> to vector<24x1xf32>
    %393 = vector.broadcast %392 : vector<24x1xf32> to vector<24x24xf32>
    %394 = arith.subf %390, %393 : vector<24x24xf32>
    %395 = math.exp %394 : vector<24x24xf32>
    %cst_169 = arith.constant dense<0.000000e+00> : vector<24xf32>
    %396 = vector.multi_reduction <add>, %395, %cst_169 [1] : vector<24x24xf32> to vector<24xf32>
    %397 = vector.shape_cast %396 : vector<24xf32> to vector<24x1xf32>
    %398 = vector.broadcast %397 : vector<24x1xf32> to vector<24x24xf32>
    %399 = arith.divf %395, %398 : vector<24x24xf32>
    %cst_170 = arith.constant dense<0.000000e+00> : vector<24x8xf32>
    %400 = tpu.matmul %399, %385, %cst_170 {dimension_numbers = #tpu.dot_dimension_numbers<[1], [0], [0], [1], [0, 0, 1, 1], [], []>} : vector<24x24xf32>, vector<24x8xf32>, vector<24x8xf32> -> vector<24x8xf32>
    %401 = vector.extract_strided_slice %296 {offsets = [0, 0], sizes = [8, 32], strides = [1, 1]} : vector<32x32xf32> to vector<8x32xf32>
    %cst_171 = arith.constant dense<0.000000e+00> : vector<24x32xf32>
    %402 = tpu.matmul %400, %401, %cst_171 {dimension_numbers = #tpu.dot_dimension_numbers<[1], [0], [0], [1], [0, 0, 1, 1], [], []>} : vector<24x8xf32>, vector<8x32xf32>, vector<24x32xf32> -> vector<24x32xf32>
    %403 = arith.addf %382, %402 : vector<24x32xf32>
    %404 = vector.extract_strided_slice %294 {offsets = [24, 8], sizes = [24, 8], strides = [1, 1]} : vector<48x96xf32> to vector<24x8xf32>
    %405 = vector.extract_strided_slice %294 {offsets = [24, 40], sizes = [24, 8], strides = [1, 1]} : vector<48x96xf32> to vector<24x8xf32>
    %406 = vector.extract_strided_slice %294 {offsets = [24, 72], sizes = [24, 8], strides = [1, 1]} : vector<48x96xf32> to vector<24x8xf32>
    %cst_172 = arith.constant dense<0.000000e+00> : vector<24x24xf32>
    %407 = tpu.matmul %404, %405, %cst_172 {dimension_numbers = #tpu.dot_dimension_numbers<[1], [1], [0], [0], [0, 0, 1, 0], [], []>} : vector<24x8xf32>, vector<24x8xf32>, vector<24x24xf32> -> vector<24x24xf32>
    %cst_173 = arith.constant 0.353553385 : f32
    %408 = vector.broadcast %cst_173 : f32 to vector<24x24xf32>
    %409 = arith.mulf %407, %408 : vector<24x24xf32>
    %cst_174 = arith.constant -1.000000e+30 : f32
    %410 = vector.broadcast %cst_174 : f32 to vector<24x24xf32>
    %411 = arith.select %2, %409, %410 : vector<24x24xi1>, vector<24x24xf32>
    %cst_175 = arith.constant dense<0xFF800000> : vector<24xf32>
    %412 = vector.multi_reduction <maximumf>, %411, %cst_175 [1] : vector<24x24xf32> to vector<24xf32>
    %413 = vector.shape_cast %412 : vector<24xf32> to vector<24x1xf32>
    %414 = vector.broadcast %413 : vector<24x1xf32> to vector<24x24xf32>
    %415 = arith.subf %411, %414 : vector<24x24xf32>
    %416 = math.exp %415 : vector<24x24xf32>
    %cst_176 = arith.constant dense<0.000000e+00> : vector<24xf32>
    %417 = vector.multi_reduction <add>, %416, %cst_176 [1] : vector<24x24xf32> to vector<24xf32>
    %418 = vector.shape_cast %417 : vector<24xf32> to vector<24x1xf32>
    %419 = vector.broadcast %418 : vector<24x1xf32> to vector<24x24xf32>
    %420 = arith.divf %416, %419 : vector<24x24xf32>
    %cst_177 = arith.constant dense<0.000000e+00> : vector<24x8xf32>
    %421 = tpu.matmul %420, %406, %cst_177 {dimension_numbers = #tpu.dot_dimension_numbers<[1], [0], [0], [1], [0, 0, 1, 1], [], []>} : vector<24x24xf32>, vector<24x8xf32>, vector<24x8xf32> -> vector<24x8xf32>
    %422 = vector.extract_strided_slice %296 {offsets = [8, 0], sizes = [8, 32], strides = [1, 1]} : vector<32x32xf32> to vector<8x32xf32>
    %cst_178 = arith.constant dense<0.000000e+00> : vector<24x32xf32>
    %423 = tpu.matmul %421, %422, %cst_178 {dimension_numbers = #tpu.dot_dimension_numbers<[1], [0], [0], [1], [0, 0, 1, 1], [], []>} : vector<24x8xf32>, vector<8x32xf32>, vector<24x32xf32> -> vector<24x32xf32>
    %424 = arith.addf %403, %423 : vector<24x32xf32>
    %425 = vector.extract_strided_slice %294 {offsets = [24, 16], sizes = [24, 8], strides = [1, 1]} : vector<48x96xf32> to vector<24x8xf32>
    %426 = vector.extract_strided_slice %294 {offsets = [24, 48], sizes = [24, 8], strides = [1, 1]} : vector<48x96xf32> to vector<24x8xf32>
    %427 = vector.extract_strided_slice %294 {offsets = [24, 80], sizes = [24, 8], strides = [1, 1]} : vector<48x96xf32> to vector<24x8xf32>
    %cst_179 = arith.constant dense<0.000000e+00> : vector<24x24xf32>
    %428 = tpu.matmul %425, %426, %cst_179 {dimension_numbers = #tpu.dot_dimension_numbers<[1], [1], [0], [0], [0, 0, 1, 0], [], []>} : vector<24x8xf32>, vector<24x8xf32>, vector<24x24xf32> -> vector<24x24xf32>
    %cst_180 = arith.constant 0.353553385 : f32
    %429 = vector.broadcast %cst_180 : f32 to vector<24x24xf32>
    %430 = arith.mulf %428, %429 : vector<24x24xf32>
    %cst_181 = arith.constant -1.000000e+30 : f32
    %431 = vector.broadcast %cst_181 : f32 to vector<24x24xf32>
    %432 = arith.select %2, %430, %431 : vector<24x24xi1>, vector<24x24xf32>
    %cst_182 = arith.constant dense<0xFF800000> : vector<24xf32>
    %433 = vector.multi_reduction <maximumf>, %432, %cst_182 [1] : vector<24x24xf32> to vector<24xf32>
    %434 = vector.shape_cast %433 : vector<24xf32> to vector<24x1xf32>
    %435 = vector.broadcast %434 : vector<24x1xf32> to vector<24x24xf32>
    %436 = arith.subf %432, %435 : vector<24x24xf32>
    %437 = math.exp %436 : vector<24x24xf32>
    %cst_183 = arith.constant dense<0.000000e+00> : vector<24xf32>
    %438 = vector.multi_reduction <add>, %437, %cst_183 [1] : vector<24x24xf32> to vector<24xf32>
    %439 = vector.shape_cast %438 : vector<24xf32> to vector<24x1xf32>
    %440 = vector.broadcast %439 : vector<24x1xf32> to vector<24x24xf32>
    %441 = arith.divf %437, %440 : vector<24x24xf32>
    %cst_184 = arith.constant dense<0.000000e+00> : vector<24x8xf32>
    %442 = tpu.matmul %441, %427, %cst_184 {dimension_numbers = #tpu.dot_dimension_numbers<[1], [0], [0], [1], [0, 0, 1, 1], [], []>} : vector<24x24xf32>, vector<24x8xf32>, vector<24x8xf32> -> vector<24x8xf32>
    %443 = vector.extract_strided_slice %296 {offsets = [16, 0], sizes = [8, 32], strides = [1, 1]} : vector<32x32xf32> to vector<8x32xf32>
    %cst_185 = arith.constant dense<0.000000e+00> : vector<24x32xf32>
    %444 = tpu.matmul %442, %443, %cst_185 {dimension_numbers = #tpu.dot_dimension_numbers<[1], [0], [0], [1], [0, 0, 1, 1], [], []>} : vector<24x8xf32>, vector<8x32xf32>, vector<24x32xf32> -> vector<24x32xf32>
    %445 = arith.addf %424, %444 : vector<24x32xf32>
    %446 = vector.extract_strided_slice %294 {offsets = [24, 24], sizes = [24, 8], strides = [1, 1]} : vector<48x96xf32> to vector<24x8xf32>
    %447 = vector.extract_strided_slice %294 {offsets = [24, 56], sizes = [24, 8], strides = [1, 1]} : vector<48x96xf32> to vector<24x8xf32>
    %448 = vector.extract_strided_slice %294 {offsets = [24, 88], sizes = [24, 8], strides = [1, 1]} : vector<48x96xf32> to vector<24x8xf32>
    %cst_186 = arith.constant dense<0.000000e+00> : vector<24x24xf32>
    %449 = tpu.matmul %446, %447, %cst_186 {dimension_numbers = #tpu.dot_dimension_numbers<[1], [1], [0], [0], [0, 0, 1, 0], [], []>} : vector<24x8xf32>, vector<24x8xf32>, vector<24x24xf32> -> vector<24x24xf32>
    %cst_187 = arith.constant 0.353553385 : f32
    %450 = vector.broadcast %cst_187 : f32 to vector<24x24xf32>
    %451 = arith.mulf %449, %450 : vector<24x24xf32>
    %cst_188 = arith.constant -1.000000e+30 : f32
    %452 = vector.broadcast %cst_188 : f32 to vector<24x24xf32>
    %453 = arith.select %2, %451, %452 : vector<24x24xi1>, vector<24x24xf32>
    %cst_189 = arith.constant dense<0xFF800000> : vector<24xf32>
    %454 = vector.multi_reduction <maximumf>, %453, %cst_189 [1] : vector<24x24xf32> to vector<24xf32>
    %455 = vector.shape_cast %454 : vector<24xf32> to vector<24x1xf32>
    %456 = vector.broadcast %455 : vector<24x1xf32> to vector<24x24xf32>
    %457 = arith.subf %453, %456 : vector<24x24xf32>
    %458 = math.exp %457 : vector<24x24xf32>
    %cst_190 = arith.constant dense<0.000000e+00> : vector<24xf32>
    %459 = vector.multi_reduction <add>, %458, %cst_190 [1] : vector<24x24xf32> to vector<24xf32>
    %460 = vector.shape_cast %459 : vector<24xf32> to vector<24x1xf32>
    %461 = vector.broadcast %460 : vector<24x1xf32> to vector<24x24xf32>
    %462 = arith.divf %458, %461 : vector<24x24xf32>
    %cst_191 = arith.constant dense<0.000000e+00> : vector<24x8xf32>
    %463 = tpu.matmul %462, %448, %cst_191 {dimension_numbers = #tpu.dot_dimension_numbers<[1], [0], [0], [1], [0, 0, 1, 1], [], []>} : vector<24x24xf32>, vector<24x8xf32>, vector<24x8xf32> -> vector<24x8xf32>
    %464 = vector.extract_strided_slice %296 {offsets = [24, 0], sizes = [8, 32], strides = [1, 1]} : vector<32x32xf32> to vector<8x32xf32>
    %cst_192 = arith.constant dense<0.000000e+00> : vector<24x32xf32>
    %465 = tpu.matmul %463, %464, %cst_192 {dimension_numbers = #tpu.dot_dimension_numbers<[1], [0], [0], [1], [0, 0, 1, 1], [], []>} : vector<24x8xf32>, vector<8x32xf32>, vector<24x32xf32> -> vector<24x32xf32>
    %466 = arith.addf %445, %465 : vector<24x32xf32>
    %467 = tpu.concatenate %381, %466 in 0 : vector<24x32xf32>, vector<24x32xf32> -> vector<48x32xf32>
    %c1_193 = arith.constant 1 : index
    %c0_194 = arith.constant 0 : index
    %c0_195 = arith.constant 0 : index
    %468 = vector.load %arg8[%c1_193, %c0_194, %c0_195] : memref<2x1x32xf32, #tpu.memory_space<vmem>>, vector<1x1x32xf32>
    %469 = vector.shape_cast %468 : vector<1x1x32xf32> to vector<1x32xf32>
    %470 = vector.broadcast %469 : vector<1x32xf32> to vector<48x32xf32>
    %471 = arith.addf %467, %470 : vector<48x32xf32>
    %472 = arith.addf %263, %471 : vector<48x32xf32>
    %c1_196 = arith.constant 1 : index
    %c0_197 = arith.constant 0 : index
    %c0_198 = arith.constant 0 : index
    %473 = vector.load %arg9[%c1_196, %c0_197, %c0_198] : memref<2x1x32xf32, #tpu.memory_space<vmem>>, vector<1x1x32xf32>
    %474 = vector.shape_cast %473 : vector<1x1x32xf32> to vector<1x32xf32>
    %c1_199 = arith.constant 1 : index
    %c0_200 = arith.constant 0 : index
    %c0_201 = arith.constant 0 : index
    %475 = vector.load %arg10[%c1_199, %c0_200, %c0_201] : memref<2x1x32xf32, #tpu.memory_space<vmem>>, vector<1x1x32xf32>
    %476 = vector.shape_cast %475 : vector<1x1x32xf32> to vector<1x32xf32>
    %cst_202 = arith.constant dense<0.000000e+00> : vector<48xf32>
    %477 = vector.multi_reduction <add>, %472, %cst_202 [1] : vector<48x32xf32> to vector<48xf32>
    %478 = vector.shape_cast %477 : vector<48xf32> to vector<48x1xf32>
    %cst_203 = arith.constant 3.200000e+01 : f32
    %479 = vector.broadcast %cst_203 : f32 to vector<48x1xf32>
    %480 = arith.divf %478, %479 : vector<48x1xf32>
    %481 = vector.broadcast %480 : vector<48x1xf32> to vector<48x32xf32>
    %482 = arith.subf %472, %481 : vector<48x32xf32>
    %483 = arith.mulf %482, %482 : vector<48x32xf32>
    %cst_204 = arith.constant dense<0.000000e+00> : vector<48xf32>
    %484 = vector.multi_reduction <add>, %483, %cst_204 [1] : vector<48x32xf32> to vector<48xf32>
    %485 = vector.shape_cast %484 : vector<48xf32> to vector<48x1xf32>
    %cst_205 = arith.constant 3.200000e+01 : f32
    %486 = vector.broadcast %cst_205 : f32 to vector<48x1xf32>
    %487 = arith.divf %485, %486 : vector<48x1xf32>
    %cst_206 = arith.constant 9.99999997E-7 : f32
    %488 = vector.broadcast %cst_206 : f32 to vector<48x1xf32>
    %489 = arith.addf %487, %488 : vector<48x1xf32>
    %490 = math.rsqrt %489 : vector<48x1xf32>
    %491 = vector.broadcast %490 : vector<48x1xf32> to vector<48x32xf32>
    %492 = arith.mulf %482, %491 : vector<48x32xf32>
    %493 = vector.broadcast %474 : vector<1x32xf32> to vector<48x32xf32>
    %494 = arith.mulf %492, %493 : vector<48x32xf32>
    %495 = vector.broadcast %476 : vector<1x32xf32> to vector<48x32xf32>
    %496 = arith.addf %494, %495 : vector<48x32xf32>
    %c1_207 = arith.constant 1 : index
    %c0_208 = arith.constant 0 : index
    %c0_209 = arith.constant 0 : index
    %497 = vector.load %arg11[%c1_207, %c0_208, %c0_209] : memref<2x32x128xf32, #tpu.memory_space<vmem>>, vector<1x32x128xf32>
    %498 = vector.shape_cast %497 : vector<1x32x128xf32> to vector<32x128xf32>
    %cst_210 = arith.constant dense<0.000000e+00> : vector<48x128xf32>
    %499 = tpu.matmul %496, %498, %cst_210 {dimension_numbers = #tpu.dot_dimension_numbers<[1], [0], [0], [1], [0, 0, 1, 1], [], []>} : vector<48x32xf32>, vector<32x128xf32>, vector<48x128xf32> -> vector<48x128xf32>
    %c1_211 = arith.constant 1 : index
    %c0_212 = arith.constant 0 : index
    %c0_213 = arith.constant 0 : index
    %500 = vector.load %arg12[%c1_211, %c0_212, %c0_213] : memref<2x1x128xf32, #tpu.memory_space<vmem>>, vector<1x1x128xf32>
    %501 = vector.shape_cast %500 : vector<1x1x128xf32> to vector<1x128xf32>
    %502 = vector.broadcast %501 : vector<1x128xf32> to vector<48x128xf32>
    %503 = arith.addf %499, %502 : vector<48x128xf32>
    %cst_214 = arith.constant 5.000000e-01 : f32
    %504 = vector.broadcast %cst_214 : f32 to vector<48x128xf32>
    %505 = arith.mulf %504, %503 : vector<48x128xf32>
    %cst_215 = arith.constant 0.707106769 : f32
    %506 = vector.broadcast %cst_215 : f32 to vector<48x128xf32>
    %507 = arith.mulf %503, %506 : vector<48x128xf32>
    %508 = math.erf %507 : vector<48x128xf32>
    %cst_216 = arith.constant 1.000000e+00 : f32
    %509 = vector.broadcast %cst_216 : f32 to vector<48x128xf32>
    %510 = arith.addf %509, %508 : vector<48x128xf32>
    %511 = arith.mulf %505, %510 : vector<48x128xf32>
    %c1_217 = arith.constant 1 : index
    %c0_218 = arith.constant 0 : index
    %c0_219 = arith.constant 0 : index
    %512 = vector.load %arg13[%c1_217, %c0_218, %c0_219] : memref<2x128x32xf32, #tpu.memory_space<vmem>>, vector<1x128x32xf32>
    %513 = vector.shape_cast %512 : vector<1x128x32xf32> to vector<128x32xf32>
    %cst_220 = arith.constant dense<0.000000e+00> : vector<48x32xf32>
    %514 = tpu.matmul %511, %513, %cst_220 {dimension_numbers = #tpu.dot_dimension_numbers<[1], [0], [0], [1], [0, 0, 1, 1], [], []>} : vector<48x128xf32>, vector<128x32xf32>, vector<48x32xf32> -> vector<48x32xf32>
    %c1_221 = arith.constant 1 : index
    %c0_222 = arith.constant 0 : index
    %c0_223 = arith.constant 0 : index
    %515 = vector.load %arg14[%c1_221, %c0_222, %c0_223] : memref<2x1x32xf32, #tpu.memory_space<vmem>>, vector<1x1x32xf32>
    %516 = vector.shape_cast %515 : vector<1x1x32xf32> to vector<1x32xf32>
    %517 = vector.broadcast %516 : vector<1x32xf32> to vector<48x32xf32>
    %518 = arith.addf %514, %517 : vector<48x32xf32>
    %519 = arith.addf %472, %518 : vector<48x32xf32>
    %c0_224 = arith.constant 0 : index
    %c0_225 = arith.constant 0 : index
    %520 = vector.load %arg15[%c0_224, %c0_225] : memref<1x32xf32, #tpu.memory_space<vmem>>, vector<1x32xf32>
    %c0_226 = arith.constant 0 : index
    %c0_227 = arith.constant 0 : index
    %521 = vector.load %arg16[%c0_226, %c0_227] : memref<1x32xf32, #tpu.memory_space<vmem>>, vector<1x32xf32>
    %c0_228 = arith.constant 0 : index
    %c0_229 = arith.constant 0 : index
    %522 = vector.load %arg17[%c0_228, %c0_229] : memref<32x2xf32, #tpu.memory_space<vmem>>, vector<32x2xf32>
    %c0_230 = arith.constant 0 : index
    %c0_231 = arith.constant 0 : index
    %523 = vector.load %arg18[%c0_230, %c0_231] : memref<1x2xf32, #tpu.memory_space<vmem>>, vector<1x2xf32>
    %524 = vector.extract_strided_slice %519 {offsets = [0, 0], sizes = [1, 32], strides = [1, 1]} : vector<48x32xf32> to vector<1x32xf32>
    %cst_232 = arith.constant dense<0.000000e+00> : vector<1xf32>
    %525 = vector.multi_reduction <add>, %524, %cst_232 [1] : vector<1x32xf32> to vector<1xf32>
    %526 = vector.shape_cast %525 : vector<1xf32> to vector<1x1xf32>
    %cst_233 = arith.constant 3.200000e+01 : f32
    %527 = vector.broadcast %cst_233 : f32 to vector<1x1xf32>
    %528 = arith.divf %526, %527 : vector<1x1xf32>
    %529 = vector.broadcast %528 : vector<1x1xf32> to vector<1x32xf32>
    %530 = arith.subf %524, %529 : vector<1x32xf32>
    %531 = arith.mulf %530, %530 : vector<1x32xf32>
    %cst_234 = arith.constant dense<0.000000e+00> : vector<1xf32>
    %532 = vector.multi_reduction <add>, %531, %cst_234 [1] : vector<1x32xf32> to vector<1xf32>
    %533 = vector.shape_cast %532 : vector<1xf32> to vector<1x1xf32>
    %cst_235 = arith.constant 3.200000e+01 : f32
    %534 = vector.broadcast %cst_235 : f32 to vector<1x1xf32>
    %535 = arith.divf %533, %534 : vector<1x1xf32>
    %cst_236 = arith.constant 9.99999997E-7 : f32
    %536 = vector.broadcast %cst_236 : f32 to vector<1x1xf32>
    %537 = arith.addf %535, %536 : vector<1x1xf32>
    %538 = math.rsqrt %537 : vector<1x1xf32>
    %539 = vector.broadcast %538 : vector<1x1xf32> to vector<1x32xf32>
    %540 = arith.mulf %530, %539 : vector<1x32xf32>
    %541 = arith.mulf %540, %520 : vector<1x32xf32>
    %542 = arith.addf %541, %521 : vector<1x32xf32>
    %cst_237 = arith.constant dense<0.000000e+00> : vector<1x2xf32>
    %543 = tpu.matmul %542, %522, %cst_237 {dimension_numbers = #tpu.dot_dimension_numbers<[1], [0], [0], [1], [0, 0, 1, 1], [], []>} : vector<1x32xf32>, vector<32x2xf32>, vector<1x2xf32> -> vector<1x2xf32>
    %544 = arith.addf %543, %523 : vector<1x2xf32>
    %c0_238 = arith.constant 0 : index
    %c0_239 = arith.constant 0 : index
    %545 = vector.load %arg19[%c0_238, %c0_239] : memref<2x2xf32, #tpu.memory_space<vmem>>, vector<1x2xf32>
    tpu.vector_store %arg19[%c0_238, %c0_239], %544 {strides = array<i32>} : memref<2x2xf32, #tpu.memory_space<vmem>>, vector<1x2xf32>,
    %546 = vector.extract_strided_slice %519 {offsets = [24, 0], sizes = [1, 32], strides = [1, 1]} : vector<48x32xf32> to vector<1x32xf32>
    %cst_240 = arith.constant dense<0.000000e+00> : vector<1xf32>
    %547 = vector.multi_reduction <add>, %546, %cst_240 [1] : vector<1x32xf32> to vector<1xf32>
    %548 = vector.shape_cast %547 : vector<1xf32> to vector<1x1xf32>
    %cst_241 = arith.constant 3.200000e+01 : f32
    %549 = vector.broadcast %cst_241 : f32 to vector<1x1xf32>
    %550 = arith.divf %548, %549 : vector<1x1xf32>
    %551 = vector.broadcast %550 : vector<1x1xf32> to vector<1x32xf32>
    %552 = arith.subf %546, %551 : vector<1x32xf32>
    %553 = arith.mulf %552, %552 : vector<1x32xf32>
    %cst_242 = arith.constant dense<0.000000e+00> : vector<1xf32>
    %554 = vector.multi_reduction <add>, %553, %cst_242 [1] : vector<1x32xf32> to vector<1xf32>
    %555 = vector.shape_cast %554 : vector<1xf32> to vector<1x1xf32>
    %cst_243 = arith.constant 3.200000e+01 : f32
    %556 = vector.broadcast %cst_243 : f32 to vector<1x1xf32>
    %557 = arith.divf %555, %556 : vector<1x1xf32>
    %cst_244 = arith.constant 9.99999997E-7 : f32
    %558 = vector.broadcast %cst_244 : f32 to vector<1x1xf32>
    %559 = arith.addf %557, %558 : vector<1x1xf32>
    %560 = math.rsqrt %559 : vector<1x1xf32>
    %561 = vector.broadcast %560 : vector<1x1xf32> to vector<1x32xf32>
    %562 = arith.mulf %552, %561 : vector<1x32xf32>
    %563 = arith.mulf %562, %520 : vector<1x32xf32>
    %564 = arith.addf %563, %521 : vector<1x32xf32>
    %cst_245 = arith.constant dense<0.000000e+00> : vector<1x2xf32>
    %565 = tpu.matmul %564, %522, %cst_245 {dimension_numbers = #tpu.dot_dimension_numbers<[1], [0], [0], [1], [0, 0, 1, 1], [], []>} : vector<1x32xf32>, vector<32x2xf32>, vector<1x2xf32> -> vector<1x2xf32>
    %566 = arith.addf %565, %523 : vector<1x2xf32>
    %c1_246 = arith.constant 1 : index
    %c0_247 = arith.constant 0 : index
    %567 = vector.load %arg19[%c1_246, %c0_247] : memref<2x2xf32, #tpu.memory_space<vmem>>, vector<1x2xf32>
    tpu.vector_store %arg19[%c1_246, %c0_247], %566 {strides = array<i32>} : memref<2x2xf32, #tpu.memory_space<vmem>>, vector<1x2xf32>,
    return
  }
}

</mosaic_0001>

<llo_original>
// kernel: vit_forward.1
$region0: #{vit_forward.1}
  #allocation0 [shape = 'u32[]', space=smem, size = 0x4, offset = 0x4, fixed_abs, tag = 'smem constant byte address 0x4 - core index']
  #allocation1 [shape = 'u32[72,128]{1,0:T(1,128)}', space=vmem, size = 0x9000, scoped, tag = 'internal scratch']
  %s0 = inlined_call_operand.vmem [shape: f32[48,48], index: 0, kind: input, shape index: {}]
  %s1 = inlined_call_operand.vmem [shape: f32[48,32], index: 1, kind: input, shape index: {}]
  %s2 = inlined_call_operand.vmem [shape: f32[48,32], index: 2, kind: input, shape index: {}]
  %s3 = inlined_call_operand.vmem [shape: f32[2,1,32], index: 3, kind: input, shape index: {}]
  %s4 = inlined_call_operand.vmem [shape: f32[2,1,32], index: 4, kind: input, shape index: {}]
  %s5 = inlined_call_operand.vmem [shape: f32[2,32,96], index: 5, kind: input, shape index: {}]
  %s6 = inlined_call_operand.vmem [shape: f32[2,1,96], index: 6, kind: input, shape index: {}]
  %s7 = inlined_call_operand.vmem [shape: f32[2,32,32], index: 7, kind: input, shape index: {}]
  %s8 = inlined_call_operand.vmem [shape: f32[2,1,32], index: 8, kind: input, shape index: {}]
  %s9 = inlined_call_operand.vmem [shape: f32[2,1,32], index: 9, kind: input, shape index: {}]
  %s10 = inlined_call_operand.vmem [shape: f32[2,1,32], index: 10, kind: input, shape index: {}]
  %s11 = inlined_call_operand.vmem [shape: f32[2,32,128], index: 11, kind: input, shape index: {}]
  %s12 = inlined_call_operand.vmem [shape: f32[2,1,128], index: 12, kind: input, shape index: {}]
  %s13 = inlined_call_operand.vmem [shape: f32[2,128,32], index: 13, kind: input, shape index: {}]
  %s14 = inlined_call_operand.vmem [shape: f32[2,1,32], index: 14, kind: input, shape index: {}]
  %s15 = inlined_call_operand.vmem [shape: f32[1,32], index: 15, kind: input, shape index: {}]
  %s16 = inlined_call_operand.vmem [shape: f32[1,32], index: 16, kind: input, shape index: {}]
  %s17 = inlined_call_operand.vmem [shape: f32[32,2], index: 17, kind: input, shape index: {}]
  %s18 = inlined_call_operand.vmem [shape: f32[1,2], index: 18, kind: input, shape index: {}]
  %s19 = inlined_call_operand.hbm [shape: f32[2,2], index: 19, kind: output, shape index: {}]
  %s20 = sld [smem:[#allocation0]]
  $region86: #{vit_forward.1} parent=0
    _
  %s22 = ssub.s32 1, %s20
  %s23 = scalar_select 0, %s22, %s20
  $region1: #{vit_forward.1} parent=0
    #allocation2 [shape = 'u8[1024]{0}', space=vmem, size = 0x400, scoped, tag = 'output window, operand 0, single buffered']
    #allocation3 [shape = 's32[1]{0}', space=sflag, size = 0x4, scoped, tag = 'scoped memory for vit_forward.1']
    %24 = vsyncpa [#allocation3], 0
    // Predicated region
    $region2: #{vit_forward.1} parent=1 // pred_check
      _
    $region3: #{vit_forward.1} parent=1 // pred_check_branch
      %26 = sbr.rel (0) target = $region5
    $region4: #{vit_forward.1} parent=1 // pred_region
      _
    $region5: #{vit_forward.1} parent=1 // pred_fallthru
      _
    // Predicated region
    $region6: #{vit_forward.1} parent=1 // pred_check
      _
    $region7: #{vit_forward.1} parent=1 // pred_check_branch
      %28 = sbr.rel (0) target = $region9
    $region8: #{vit_forward.1} parent=1 // pred_region
      _
    $region9: #{vit_forward.1} parent=1 // pred_fallthru
      _
    // Predicated region
    $region10: #{vit_forward.1} parent=1 // pred_check
      _
    $region11: #{vit_forward.1} parent=1 // pred_check_branch
      %30 = sbr.rel (0) target = $region13
    $region12: #{vit_forward.1} parent=1 // pred_region
      _
    $region13: #{vit_forward.1} parent=1 // pred_fallthru
      _
    // Predicated region
    $region14: #{vit_forward.1} parent=1 // pred_check
      _
    $region15: #{vit_forward.1} parent=1 // pred_check_branch
      %32 = sbr.rel (0) target = $region17
    $region16: #{vit_forward.1} parent=1 // pred_region
      _
    $region17: #{vit_forward.1} parent=1 // pred_fallthru
      _
    // Predicated region
    $region18: #{vit_forward.1} parent=1 // pred_check
      _
    $region19: #{vit_forward.1} parent=1 // pred_check_branch
      %34 = sbr.rel (0) target = $region21
    $region20: #{vit_forward.1} parent=1 // pred_region
      _
    $region21: #{vit_forward.1} parent=1 // pred_fallthru
      _
    // Predicated region
    $region22: #{vit_forward.1} parent=1 // pred_check
      _
    $region23: #{vit_forward.1} parent=1 // pred_check_branch
      %36 = sbr.rel (0) target = $region25
    $region24: #{vit_forward.1} parent=1 // pred_region
      _
    $region25: #{vit_forward.1} parent=1 // pred_fallthru
      _
    // Predicated region
    $region26: #{vit_forward.1} parent=1 // pred_check
      _
    $region27: #{vit_forward.1} parent=1 // pred_check_branch
      %38 = sbr.rel (0) target = $region29
    $region28: #{vit_forward.1} parent=1 // pred_region
      _
    $region29: #{vit_forward.1} parent=1 // pred_fallthru
      _
    // Predicated region
    $region30: #{vit_forward.1} parent=1 // pred_check
      _
    $region31: #{vit_forward.1} parent=1 // pred_check_branch
      %40 = sbr.rel (0) target = $region33
    $region32: #{vit_forward.1} parent=1 // pred_region
      _
    $region33: #{vit_forward.1} parent=1 // pred_fallthru
      _
    // Predicated region
    $region34: #{vit_forward.1} parent=1 // pred_check
      _
    $region35: #{vit_forward.1} parent=1 // pred_check_branch
      %42 = sbr.rel (0) target = $region37
    $region36: #{vit_forward.1} parent=1 // pred_region
      _
    $region37: #{vit_forward.1} parent=1 // pred_fallthru
      _
    // Predicated region
    $region38: #{vit_forward.1} parent=1 // pred_check
      _
    $region39: #{vit_forward.1} parent=1 // pred_check_branch
      %44 = sbr.rel (0) target = $region41
    $region40: #{vit_forward.1} parent=1 // pred_region
      _
    $region41: #{vit_forward.1} parent=1 // pred_fallthru
      _
    // Predicated region
    $region42: #{vit_forward.1} parent=1 // pred_check
      _
    $region43: #{vit_forward.1} parent=1 // pred_check_branch
      %46 = sbr.rel (0) target = $region45
    $region44: #{vit_forward.1} parent=1 // pred_region
      _
    $region45: #{vit_forward.1} parent=1 // pred_fallthru
      _
    // Predicated region
    $region46: #{vit_forward.1} parent=1 // pred_check
      _
    $region47: #{vit_forward.1} parent=1 // pred_check_branch
      %48 = sbr.rel (0) target = $region49
    $region48: #{vit_forward.1} parent=1 // pred_region
      _
    $region49: #{vit_forward.1} parent=1 // pred_fallthru
      _
    // Predicated region
    $region50: #{vit_forward.1} parent=1 // pred_check
      _
    $region51: #{vit_forward.1} parent=1 // pred_check_branch
      %50 = sbr.rel (0) target = $region53
    $region52: #{vit_forward.1} parent=1 // pred_region
      _
    $region53: #{vit_forward.1} parent=1 // pred_fallthru
      _
    // Predicated region
    $region54: #{vit_forward.1} parent=1 // pred_check
      _
    $region55: #{vit_forward.1} parent=1 // pred_check_branch
      %52 = sbr.rel (0) target = $region57
    $region56: #{vit_forward.1} parent=1 // pred_region
      _
    $region57: #{vit_forward.1} parent=1 // pred_fallthru
      _
    // Predicated region
    $region58: #{vit_forward.1} parent=1 // pred_check
      _
    $region59: #{vit_forward.1} parent=1 // pred_check_branch
      %54 = sbr.rel (0) target = $region61
    $region60: #{vit_forward.1} parent=1 // pred_region
      _
    $region61: #{vit_forward.1} parent=1 // pred_fallthru
      _
    // Predicated region
    $region62: #{vit_forward.1} parent=1 // pred_check
      _
    $region63: #{vit_forward.1} parent=1 // pred_check_branch
      %56 = sbr.rel (0) target = $region65
    $region64: #{vit_forward.1} parent=1 // pred_region
      _
    $region65: #{vit_forward.1} parent=1 // pred_fallthru
      _
    // Predicated region
    $region66: #{vit_forward.1} parent=1 // pred_check
      _
    $region67: #{vit_forward.1} parent=1 // pred_check_branch
      %58 = sbr.rel (0) target = $region69
    $region68: #{vit_forward.1} parent=1 // pred_region
      _
    $region69: #{vit_forward.1} parent=1 // pred_fallthru
      _
    // Predicated region
    $region70: #{vit_forward.1} parent=1 // pred_check
      _
    $region71: #{vit_forward.1} parent=1 // pred_check_branch
      %60 = sbr.rel (0) target = $region73
    $region72: #{vit_forward.1} parent=1 // pred_region
      _
    $region73: #{vit_forward.1} parent=1 // pred_fallthru
      _
    // Predicated region
    $region74: #{vit_forward.1} parent=1 // pred_check
      _
    $region75: #{vit_forward.1} parent=1 // pred_check_branch
      %62 = sbr.rel (0) target = $region77
    $region76: #{vit_forward.1} parent=1 // pred_region
      _
    $region77: #{vit_forward.1} parent=1 // pred_fallthru
      _
    %v63 = vlaneseq
    %v64 = vand.u32 %v63, 127
    %vm65 = vcmp.lt.s32.totalorder %v64, 17
    %v66 = vld [vmem:[%s0] sm:$0xff]
    %v67 = vld [vmem:[%s0 + $0x8] sm:$0xff]
    %v68 = vld [vmem:[%s0 + $0x10] sm:$0xff]
    %v69 = vld [vmem:[%s0 + $0x18] sm:$0xff]
    %v70 = vld [vmem:[%s0 + $0x20] sm:$0xff]
    %v71 = vld [vmem:[%s0 + $0x28] sm:$0xff]
    %v72 = vld [vmem:[%s1] sm:$0xff]
    %v73 = vld [vmem:[%s1 + $0x8] sm:$0xff]
    %v74 = vld [vmem:[%s1 + $0x10] sm:$0xff]
    %v75 = vld [vmem:[%s1 + $0x18] sm:$0xff]
    %v76 = vld [vmem:[%s1 + $0x20] sm:$0xff]
    %v77 = vld [vmem:[%s1 + $0x28] sm:$0xff]
    %v78 = vld [vmem:[%s2] sm:$0xff]
    %v79 = vld [vmem:[%s2 + $0x8] sm:$0xff]
    %v80 = vld [vmem:[%s2 + $0x10] sm:$0xff]
    %v81 = vld [vmem:[%s2 + $0x18] sm:$0xff]
    %v82 = vld [vmem:[%s2 + $0x20] sm:$0xff]
    %v83 = vld [vmem:[%s2 + $0x28] sm:$0xff]
    %vm84 = vcmask 392192
    %v86 = vsel %vm84, %v66, 0
    %v89 = vsel %vm84, %v67, 0
    %v92 = vsel %vm84, %v68, 0
    %v95 = vsel %vm84, %v69, 0
    %v98 = vsel %vm84, %v70, 0
    %v101 = vsel %vm84, %v71, 0
    %103 = vmatpush.msra.mxu0 0.0
    %104 = vmatpush.msra.mxu0 0.0
    %105 = vmatpush.msra.mxu0 0.0
    %106 = vmatpush.msra.mxu0 0.0
    %107 = vmatpush.msra.mxu0 0.0
    %108 = vmatpush.msra.mxu0 0.0
    %109 = vmatpush.msra.mxu0 0.0
    %110 = vmatpush.msra.mxu0 0.0
    %111 = vmatpush.msra.mxu0 0.0
    %112 = vmatpush.msra.mxu0 0.0
    %113 = vmatpush.msra.mxu0 %v77
    %114 = vmatpush.msra.mxu0 %v76
    %115 = vmatpush.msra.mxu0 %v75
    %116 = vmatpush.msra.mxu0 %v74
    %117 = vmatpush.msra.mxu0 %v73
    %118 = vmatpush.msra.mxu0 %v72
    %119 = vmatmul.f32.gmra.mxu0 %v86
    %v120 = vpop.f32.mrf.mxu0
    %v121 = vadd.f32 %v78, %v120
    %122 = vmatmul.f32.gmra.mxu0 %v89
    %v123 = vpop.f32.mrf.mxu0
    %v124 = vadd.f32 %v79, %v123
    %125 = vmatmul.f32.gmra.mxu0 %v92
    %v126 = vpop.f32.mrf.mxu0
    %v127 = vadd.f32 %v80, %v126
    %128 = vmatmul.f32.gmra.mxu0 %v95
    %v129 = vpop.f32.mrf.mxu0
    %v130 = vadd.f32 %v81, %v129
    %131 = vmatmul.f32.gmra.mxu0 %v98
    %v132 = vpop.f32.mrf.mxu0
    %v133 = vadd.f32 %v82, %v132
    %134 = vmatmul.f32.gmra.mxu0 %v101
    %v135 = vpop.f32.mrf.mxu0
    %v136 = vadd.f32 %v83, %v135
    %137 = vdwg.mxu0
    %v138 = vld [vmem:[%s3] sm:$0x1]
    %v139 = vld [vmem:[%s4] sm:$0x1]
    %vm140 = vcmask 261120
    %v141 = vsel %vm140, %v121, 0.0
    %142 = vadd.xlane.f32.xlu0 %v141
    %v143 = vpop.xlane.xlu0 %142
    %v144 = vsel %vm140, %v124, 0.0
    %145 = vadd.xlane.f32.xlu0 %v144
    %v146 = vpop.xlane.xlu0 %145
    %v147 = vsel %vm140, %v127, 0.0
    %148 = vadd.xlane.f32.xlu0 %v147
    %v149 = vpop.xlane.xlu0 %148
    %v150 = vsel %vm140, %v130, 0.0
    %151 = vadd.xlane.f32.xlu0 %v150
    %v152 = vpop.xlane.xlu0 %151
    %v153 = vsel %vm140, %v133, 0.0
    %154 = vadd.xlane.f32.xlu0 %v153
    %v155 = vpop.xlane.xlu0 %154
    %v156 = vsel %vm140, %v136, 0.0
    %157 = vadd.xlane.f32.xlu0 %v156
    %v158 = vpop.xlane.xlu0 %157
    %v159 = vrcp.pop 32.0
    %v160 = vmul.f32 32.0, %v159
    %v161 = vsub.f32 1.0, %v160
    %v162 = vmul.f32 %v159, %v161
    %v163 = vadd.f32 %v159, %v162
    %vm164 = vweird.f32 %v159
    %v165 = vsel %vm164, %v159, %v163
    %v166 = vmul.f32 %v143, %v165
    %v167 = vmul.f32 %v146, %v165
    %v168 = vmul.f32 %v149, %v165
    %v169 = vmul.f32 %v152, %v165
    %v170 = vmul.f32 %v155, %v165
    %v171 = vmul.f32 %v158, %v165
    %v172 = vsub.f32 %v121, %v166
    %v173 = vsub.f32 %v124, %v167
    %v174 = vsub.f32 %v127, %v168
    %v175 = vsub.f32 %v130, %v169
    %v176 = vsub.f32 %v133, %v170
    %v177 = vsub.f32 %v136, %v171
    %v178 = vmul.f32 %v172, %v172
    %v179 = vmul.f32 %v173, %v173
    %v180 = vmul.f32 %v174, %v174
    %v181 = vmul.f32 %v175, %v175
    %v182 = vmul.f32 %v176, %v176
    %v183 = vmul.f32 %v177, %v177
    %v184 = vsel %vm140, %v178, 0.0
    %185 = vadd.xlane.f32.xlu0 %v184
    %v186 = vpop.xlane.xlu0 %185
    %v187 = vsel %vm140, %v179, 0.0
    %188 = vadd.xlane.f32.xlu0 %v187
    %v189 = vpop.xlane.xlu0 %188
    %v190 = vsel %vm140, %v180, 0.0
    %191 = vadd.xlane.f32.xlu0 %v190
    %v192 = vpop.xlane.xlu0 %191
    %v193 = vsel %vm140, %v181, 0.0
    %194 = vadd.xlane.f32.xlu0 %v193
    %v195 = vpop.xlane.xlu0 %194
    %v196 = vsel %vm140, %v182, 0.0
    %197 = vadd.xlane.f32.xlu0 %v196
    %v198 = vpop.xlane.xlu0 %197
    %v199 = vsel %vm140, %v183, 0.0
    %200 = vadd.xlane.f32.xlu0 %v199
    %v201 = vpop.xlane.xlu0 %200
    %v202 = vmul.f32 %v186, %v165
    %v203 = vmul.f32 %v189, %v165
    %v204 = vmul.f32 %v192, %v165
    %v205 = vmul.f32 %v195, %v165
    %v206 = vmul.f32 %v198, %v165
    %v207 = vmul.f32 %v201, %v165
    %v208 = vadd.f32 %v202, 1e-06
    %v209 = vadd.f32 %v203, 1e-06
    %v210 = vadd.f32 %v204, 1e-06
    %v211 = vadd.f32 %v205, 1e-06
    %v212 = vadd.f32 %v206, 1e-06
    %v213 = vadd.f32 %v207, 1e-06
    %v214 = vrsqrt.pop %v208
    %v215 = vmul.f32 %v214, %v208
    %v216 = vmul.f32 %v215, %v214
    %v217 = vmul.f32 0.5, %v216
    %v218 = vsub.f32 1.5, %v217
    %v219 = vmul.f32 %v214, %v218
    %vm220 = vweird.f32 %v208
    %vm221 = vweird.f32 %v214
    %vm222 = vmor %vm220, %vm221
    %v223 = vsel %vm222, %v214, %v219
    %v224 = vrsqrt.pop %v209
    %v225 = vmul.f32 %v224, %v209
    %v226 = vmul.f32 %v225, %v224
    %v227 = vmul.f32 0.5, %v226
    %v228 = vsub.f32 1.5, %v227
    %v229 = vmul.f32 %v224, %v228
    %vm230 = vweird.f32 %v209
    %vm231 = vweird.f32 %v224
    %vm232 = vmor %vm230, %vm231
    %v233 = vsel %vm232, %v224, %v229
    %v234 = vrsqrt.pop %v210
    %v235 = vmul.f32 %v234, %v210
    %v236 = vmul.f32 %v235, %v234
    %v237 = vmul.f32 0.5, %v236
    %v238 = vsub.f32 1.5, %v237
    %v239 = vmul.f32 %v234, %v238
    %vm240 = vweird.f32 %v210
    %vm241 = vweird.f32 %v234
    %vm242 = vmor %vm240, %vm241
    %v243 = vsel %vm242, %v234, %v239
    %v244 = vrsqrt.pop %v211
    %v245 = vmul.f32 %v244, %v211
    %v246 = vmul.f32 %v245, %v244
    %v247 = vmul.f32 0.5, %v246
    %v248 = vsub.f32 1.5, %v247
    %v249 = vmul.f32 %v244, %v248
    %vm250 = vweird.f32 %v211
    %vm251 = vweird.f32 %v244
    %vm252 = vmor %vm250, %vm251
    %v253 = vsel %vm252, %v244, %v249
    %v254 = vrsqrt.pop %v212
    %v255 = vmul.f32 %v254, %v212
    %v256 = vmul.f32 %v255, %v254
    %v257 = vmul.f32 0.5, %v256
    %v258 = vsub.f32 1.5, %v257
    %v259 = vmul.f32 %v254, %v258
    %vm260 = vweird.f32 %v212
    %vm261 = vweird.f32 %v254
    %vm262 = vmor %vm260, %vm261
    %v263 = vsel %vm262, %v254, %v259
    %v264 = vrsqrt.pop %v213
    %v265 = vmul.f32 %v264, %v213
    %v266 = vmul.f32 %v265, %v264
    %v267 = vmul.f32 0.5, %v266
    %v268 = vsub.f32 1.5, %v267
    %v269 = vmul.f32 %v264, %v268
    %vm270 = vweird.f32 %v213
    %vm271 = vweird.f32 %v264
    %vm272 = vmor %vm270, %vm271
    %v273 = vsel %vm272, %v264, %v269
    %v274 = vmul.f32 %v172, %v223
    %v275 = vmul.f32 %v173, %v233
    %v276 = vmul.f32 %v174, %v243
    %v277 = vmul.f32 %v175, %v253
    %v278 = vmul.f32 %v176, %v263
    %v279 = vmul.f32 %v177, %v273
    %v281 = vperm.slane %v138, 0
    %v283 = vmul.f32 %v274, %v281
    %v284 = vmul.f32 %v275, %v281
    %v285 = vmul.f32 %v276, %v281
    %v286 = vmul.f32 %v277, %v281
    %v287 = vmul.f32 %v278, %v281
    %v288 = vmul.f32 %v279, %v281
    %v290 = vperm.slane %v139, 0
    %v292 = vadd.f32 %v283, %v290
    %v293 = vadd.f32 %v284, %v290
    %v294 = vadd.f32 %v285, %v290
    %v295 = vadd.f32 %v286, %v290
    %v296 = vadd.f32 %v287, %v290
    %v297 = vadd.f32 %v288, %v290
    %v298 = vld [vmem:[%s5] sm:$0xff]
    %v299 = vld [vmem:[%s5 + $0x8] sm:$0xff]
    %v300 = vld [vmem:[%s5 + $0x10] sm:$0xff]
    %v301 = vld [vmem:[%s5 + $0x18] sm:$0xff]
    %v302 = vld [vmem:[%s6] sm:$0x1]
    %v304 = vperm.slane %v302, 0
    %v307 = vsel %vm140, %v292, 0
    %v310 = vsel %vm140, %v293, 0
    %v313 = vsel %vm140, %v294, 0
    %v316 = vsel %vm140, %v295, 0
    %v319 = vsel %vm140, %v296, 0
    %v322 = vsel %vm140, %v297, 0
    %324 = vmatpush.msra.mxu0 0.0
    %325 = vmatpush.msra.mxu0 0.0
    %326 = vmatpush.msra.mxu0 0.0
    %327 = vmatpush.msra.mxu0 0.0
    %328 = vmatpush.msra.mxu0 0.0
    %329 = vmatpush.msra.mxu0 0.0
    %330 = vmatpush.msra.mxu0 0.0
    %331 = vmatpush.msra.mxu0 0.0
    %332 = vmatpush.msra.mxu0 0.0
    %333 = vmatpush.msra.mxu0 0.0
    %334 = vmatpush.msra.mxu0 0.0
    %335 = vmatpush.msra.mxu0 0.0
    %336 = vmatpush.msra.mxu0 %v301
    %337 = vmatpush.msra.mxu0 %v300
    %338 = vmatpush.msra.mxu0 %v299
    %339 = vmatpush.msra.mxu0 %v298
    %340 = vmatmul.f32.gmra.mxu0 %v307
    %v341 = vpop.f32.mrf.mxu0
    %v342 = vadd.f32 %v304, %v341
    %343 = vmatmul.f32.gmra.mxu0 %v310
    %v344 = vpop.f32.mrf.mxu0
    %v345 = vadd.f32 %v304, %v344
    %346 = vmatmul.f32.gmra.mxu0 %v313
    %v347 = vpop.f32.mrf.mxu0
    %v348 = vadd.f32 %v304, %v347
    %349 = vmatmul.f32.gmra.mxu0 %v316
    %v350 = vpop.f32.mrf.mxu0
    %v351 = vadd.f32 %v304, %v350
    %352 = vmatmul.f32.gmra.mxu0 %v319
    %v353 = vpop.f32.mrf.mxu0
    %v354 = vadd.f32 %v304, %v353
    %355 = vmatmul.f32.gmra.mxu0 %v322
    %v356 = vpop.f32.mrf.mxu0
    %v357 = vadd.f32 %v304, %v356
    %358 = vdwg.mxu0
    %v359 = vld [vmem:[%s7] sm:$0xff]
    %v360 = vld [vmem:[%s7 + $0x8] sm:$0xff]
    %v361 = vld [vmem:[%s7 + $0x10] sm:$0xff]
    %v362 = vld [vmem:[%s7 + $0x18] sm:$0xff]
    %366 = vrot.lane.b32.xlu0 %v342, 96
    %v367 = vpop.permute.xlu0 %366
    %368 = vrot.lane.b32.xlu0 %v345, 96
    %v369 = vpop.permute.xlu0 %368
    %370 = vrot.lane.b32.xlu0 %v348, 96
    %v371 = vpop.permute.xlu0 %370
    %vm372 = vcmask 64512
    %v373 = vsel %vm372, %v342, 0
    %v375 = vsel %vm372, %v345, 0
    %v377 = vsel %vm372, %v348, 0
    %v379 = vsel %vm372, %v367, 0
    %v381 = vsel %vm372, %v369, 0
    %v383 = vsel %vm372, %v371, 0
    %385 = vmatpush.xpose.msra.mxu0 0.0
    %386 = vmatpush.xpose.msra.mxu0 0.0
    %387 = vmatpush.xpose.msra.mxu0 0.0
    %388 = vmatpush.xpose.msra.mxu0 0.0
    %389 = vmatpush.xpose.msra.mxu0 0.0
    %390 = vmatpush.xpose.msra.mxu0 0.0
    %391 = vmatpush.xpose.msra.mxu0 0.0
    %392 = vmatpush.xpose.msra.mxu0 0.0
    %393 = vmatpush.xpose.msra.mxu0 0.0
    %394 = vmatpush.xpose.msra.mxu0 0.0
    %395 = vmatpush.xpose.msra.mxu0 0.0
    %396 = vmatpush.xpose.msra.mxu0 0.0
    %397 = vmatpush.xpose.msra.mxu0 0.0
    %398 = vmatpush.xpose.msra.mxu0 %v383
    %399 = vmatpush.xpose.msra.mxu0 %v381
    %400 = vmatpush.xpose.msra.mxu0 %v379
    %401 = vmatmul.f32.gmra.mxu0 %v373
    %v402 = vpop.f32.mrf.mxu0
    %v403 = vadd.f32 0.0, %v402
    %404 = vmatmul.f32.gmra.mxu0 %v375
    %v405 = vpop.f32.mrf.mxu0
    %v406 = vadd.f32 0.0, %v405
    %407 = vmatmul.f32.gmra.mxu0 %v377
    %v408 = vpop.f32.mrf.mxu0
    %v409 = vadd.f32 0.0, %v408
    %410 = vdwg.mxu0
    %v411 = vmul.f32 %v403, 0.35355338
    %v412 = vmul.f32 %v406, 0.35355338
    %v413 = vmul.f32 %v409, 0.35355338
    %v414 = vsel %vm65, %v411, -1e+30
    %v415 = vsel %vm65, %v412, -1e+30
    %v416 = vsel %vm65, %v413, -1e+30
    %vm417 = vcmask 195584
    %v418 = vsel %vm417, %v414, -inf
    %419 = vmax.xlane.f32.xlu0 %v418
    %v420 = vpop.xlane.xlu0 %419
    %v421 = vsel %vm417, %v415, -inf
    %422 = vmax.xlane.f32.xlu0 %v421
    %v423 = vpop.xlane.xlu0 %422
    %v424 = vsel %vm417, %v416, -inf
    %425 = vmax.xlane.f32.xlu0 %v424
    %v426 = vpop.xlane.xlu0 %425
    %v427 = vsub.f32 %v414, %v420
    %v428 = vsub.f32 %v415, %v423
    %v429 = vsub.f32 %v416, %v426
    %v430 = vmul.f32 %v427, 1.442695
    %v431 = vpow.pop %v430
    %v432 = vmul.f32 %v428, 1.442695
    %v433 = vpow.pop %v432
    %v434 = vmul.f32 %v429, 1.442695
    %v435 = vpow.pop %v434
    %v436 = vsel %vm417, %v431, 0.0
    %437 = vadd.xlane.f32.xlu0 %v436
    %v438 = vpop.xlane.xlu0 %437
    %v439 = vsel %vm417, %v433, 0.0
    %440 = vadd.xlane.f32.xlu0 %v439
    %v441 = vpop.xlane.xlu0 %440
    %v442 = vsel %vm417, %v435, 0.0
    %443 = vadd.xlane.f32.xlu0 %v442
    %v444 = vpop.xlane.xlu0 %443
    %v445 = vrcp.pop %v438
    %v446 = vmul.f32 %v438, %v445
    %v447 = vsub.f32 1.0, %v446
    %v448 = vmul.f32 %v445, %v447
    %v449 = vadd.f32 %v445, %v448
    %vm450 = vweird.f32 %v438
    %vm451 = vweird.f32 %v445
    %vm452 = vmor %vm450, %vm451
    %v453 = vsel %vm452, %v445, %v449
    %v454 = vand.u32 2147483647, %v438
    %vm455 = vcmp.eq.f32.partialorder %v454, 8.507059e+37
    %v456 = vand.u32 %v438, 2147483648
    %v457 = vor.u32 1.1754944e-38, %v456
    %v458 = vsel %vm455, %v457, %v453
    %v459 = vmul.f32 %v431, %v458
    %v460 = vrcp.pop %v441
    %v461 = vmul.f32 %v441, %v460
    %v462 = vsub.f32 1.0, %v461
    %v463 = vmul.f32 %v460, %v462
    %v464 = vadd.f32 %v460, %v463
    %vm465 = vweird.f32 %v441
    %vm466 = vweird.f32 %v460
    %vm467 = vmor %vm465, %vm466
    %v468 = vsel %vm467, %v460, %v464
    %v469 = vand.u32 2147483647, %v441
    %vm470 = vcmp.eq.f32.partialorder %v469, 8.507059e+37
    %v471 = vand.u32 %v441, 2147483648
    %v472 = vor.u32 1.1754944e-38, %v471
    %v473 = vsel %vm470, %v472, %v468
    %v474 = vmul.f32 %v433, %v473
    %v475 = vrcp.pop %v444
    %v476 = vmul.f32 %v444, %v475
    %v477 = vsub.f32 1.0, %v476
    %v478 = vmul.f32 %v475, %v477
    %v479 = vadd.f32 %v475, %v478
    %vm480 = vweird.f32 %v444
    %vm481 = vweird.f32 %v475
    %vm482 = vmor %vm480, %vm481
    %v483 = vsel %vm482, %v475, %v479
    %v484 = vand.u32 2147483647, %v444
    %vm485 = vcmp.eq.f32.partialorder %v484, 8.507059e+37
    %v486 = vand.u32 %v444, 2147483648
    %v487 = vor.u32 1.1754944e-38, %v486
    %v488 = vsel %vm485, %v487, %v483
    %v489 = vmul.f32 %v435, %v488
    %490 = vrot.lane.b32.xlu0 %v342, 64
    %v491 = vpop.permute.xlu0 %490
    %492 = vrot.lane.b32.xlu0 %v345, 64
    %v493 = vpop.permute.xlu0 %492
    %494 = vrot.lane.b32.xlu0 %v348, 64
    %v495 = vpop.permute.xlu0 %494
    %v500 = vsel %vm417, %v459, 0
    %v503 = vsel %vm417, %v474, 0
    %v506 = vsel %vm417, %v489, 0
    %508 = vmatpush.msra.mxu0 0.0
    %509 = vmatpush.msra.mxu0 0.0
    %510 = vmatpush.msra.mxu0 0.0
    %511 = vmatpush.msra.mxu0 0.0
    %512 = vmatpush.msra.mxu0 0.0
    %513 = vmatpush.msra.mxu0 0.0
    %514 = vmatpush.msra.mxu0 0.0
    %515 = vmatpush.msra.mxu0 0.0
    %516 = vmatpush.msra.mxu0 0.0
    %517 = vmatpush.msra.mxu0 0.0
    %518 = vmatpush.msra.mxu0 0.0
    %519 = vmatpush.msra.mxu0 0.0
    %520 = vmatpush.msra.mxu0 0.0
    %521 = vmatpush.msra.mxu0 %v495
    %522 = vmatpush.msra.mxu0 %v493
    %523 = vmatpush.msra.mxu0 %v491
    %524 = vmatmul.f32.gmra.mxu0 %v500
    %v525 = vpop.f32.mrf.mxu0
    %v526 = vadd.f32 0.0, %v525
    %527 = vmatmul.f32.gmra.mxu0 %v503
    %v528 = vpop.f32.mrf.mxu0
    %v529 = vadd.f32 0.0, %v528
    %530 = vmatmul.f32.gmra.mxu0 %v506
    %v531 = vpop.f32.mrf.mxu0
    %v532 = vadd.f32 0.0, %v531
    %533 = vdwg.mxu0
    %534 = vrot.lane.b32.xlu0 %v342, 120
    %v535 = vpop.permute.xlu0 %534
    %536 = vrot.lane.b32.xlu0 %v345, 120
    %v537 = vpop.permute.xlu0 %536
    %538 = vrot.lane.b32.xlu0 %v348, 120
    %v539 = vpop.permute.xlu0 %538
    %540 = vrot.lane.b32.xlu0 %v342, 88
    %v541 = vpop.permute.xlu0 %540
    %542 = vrot.lane.b32.xlu0 %v345, 88
    %v543 = vpop.permute.xlu0 %542
    %544 = vrot.lane.b32.xlu0 %v348, 88
    %v545 = vpop.permute.xlu0 %544
    %v546 = vsel %vm372, %v535, 0
    %v548 = vsel %vm372, %v537, 0
    %v550 = vsel %vm372, %v539, 0
    %v552 = vsel %vm372, %v541, 0
    %v554 = vsel %vm372, %v543, 0
    %v556 = vsel %vm372, %v545, 0
    %558 = vmatpush.xpose.msra.mxu0 0.0
    %559 = vmatpush.xpose.msra.mxu0 0.0
    %560 = vmatpush.xpose.msra.mxu0 0.0
    %561 = vmatpush.xpose.msra.mxu0 0.0
    %562 = vmatpush.xpose.msra.mxu0 0.0
    %563 = vmatpush.xpose.msra.mxu0 0.0
    %564 = vmatpush.xpose.msra.mxu0 0.0
    %565 = vmatpush.xpose.msra.mxu0 0.0
    %566 = vmatpush.xpose.msra.mxu0 0.0
    %567 = vmatpush.xpose.msra.mxu0 0.0
    %568 = vmatpush.xpose.msra.mxu0 0.0
    %569 = vmatpush.xpose.msra.mxu0 0.0
    %570 = vmatpush.xpose.msra.mxu0 0.0
    %571 = vmatpush.xpose.msra.mxu0 %v556
    %572 = vmatpush.xpose.msra.mxu0 %v554
    %573 = vmatpush.xpose.msra.mxu0 %v552
    %574 = vmatmul.f32.gmra.mxu0 %v546
    %v575 = vpop.f32.mrf.mxu0
    %v576 = vadd.f32 0.0, %v575
    %577 = vmatmul.f32.gmra.mxu0 %v548
    %v578 = vpop.f32.mrf.mxu0
    %v579 = vadd.f32 0.0, %v578
    %580 = vmatmul.f32.gmra.mxu0 %v550
    %v581 = vpop.f32.mrf.mxu0
    %v582 = vadd.f32 0.0, %v581
    %583 = vdwg.mxu0
    %v584 = vmul.f32 %v576, 0.35355338
    %v585 = vmul.f32 %v579, 0.35355338
    %v586 = vmul.f32 %v582, 0.35355338
    %v587 = vsel %vm65, %v584, -1e+30
    %v588 = vsel %vm65, %v585, -1e+30
    %v589 = vsel %vm65, %v586, -1e+30
    %v590 = vsel %vm417, %v587, -inf
    %591 = vmax.xlane.f32.xlu0 %v590
    %v592 = vpop.xlane.xlu0 %591
    %v593 = vsel %vm417, %v588, -inf
    %594 = vmax.xlane.f32.xlu0 %v593
    %v595 = vpop.xlane.xlu0 %594
    %v596 = vsel %vm417, %v589, -inf
    %597 = vmax.xlane.f32.xlu0 %v596
    %v598 = vpop.xlane.xlu0 %597
    %v599 = vsub.f32 %v587, %v592
    %v600 = vsub.f32 %v588, %v595
    %v601 = vsub.f32 %v589, %v598
    %v602 = vmul.f32 %v599, 1.442695
    %v603 = vpow.pop %v602
    %v604 = vmul.f32 %v600, 1.442695
    %v605 = vpow.pop %v604
    %v606 = vmul.f32 %v601, 1.442695
    %v607 = vpow.pop %v606
    %v608 = vsel %vm417, %v603, 0.0
    %609 = vadd.xlane.f32.xlu0 %v608
    %v610 = vpop.xlane.xlu0 %609
    %v611 = vsel %vm417, %v605, 0.0
    %612 = vadd.xlane.f32.xlu0 %v611
    %v613 = vpop.xlane.xlu0 %612
    %v614 = vsel %vm417, %v607, 0.0
    %615 = vadd.xlane.f32.xlu0 %v614
    %v616 = vpop.xlane.xlu0 %615
    %v617 = vrcp.pop %v610
    %v618 = vmul.f32 %v610, %v617
    %v619 = vsub.f32 1.0, %v618
    %v620 = vmul.f32 %v617, %v619
    %v621 = vadd.f32 %v617, %v620
    %vm622 = vweird.f32 %v610
    %vm623 = vweird.f32 %v617
    %vm624 = vmor %vm622, %vm623
    %v625 = vsel %vm624, %v617, %v621
    %v626 = vand.u32 2147483647, %v610
    %vm627 = vcmp.eq.f32.partialorder %v626, 8.507059e+37
    %v628 = vand.u32 %v610, 2147483648
    %v629 = vor.u32 1.1754944e-38, %v628
    %v630 = vsel %vm627, %v629, %v625
    %v631 = vmul.f32 %v603, %v630
    %v632 = vrcp.pop %v613
    %v633 = vmul.f32 %v613, %v632
    %v634 = vsub.f32 1.0, %v633
    %v635 = vmul.f32 %v632, %v634
    %v636 = vadd.f32 %v632, %v635
    %vm637 = vweird.f32 %v613
    %vm638 = vweird.f32 %v632
    %vm639 = vmor %vm637, %vm638
    %v640 = vsel %vm639, %v632, %v636
    %v641 = vand.u32 2147483647, %v613
    %vm642 = vcmp.eq.f32.partialorder %v641, 8.507059e+37
    %v643 = vand.u32 %v613, 2147483648
    %v644 = vor.u32 1.1754944e-38, %v643
    %v645 = vsel %vm642, %v644, %v640
    %v646 = vmul.f32 %v605, %v645
    %v647 = vrcp.pop %v616
    %v648 = vmul.f32 %v616, %v647
    %v649 = vsub.f32 1.0, %v648
    %v650 = vmul.f32 %v647, %v649
    %v651 = vadd.f32 %v647, %v650
    %vm652 = vweird.f32 %v616
    %vm653 = vweird.f32 %v647
    %vm654 = vmor %vm652, %vm653
    %v655 = vsel %vm654, %v647, %v651
    %v656 = vand.u32 2147483647, %v616
    %vm657 = vcmp.eq.f32.partialorder %v656, 8.507059e+37
    %v658 = vand.u32 %v616, 2147483648
    %v659 = vor.u32 1.1754944e-38, %v658
    %v660 = vsel %vm657, %v659, %v655
    %v661 = vmul.f32 %v607, %v660
    %662 = vrot.lane.b32.xlu0 %v342, 56
    %v663 = vpop.permute.xlu0 %662
    %664 = vrot.lane.b32.xlu0 %v345, 56
    %v665 = vpop.permute.xlu0 %664
    %666 = vrot.lane.b32.xlu0 %v348, 56
    %v667 = vpop.permute.xlu0 %666
    %v672 = vsel %vm417, %v631, 0
    %v675 = vsel %vm417, %v646, 0
    %v678 = vsel %vm417, %v661, 0
    %680 = vmatpush.msra.mxu0 0.0
    %681 = vmatpush.msra.mxu0 0.0
    %682 = vmatpush.msra.mxu0 0.0
    %683 = vmatpush.msra.mxu0 0.0
    %684 = vmatpush.msra.mxu0 0.0
    %685 = vmatpush.msra.mxu0 0.0
    %686 = vmatpush.msra.mxu0 0.0
    %687 = vmatpush.msra.mxu0 0.0
    %688 = vmatpush.msra.mxu0 0.0
    %689 = vmatpush.msra.mxu0 0.0
    %690 = vmatpush.msra.mxu0 0.0
    %691 = vmatpush.msra.mxu0 0.0
    %692 = vmatpush.msra.mxu0 0.0
    %693 = vmatpush.msra.mxu0 %v667
    %694 = vmatpush.msra.mxu0 %v665
    %695 = vmatpush.msra.mxu0 %v663
    %696 = vmatmul.f32.gmra.mxu0 %v672
    %v697 = vpop.f32.mrf.mxu0
    %v698 = vadd.f32 0.0, %v697
    %699 = vmatmul.f32.gmra.mxu0 %v675
    %v700 = vpop.f32.mrf.mxu0
    %v701 = vadd.f32 0.0, %v700
    %702 = vmatmul.f32.gmra.mxu0 %v678
    %v703 = vpop.f32.mrf.mxu0
    %v704 = vadd.f32 0.0, %v703
    %705 = vdwg.mxu0
    %v707 = vsel %vm372, %v698, 0
    %v710 = vsel %vm372, %v701, 0
    %v713 = vsel %vm372, %v704, 0
    %715 = vmatpush.msra.mxu0 0.0
    %716 = vmatpush.msra.mxu0 0.0
    %717 = vmatpush.msra.mxu0 0.0
    %718 = vmatpush.msra.mxu0 0.0
    %719 = vmatpush.msra.mxu0 0.0
    %720 = vmatpush.msra.mxu0 0.0
    %721 = vmatpush.msra.mxu0 0.0
    %722 = vmatpush.msra.mxu0 0.0
    %723 = vmatpush.msra.mxu0 0.0
    %724 = vmatpush.msra.mxu0 0.0
    %725 = vmatpush.msra.mxu0 0.0
    %726 = vmatpush.msra.mxu0 0.0
    %727 = vmatpush.msra.mxu0 0.0
    %728 = vmatpush.msra.mxu0 0.0
    %729 = vmatpush.msra.mxu0 0.0
    %730 = vmatpush.msra.mxu0 %v360
    %731 = vmatmul.f32.gmra.mxu0 %v707
    %v732 = vpop.f32.mrf.mxu0
    %v733 = vadd.f32 0.0, %v732
    %734 = vmatmul.f32.gmra.mxu0 %v710
    %v735 = vpop.f32.mrf.mxu0
    %v736 = vadd.f32 0.0, %v735
    %737 = vmatmul.f32.gmra.mxu0 %v713
    %v738 = vpop.f32.mrf.mxu0
    %v739 = vadd.f32 0.0, %v738
    %740 = vdwg.mxu0
    %v742 = vsel %vm372, %v526, 0
    %v745 = vsel %vm372, %v529, 0
    %v748 = vsel %vm372, %v532, 0
    %750 = vmatpush.msra.mxu0 0.0
    %751 = vmatpush.msra.mxu0 0.0
    %752 = vmatpush.msra.mxu0 0.0
    %753 = vmatpush.msra.mxu0 0.0
    %754 = vmatpush.msra.mxu0 0.0
    %755 = vmatpush.msra.mxu0 0.0
    %756 = vmatpush.msra.mxu0 0.0
    %757 = vmatpush.msra.mxu0 0.0
    %758 = vmatpush.msra.mxu0 0.0
    %759 = vmatpush.msra.mxu0 0.0
    %760 = vmatpush.msra.mxu0 0.0
    %761 = vmatpush.msra.mxu0 0.0
    %762 = vmatpush.msra.mxu0 0.0
    %763 = vmatpush.msra.mxu0 0.0
    %764 = vmatpush.msra.mxu0 0.0
    %765 = vmatpush.msra.mxu0 %v359
    %766 = vmatmul.f32.gmra.mxu0 %v742
    %v767 = vpop.f32.mrf.mxu0
    %v768 = vadd.f32 %v733, %v767
    %769 = vmatmul.f32.gmra.mxu0 %v745
    %v770 = vpop.f32.mrf.mxu0
    %v771 = vadd.f32 %v736, %v770
    %772 = vmatmul.f32.gmra.mxu0 %v748
    %v773 = vpop.f32.mrf.mxu0
    %v774 = vadd.f32 %v739, %v773
    %775 = vdwg.mxu0
    %776 = vrot.lane.b32.xlu0 %v342, 112
    %v777 = vpop.permute.xlu0 %776
    %778 = vrot.lane.b32.xlu0 %v345, 112
    %v779 = vpop.permute.xlu0 %778
    %780 = vrot.lane.b32.xlu0 %v348, 112
    %v781 = vpop.permute.xlu0 %780
    %782 = vrot.lane.b32.xlu0 %v342, 80
    %v783 = vpop.permute.xlu0 %782
    %784 = vrot.lane.b32.xlu0 %v345, 80
    %v785 = vpop.permute.xlu0 %784
    %786 = vrot.lane.b32.xlu0 %v348, 80
    %v787 = vpop.permute.xlu0 %786
    %v788 = vsel %vm372, %v777, 0
    %v790 = vsel %vm372, %v779, 0
    %v792 = vsel %vm372, %v781, 0
    %v794 = vsel %vm372, %v783, 0
    %v796 = vsel %vm372, %v785, 0
    %v798 = vsel %vm372, %v787, 0
    %800 = vmatpush.xpose.msra.mxu0 0.0
    %801 = vmatpush.xpose.msra.mxu0 0.0
    %802 = vmatpush.xpose.msra.mxu0 0.0
    %803 = vmatpush.xpose.msra.mxu0 0.0
    %804 = vmatpush.xpose.msra.mxu0 0.0
    %805 = vmatpush.xpose.msra.mxu0 0.0
    %806 = vmatpush.xpose.msra.mxu0 0.0
    %807 = vmatpush.xpose.msra.mxu0 0.0
    %808 = vmatpush.xpose.msra.mxu0 0.0
    %809 = vmatpush.xpose.msra.mxu0 0.0
    %810 = vmatpush.xpose.msra.mxu0 0.0
    %811 = vmatpush.xpose.msra.mxu0 0.0
    %812 = vmatpush.xpose.msra.mxu0 0.0
    %813 = vmatpush.xpose.msra.mxu0 %v798
    %814 = vmatpush.xpose.msra.mxu0 %v796
    %815 = vmatpush.xpose.msra.mxu0 %v794
    %816 = vmatmul.f32.gmra.mxu0 %v788
    %v817 = vpop.f32.mrf.mxu0
    %v818 = vadd.f32 0.0, %v817
    %819 = vmatmul.f32.gmra.mxu0 %v790
    %v820 = vpop.f32.mrf.mxu0
    %v821 = vadd.f32 0.0, %v820
    %822 = vmatmul.f32.gmra.mxu0 %v792
    %v823 = vpop.f32.mrf.mxu0
    %v824 = vadd.f32 0.0, %v823
    %825 = vdwg.mxu0
    %v826 = vmul.f32 %v818, 0.35355338
    %v827 = vmul.f32 %v821, 0.35355338
    %v828 = vmul.f32 %v824, 0.35355338
    %v829 = vsel %vm65, %v826, -1e+30
    %v830 = vsel %vm65, %v827, -1e+30
    %v831 = vsel %vm65, %v828, -1e+30
    %v832 = vsel %vm417, %v829, -inf
    %833 = vmax.xlane.f32.xlu0 %v832
    %v834 = vpop.xlane.xlu0 %833
    %v835 = vsel %vm417, %v830, -inf
    %836 = vmax.xlane.f32.xlu0 %v835
    %v837 = vpop.xlane.xlu0 %836
    %v838 = vsel %vm417, %v831, -inf
    %839 = vmax.xlane.f32.xlu0 %v838
    %v840 = vpop.xlane.xlu0 %839
    %v841 = vsub.f32 %v829, %v834
    %v842 = vsub.f32 %v830, %v837
    %v843 = vsub.f32 %v831, %v840
    %v844 = vmul.f32 %v841, 1.442695
    %v845 = vpow.pop %v844
    %v846 = vmul.f32 %v842, 1.442695
    %v847 = vpow.pop %v846
    %v848 = vmul.f32 %v843, 1.442695
    %v849 = vpow.pop %v848
    %v850 = vsel %vm417, %v845, 0.0
    %851 = vadd.xlane.f32.xlu0 %v850
    %v852 = vpop.xlane.xlu0 %851
    %v853 = vsel %vm417, %v847, 0.0
    %854 = vadd.xlane.f32.xlu0 %v853
    %v855 = vpop.xlane.xlu0 %854
    %v856 = vsel %vm417, %v849, 0.0
    %857 = vadd.xlane.f32.xlu0 %v856
    %v858 = vpop.xlane.xlu0 %857
    %v859 = vrcp.pop %v852
    %v860 = vmul.f32 %v852, %v859
    %v861 = vsub.f32 1.0, %v860
    %v862 = vmul.f32 %v859, %v861
    %v863 = vadd.f32 %v859, %v862
    %vm864 = vweird.f32 %v852
    %vm865 = vweird.f32 %v859
    %vm866 = vmor %vm864, %vm865
    %v867 = vsel %vm866, %v859, %v863
    %v868 = vand.u32 2147483647, %v852
    %vm869 = vcmp.eq.f32.partialorder %v868, 8.507059e+37
    %v870 = vand.u32 %v852, 2147483648
    %v871 = vor.u32 1.1754944e-38, %v870
    %v872 = vsel %vm869, %v871, %v867
    %v873 = vmul.f32 %v845, %v872
    %v874 = vrcp.pop %v855
    %v875 = vmul.f32 %v855, %v874
    %v876 = vsub.f32 1.0, %v875
    %v877 = vmul.f32 %v874, %v876
    %v878 = vadd.f32 %v874, %v877
    %vm879 = vweird.f32 %v855
    %vm880 = vweird.f32 %v874
    %vm881 = vmor %vm879, %vm880
    %v882 = vsel %vm881, %v874, %v878
    %v883 = vand.u32 2147483647, %v855
    %vm884 = vcmp.eq.f32.partialorder %v883, 8.507059e+37
    %v885 = vand.u32 %v855, 2147483648
    %v886 = vor.u32 1.1754944e-38, %v885
    %v887 = vsel %vm884, %v886, %v882
    %v888 = vmul.f32 %v847, %v887
    %v889 = vrcp.pop %v858
    %v890 = vmul.f32 %v858, %v889
    %v891 = vsub.f32 1.0, %v890
    %v892 = vmul.f32 %v889, %v891
    %v893 = vadd.f32 %v889, %v892
    %vm894 = vweird.f32 %v858
    %vm895 = vweird.f32 %v889
    %vm896 = vmor %vm894, %vm895
    %v897 = vsel %vm896, %v889, %v893
    %v898 = vand.u32 2147483647, %v858
    %vm899 = vcmp.eq.f32.partialorder %v898, 8.507059e+37
    %v900 = vand.u32 %v858, 2147483648
    %v901 = vor.u32 1.1754944e-38, %v900
    %v902 = vsel %vm899, %v901, %v897
    %v903 = vmul.f32 %v849, %v902
    %904 = vrot.lane.b32.xlu0 %v342, 48
    %v905 = vpop.permute.xlu0 %904
    %906 = vrot.lane.b32.xlu0 %v345, 48
    %v907 = vpop.permute.xlu0 %906
    %908 = vrot.lane.b32.xlu0 %v348, 48
    %v909 = vpop.permute.xlu0 %908
    %v914 = vsel %vm417, %v873, 0
    %v917 = vsel %vm417, %v888, 0
    %v920 = vsel %vm417, %v903, 0
    %922 = vmatpush.msra.mxu0 0.0
    %923 = vmatpush.msra.mxu0 0.0
    %924 = vmatpush.msra.mxu0 0.0
    %925 = vmatpush.msra.mxu0 0.0
    %926 = vmatpush.msra.mxu0 0.0
    %927 = vmatpush.msra.mxu0 0.0
    %928 = vmatpush.msra.mxu0 0.0
    %929 = vmatpush.msra.mxu0 0.0
    %930 = vmatpush.msra.mxu0 0.0
    %931 = vmatpush.msra.mxu0 0.0
    %932 = vmatpush.msra.mxu0 0.0
    %933 = vmatpush.msra.mxu0 0.0
    %934 = vmatpush.msra.mxu0 0.0
    %935 = vmatpush.msra.mxu0 %v909
    %936 = vmatpush.msra.mxu0 %v907
    %937 = vmatpush.msra.mxu0 %v905
    %938 = vmatmul.f32.gmra.mxu0 %v914
    %v939 = vpop.f32.mrf.mxu0
    %v940 = vadd.f32 0.0, %v939
    %941 = vmatmul.f32.gmra.mxu0 %v917
    %v942 = vpop.f32.mrf.mxu0
    %v943 = vadd.f32 0.0, %v942
    %944 = vmatmul.f32.gmra.mxu0 %v920
    %v945 = vpop.f32.mrf.mxu0
    %v946 = vadd.f32 0.0, %v945
    %947 = vdwg.mxu0
    %v949 = vsel %vm372, %v940, 0
    %v952 = vsel %vm372, %v943, 0
    %v955 = vsel %vm372, %v946, 0
    %957 = vmatpush.msra.mxu0 0.0
    %958 = vmatpush.msra.mxu0 0.0
    %959 = vmatpush.msra.mxu0 0.0
    %960 = vmatpush.msra.mxu0 0.0
    %961 = vmatpush.msra.mxu0 0.0
    %962 = vmatpush.msra.mxu0 0.0
    %963 = vmatpush.msra.mxu0 0.0
    %964 = vmatpush.msra.mxu0 0.0
    %965 = vmatpush.msra.mxu0 0.0
    %966 = vmatpush.msra.mxu0 0.0
    %967 = vmatpush.msra.mxu0 0.0
    %968 = vmatpush.msra.mxu0 0.0
    %969 = vmatpush.msra.mxu0 0.0
    %970 = vmatpush.msra.mxu0 0.0
    %971 = vmatpush.msra.mxu0 0.0
    %972 = vmatpush.msra.mxu0 %v361
    %973 = vmatmul.f32.gmra.mxu0 %v949
    %v974 = vpop.f32.mrf.mxu0
    %v975 = vadd.f32 0.0, %v974
    %976 = vmatmul.f32.gmra.mxu0 %v952
    %v977 = vpop.f32.mrf.mxu0
    %v978 = vadd.f32 0.0, %v977
    %979 = vmatmul.f32.gmra.mxu0 %v955
    %v980 = vpop.f32.mrf.mxu0
    %v981 = vadd.f32 0.0, %v980
    %982 = vdwg.mxu0
    %v983 = vadd.f32 %v768, %v975
    %v984 = vadd.f32 %v771, %v978
    %v985 = vadd.f32 %v774, %v981
    %986 = vrot.lane.b32.xlu0 %v342, 104
    %v987 = vpop.permute.xlu0 %986
    %988 = vrot.lane.b32.xlu0 %v345, 104
    %v989 = vpop.permute.xlu0 %988
    %990 = vrot.lane.b32.xlu0 %v348, 104
    %v991 = vpop.permute.xlu0 %990
    %992 = vrot.lane.b32.xlu0 %v342, 72
    %v993 = vpop.permute.xlu0 %992
    %994 = vrot.lane.b32.xlu0 %v345, 72
    %v995 = vpop.permute.xlu0 %994
    %996 = vrot.lane.b32.xlu0 %v348, 72
    %v997 = vpop.permute.xlu0 %996
    %v998 = vsel %vm372, %v987, 0
    %v1000 = vsel %vm372, %v989, 0
    %v1002 = vsel %vm372, %v991, 0
    %v1004 = vsel %vm372, %v993, 0
    %v1006 = vsel %vm372, %v995, 0
    %v1008 = vsel %vm372, %v997, 0
    %1010 = vmatpush.xpose.msra.mxu0 0.0
    %1011 = vmatpush.xpose.msra.mxu0 0.0
    %1012 = vmatpush.xpose.msra.mxu0 0.0
    %1013 = vmatpush.xpose.msra.mxu0 0.0
    %1014 = vmatpush.xpose.msra.mxu0 0.0
    %1015 = vmatpush.xpose.msra.mxu0 0.0
    %1016 = vmatpush.xpose.msra.mxu0 0.0
    %1017 = vmatpush.xpose.msra.mxu0 0.0
    %1018 = vmatpush.xpose.msra.mxu0 0.0
    %1019 = vmatpush.xpose.msra.mxu0 0.0
    %1020 = vmatpush.xpose.msra.mxu0 0.0
    %1021 = vmatpush.xpose.msra.mxu0 0.0
    %1022 = vmatpush.xpose.msra.mxu0 0.0
    %1023 = vmatpush.xpose.msra.mxu0 %v1008
    %1024 = vmatpush.xpose.msra.mxu0 %v1006
    %1025 = vmatpush.xpose.msra.mxu0 %v1004
    %1026 = vmatmul.f32.gmra.mxu0 %v998
    %v1027 = vpop.f32.mrf.mxu0
    %v1028 = vadd.f32 0.0, %v1027
    %1029 = vmatmul.f32.gmra.mxu0 %v1000
    %v1030 = vpop.f32.mrf.mxu0
    %v1031 = vadd.f32 0.0, %v1030
    %1032 = vmatmul.f32.gmra.mxu0 %v1002
    %v1033 = vpop.f32.mrf.mxu0
    %v1034 = vadd.f32 0.0, %v1033
    %1035 = vdwg.mxu0
    %v1036 = vmul.f32 %v1028, 0.35355338
    %v1037 = vmul.f32 %v1031, 0.35355338
    %v1038 = vmul.f32 %v1034, 0.35355338
    %v1039 = vsel %vm65, %v1036, -1e+30
    %v1040 = vsel %vm65, %v1037, -1e+30
    %v1041 = vsel %vm65, %v1038, -1e+30
    %v1042 = vsel %vm417, %v1039, -inf
    %1043 = vmax.xlane.f32.xlu0 %v1042
    %v1044 = vpop.xlane.xlu0 %1043
    %v1045 = vsel %vm417, %v1040, -inf
    %1046 = vmax.xlane.f32.xlu0 %v1045
    %v1047 = vpop.xlane.xlu0 %1046
    %v1048 = vsel %vm417, %v1041, -inf
    %1049 = vmax.xlane.f32.xlu0 %v1048
    %v1050 = vpop.xlane.xlu0 %1049
    %v1051 = vsub.f32 %v1039, %v1044
    %v1052 = vsub.f32 %v1040, %v1047
    %v1053 = vsub.f32 %v1041, %v1050
    %v1054 = vmul.f32 %v1051, 1.442695
    %v1055 = vpow.pop %v1054
    %v1056 = vmul.f32 %v1052, 1.442695
    %v1057 = vpow.pop %v1056
    %v1058 = vmul.f32 %v1053, 1.442695
    %v1059 = vpow.pop %v1058
    %v1060 = vsel %vm417, %v1055, 0.0
    %1061 = vadd.xlane.f32.xlu0 %v1060
    %v1062 = vpop.xlane.xlu0 %1061
    %v1063 = vsel %vm417, %v1057, 0.0
    %1064 = vadd.xlane.f32.xlu0 %v1063
    %v1065 = vpop.xlane.xlu0 %1064
    %v1066 = vsel %vm417, %v1059, 0.0
    %1067 = vadd.xlane.f32.xlu0 %v1066
    %v1068 = vpop.xlane.xlu0 %1067
    %v1069 = vrcp.pop %v1062
    %v1070 = vmul.f32 %v1062, %v1069
    %v1071 = vsub.f32 1.0, %v1070
    %v1072 = vmul.f32 %v1069, %v1071
    %v1073 = vadd.f32 %v1069, %v1072
    %vm1074 = vweird.f32 %v1062
    %vm1075 = vweird.f32 %v1069
    %vm1076 = vmor %vm1074, %vm1075
    %v1077 = vsel %vm1076, %v1069, %v1073
    %v1078 = vand.u32 2147483647, %v1062
    %vm1079 = vcmp.eq.f32.partialorder %v1078, 8.507059e+37
    %v1080 = vand.u32 %v1062, 2147483648
    %v1081 = vor.u32 1.1754944e-38, %v1080
    %v1082 = vsel %vm1079, %v1081, %v1077
    %v1083 = vmul.f32 %v1055, %v1082
    %v1084 = vrcp.pop %v1065
    %v1085 = vmul.f32 %v1065, %v1084
    %v1086 = vsub.f32 1.0, %v1085
    %v1087 = vmul.f32 %v1084, %v1086
    %v1088 = vadd.f32 %v1084, %v1087
    %vm1089 = vweird.f32 %v1065
    %vm1090 = vweird.f32 %v1084
    %vm1091 = vmor %vm1089, %vm1090
    %v1092 = vsel %vm1091, %v1084, %v1088
    %v1093 = vand.u32 2147483647, %v1065
    %vm1094 = vcmp.eq.f32.partialorder %v1093, 8.507059e+37
    %v1095 = vand.u32 %v1065, 2147483648
    %v1096 = vor.u32 1.1754944e-38, %v1095
    %v1097 = vsel %vm1094, %v1096, %v1092
    %v1098 = vmul.f32 %v1057, %v1097
    %v1099 = vrcp.pop %v1068
    %v1100 = vmul.f32 %v1068, %v1099
    %v1101 = vsub.f32 1.0, %v1100
    %v1102 = vmul.f32 %v1099, %v1101
    %v1103 = vadd.f32 %v1099, %v1102
    %vm1104 = vweird.f32 %v1068
    %vm1105 = vweird.f32 %v1099
    %vm1106 = vmor %vm1104, %vm1105
    %v1107 = vsel %vm1106, %v1099, %v1103
    %v1108 = vand.u32 2147483647, %v1068
    %vm1109 = vcmp.eq.f32.partialorder %v1108, 8.507059e+37
    %v1110 = vand.u32 %v1068, 2147483648
    %v1111 = vor.u32 1.1754944e-38, %v1110
    %v1112 = vsel %vm1109, %v1111, %v1107
    %v1113 = vmul.f32 %v1059, %v1112
    %1114 = vrot.lane.b32.xlu0 %v342, 40
    %v1115 = vpop.permute.xlu0 %1114
    %1116 = vrot.lane.b32.xlu0 %v345, 40
    %v1117 = vpop.permute.xlu0 %1116
    %1118 = vrot.lane.b32.xlu0 %v348, 40
    %v1119 = vpop.permute.xlu0 %1118
    %v1124 = vsel %vm417, %v1083, 0
    %v1127 = vsel %vm417, %v1098, 0
    %v1130 = vsel %vm417, %v1113, 0
    %1132 = vmatpush.msra.mxu0 0.0
    %1133 = vmatpush.msra.mxu0 0.0
    %1134 = vmatpush.msra.mxu0 0.0
    %1135 = vmatpush.msra.mxu0 0.0
    %1136 = vmatpush.msra.mxu0 0.0
    %1137 = vmatpush.msra.mxu0 0.0
    %1138 = vmatpush.msra.mxu0 0.0
    %1139 = vmatpush.msra.mxu0 0.0
    %1140 = vmatpush.msra.mxu0 0.0
    %1141 = vmatpush.msra.mxu0 0.0
    %1142 = vmatpush.msra.mxu0 0.0
    %1143 = vmatpush.msra.mxu0 0.0
    %1144 = vmatpush.msra.mxu0 0.0
    %1145 = vmatpush.msra.mxu0 %v1119
    %1146 = vmatpush.msra.mxu0 %v1117
    %1147 = vmatpush.msra.mxu0 %v1115
    %1148 = vmatmul.f32.gmra.mxu0 %v1124
    %v1149 = vpop.f32.mrf.mxu0
    %v1150 = vadd.f32 0.0, %v1149
    %1151 = vmatmul.f32.gmra.mxu0 %v1127
    %v1152 = vpop.f32.mrf.mxu0
    %v1153 = vadd.f32 0.0, %v1152
    %1154 = vmatmul.f32.gmra.mxu0 %v1130
    %v1155 = vpop.f32.mrf.mxu0
    %v1156 = vadd.f32 0.0, %v1155
    %1157 = vdwg.mxu0
    %v1159 = vsel %vm372, %v1150, 0
    %v1162 = vsel %vm372, %v1153, 0
    %v1165 = vsel %vm372, %v1156, 0
    %1167 = vmatpush.msra.mxu0 0.0
    %1168 = vmatpush.msra.mxu0 0.0
    %1169 = vmatpush.msra.mxu0 0.0
    %1170 = vmatpush.msra.mxu0 0.0
    %1171 = vmatpush.msra.mxu0 0.0
    %1172 = vmatpush.msra.mxu0 0.0
    %1173 = vmatpush.msra.mxu0 0.0
    %1174 = vmatpush.msra.mxu0 0.0
    %1175 = vmatpush.msra.mxu0 0.0
    %1176 = vmatpush.msra.mxu0 0.0
    %1177 = vmatpush.msra.mxu0 0.0
    %1178 = vmatpush.msra.mxu0 0.0
    %1179 = vmatpush.msra.mxu0 0.0
    %1180 = vmatpush.msra.mxu0 0.0
    %1181 = vmatpush.msra.mxu0 0.0
    %1182 = vmatpush.msra.mxu0 %v362
    %1183 = vmatmul.f32.gmra.mxu0 %v1159
    %v1184 = vpop.f32.mrf.mxu0
    %v1185 = vadd.f32 0.0, %v1184
    %1186 = vmatmul.f32.gmra.mxu0 %v1162
    %v1187 = vpop.f32.mrf.mxu0
    %v1188 = vadd.f32 0.0, %v1187
    %1189 = vmatmul.f32.gmra.mxu0 %v1165
    %v1190 = vpop.f32.mrf.mxu0
    %v1191 = vadd.f32 0.0, %v1190
    %1192 = vdwg.mxu0
    %v1193 = vadd.f32 %v983, %v1185
    %v1194 = vadd.f32 %v984, %v1188
    %v1195 = vadd.f32 %v985, %v1191
    %1199 = vrot.lane.b32.xlu0 %v351, 96
    %v1200 = vpop.permute.xlu0 %1199
    %1201 = vrot.lane.b32.xlu0 %v354, 96
    %v1202 = vpop.permute.xlu0 %1201
    %1203 = vrot.lane.b32.xlu0 %v357, 96
    %v1204 = vpop.permute.xlu0 %1203
    %v1205 = vsel %vm372, %v351, 0
    %v1207 = vsel %vm372, %v354, 0
    %v1209 = vsel %vm372, %v357, 0
    %v1211 = vsel %vm372, %v1200, 0
    %v1213 = vsel %vm372, %v1202, 0
    %v1215 = vsel %vm372, %v1204, 0
    %1217 = vmatpush.xpose.msra.mxu0 0.0
    %1218 = vmatpush.xpose.msra.mxu0 0.0
    %1219 = vmatpush.xpose.msra.mxu0 0.0
    %1220 = vmatpush.xpose.msra.mxu0 0.0
    %1221 = vmatpush.xpose.msra.mxu0 0.0
    %1222 = vmatpush.xpose.msra.mxu0 0.0
    %1223 = vmatpush.xpose.msra.mxu0 0.0
    %1224 = vmatpush.xpose.msra.mxu0 0.0
    %1225 = vmatpush.xpose.msra.mxu0 0.0
    %1226 = vmatpush.xpose.msra.mxu0 0.0
    %1227 = vmatpush.xpose.msra.mxu0 0.0
    %1228 = vmatpush.xpose.msra.mxu0 0.0
    %1229 = vmatpush.xpose.msra.mxu0 0.0
    %1230 = vmatpush.xpose.msra.mxu0 %v1215
    %1231 = vmatpush.xpose.msra.mxu0 %v1213
    %1232 = vmatpush.xpose.msra.mxu0 %v1211
    %1233 = vmatmul.f32.gmra.mxu0 %v1205
    %v1234 = vpop.f32.mrf.mxu0
    %v1235 = vadd.f32 0.0, %v1234
    %1236 = vmatmul.f32.gmra.mxu0 %v1207
    %v1237 = vpop.f32.mrf.mxu0
    %v1238 = vadd.f32 0.0, %v1237
    %1239 = vmatmul.f32.gmra.mxu0 %v1209
    %v1240 = vpop.f32.mrf.mxu0
    %v1241 = vadd.f32 0.0, %v1240
    %1242 = vdwg.mxu0
    %v1243 = vmul.f32 %v1235, 0.35355338
    %v1244 = vmul.f32 %v1238, 0.35355338
    %v1245 = vmul.f32 %v1241, 0.35355338
    %v1246 = vsel %vm65, %v1243, -1e+30
    %v1247 = vsel %vm65, %v1244, -1e+30
    %v1248 = vsel %vm65, %v1245, -1e+30
    %v1249 = vsel %vm417, %v1246, -inf
    %1250 = vmax.xlane.f32.xlu0 %v1249
    %v1251 = vpop.xlane.xlu0 %1250
    %v1252 = vsel %vm417, %v1247, -inf
    %1253 = vmax.xlane.f32.xlu0 %v1252
    %v1254 = vpop.xlane.xlu0 %1253
    %v1255 = vsel %vm417, %v1248, -inf
    %1256 = vmax.xlane.f32.xlu0 %v1255
    %v1257 = vpop.xlane.xlu0 %1256
    %v1258 = vsub.f32 %v1246, %v1251
    %v1259 = vsub.f32 %v1247, %v1254
    %v1260 = vsub.f32 %v1248, %v1257
    %v1261 = vmul.f32 %v1258, 1.442695
    %v1262 = vpow.pop %v1261
    %v1263 = vmul.f32 %v1259, 1.442695
    %v1264 = vpow.pop %v1263
    %v1265 = vmul.f32 %v1260, 1.442695
    %v1266 = vpow.pop %v1265
    %v1267 = vsel %vm417, %v1262, 0.0
    %1268 = vadd.xlane.f32.xlu0 %v1267
    %v1269 = vpop.xlane.xlu0 %1268
    %v1270 = vsel %vm417, %v1264, 0.0
    %1271 = vadd.xlane.f32.xlu0 %v1270
    %v1272 = vpop.xlane.xlu0 %1271
    %v1273 = vsel %vm417, %v1266, 0.0
    %1274 = vadd.xlane.f32.xlu0 %v1273
    %v1275 = vpop.xlane.xlu0 %1274
    %v1276 = vrcp.pop %v1269
    %v1277 = vmul.f32 %v1269, %v1276
    %v1278 = vsub.f32 1.0, %v1277
    %v1279 = vmul.f32 %v1276, %v1278
    %v1280 = vadd.f32 %v1276, %v1279
    %vm1281 = vweird.f32 %v1269
    %vm1282 = vweird.f32 %v1276
    %vm1283 = vmor %vm1281, %vm1282
    %v1284 = vsel %vm1283, %v1276, %v1280
    %v1285 = vand.u32 2147483647, %v1269
    %vm1286 = vcmp.eq.f32.partialorder %v1285, 8.507059e+37
    %v1287 = vand.u32 %v1269, 2147483648
    %v1288 = vor.u32 1.1754944e-38, %v1287
    %v1289 = vsel %vm1286, %v1288, %v1284
    %v1290 = vmul.f32 %v1262, %v1289
    %v1291 = vrcp.pop %v1272
    %v1292 = vmul.f32 %v1272, %v1291
    %v1293 = vsub.f32 1.0, %v1292
    %v1294 = vmul.f32 %v1291, %v1293
    %v1295 = vadd.f32 %v1291, %v1294
    %vm1296 = vweird.f32 %v1272
    %vm1297 = vweird.f32 %v1291
    %vm1298 = vmor %vm1296, %vm1297
    %v1299 = vsel %vm1298, %v1291, %v1295
    %v1300 = vand.u32 2147483647, %v1272
    %vm1301 = vcmp.eq.f32.partialorder %v1300, 8.507059e+37
    %v1302 = vand.u32 %v1272, 2147483648
    %v1303 = vor.u32 1.1754944e-38, %v1302
    %v1304 = vsel %vm1301, %v1303, %v1299
    %v1305 = vmul.f32 %v1264, %v1304
    %v1306 = vrcp.pop %v1275
    %v1307 = vmul.f32 %v1275, %v1306
    %v1308 = vsub.f32 1.0, %v1307
    %v1309 = vmul.f32 %v1306, %v1308
    %v1310 = vadd.f32 %v1306, %v1309
    %vm1311 = vweird.f32 %v1275
    %vm1312 = vweird.f32 %v1306
    %vm1313 = vmor %vm1311, %vm1312
    %v1314 = vsel %vm1313, %v1306, %v1310
    %v1315 = vand.u32 2147483647, %v1275
    %vm1316 = vcmp.eq.f32.partialorder %v1315, 8.507059e+37
    %v1317 = vand.u32 %v1275, 2147483648
    %v1318 = vor.u32 1.1754944e-38, %v1317
    %v1319 = vsel %vm1316, %v1318, %v1314
    %v1320 = vmul.f32 %v1266, %v1319
    %1321 = vrot.lane.b32.xlu0 %v351, 64
    %v1322 = vpop.permute.xlu0 %1321
    %1323 = vrot.lane.b32.xlu0 %v354, 64
    %v1324 = vpop.permute.xlu0 %1323
    %1325 = vrot.lane.b32.xlu0 %v357, 64
    %v1326 = vpop.permute.xlu0 %1325
    %v1331 = vsel %vm417, %v1290, 0
    %v1334 = vsel %vm417, %v1305, 0
    %v1337 = vsel %vm417, %v1320, 0
    %1339 = vmatpush.msra.mxu0 0.0
    %1340 = vmatpush.msra.mxu0 0.0
    %1341 = vmatpush.msra.mxu0 0.0
    %1342 = vmatpush.msra.mxu0 0.0
    %1343 = vmatpush.msra.mxu0 0.0
    %1344 = vmatpush.msra.mxu0 0.0
    %1345 = vmatpush.msra.mxu0 0.0
    %1346 = vmatpush.msra.mxu0 0.0
    %1347 = vmatpush.msra.mxu0 0.0
    %1348 = vmatpush.msra.mxu0 0.0
    %1349 = vmatpush.msra.mxu0 0.0
    %1350 = vmatpush.msra.mxu0 0.0
    %1351 = vmatpush.msra.mxu0 0.0
    %1352 = vmatpush.msra.mxu0 %v1326
    %1353 = vmatpush.msra.mxu0 %v1324
    %1354 = vmatpush.msra.mxu0 %v1322
    %1355 = vmatmul.f32.gmra.mxu0 %v1331
    %v1356 = vpop.f32.mrf.mxu0
    %v1357 = vadd.f32 0.0, %v1356
    %1358 = vmatmul.f32.gmra.mxu0 %v1334
    %v1359 = vpop.f32.mrf.mxu0
    %v1360 = vadd.f32 0.0, %v1359
    %1361 = vmatmul.f32.gmra.mxu0 %v1337
    %v1362 = vpop.f32.mrf.mxu0
    %v1363 = vadd.f32 0.0, %v1362
    %1364 = vdwg.mxu0
    %1365 = vrot.lane.b32.xlu0 %v351, 120
    %v1366 = vpop.permute.xlu0 %1365
    %1367 = vrot.lane.b32.xlu0 %v354, 120
    %v1368 = vpop.permute.xlu0 %1367
    %1369 = vrot.lane.b32.xlu0 %v357, 120
    %v1370 = vpop.permute.xlu0 %1369
    %1371 = vrot.lane.b32.xlu0 %v351, 88
    %v1372 = vpop.permute.xlu0 %1371
    %1373 = vrot.lane.b32.xlu0 %v354, 88
    %v1374 = vpop.permute.xlu0 %1373
    %1375 = vrot.lane.b32.xlu0 %v357, 88
    %v1376 = vpop.permute.xlu0 %1375
    %v1377 = vsel %vm372, %v1366, 0
    %v1379 = vsel %vm372, %v1368, 0
    %v1381 = vsel %vm372, %v1370, 0
    %v1383 = vsel %vm372, %v1372, 0
    %v1385 = vsel %vm372, %v1374, 0
    %v1387 = vsel %vm372, %v1376, 0
    %1389 = vmatpush.xpose.msra.mxu0 0.0
    %1390 = vmatpush.xpose.msra.mxu0 0.0
    %1391 = vmatpush.xpose.msra.mxu0 0.0
    %1392 = vmatpush.xpose.msra.mxu0 0.0
    %1393 = vmatpush.xpose.msra.mxu0 0.0
    %1394 = vmatpush.xpose.msra.mxu0 0.0
    %1395 = vmatpush.xpose.msra.mxu0 0.0
    %1396 = vmatpush.xpose.msra.mxu0 0.0
    %1397 = vmatpush.xpose.msra.mxu0 0.0
    %1398 = vmatpush.xpose.msra.mxu0 0.0
    %1399 = vmatpush.xpose.msra.mxu0 0.0
    %1400 = vmatpush.xpose.msra.mxu0 0.0
    %1401 = vmatpush.xpose.msra.mxu0 0.0
    %1402 = vmatpush.xpose.msra.mxu0 %v1387
    %1403 = vmatpush.xpose.msra.mxu0 %v1385
    %1404 = vmatpush.xpose.msra.mxu0 %v1383
    %1405 = vmatmul.f32.gmra.mxu0 %v1377
    %v1406 = vpop.f32.mrf.mxu0
    %v1407 = vadd.f32 0.0, %v1406
    %1408 = vmatmul.f32.gmra.mxu0 %v1379
    %v1409 = vpop.f32.mrf.mxu0
    %v1410 = vadd.f32 0.0, %v1409
    %1411 = vmatmul.f32.gmra.mxu0 %v1381
    %v1412 = vpop.f32.mrf.mxu0
    %v1413 = vadd.f32 0.0, %v1412
    %1414 = vdwg.mxu0
    %v1415 = vmul.f32 %v1407, 0.35355338
    %v1416 = vmul.f32 %v1410, 0.35355338
    %v1417 = vmul.f32 %v1413, 0.35355338
    %v1418 = vsel %vm65, %v1415, -1e+30
    %v1419 = vsel %vm65, %v1416, -1e+30
    %v1420 = vsel %vm65, %v1417, -1e+30
    %v1421 = vsel %vm417, %v1418, -inf
    %1422 = vmax.xlane.f32.xlu0 %v1421
    %v1423 = vpop.xlane.xlu0 %1422
    %v1424 = vsel %vm417, %v1419, -inf
    %1425 = vmax.xlane.f32.xlu0 %v1424
    %v1426 = vpop.xlane.xlu0 %1425
    %v1427 = vsel %vm417, %v1420, -inf
    %1428 = vmax.xlane.f32.xlu0 %v1427
    %v1429 = vpop.xlane.xlu0 %1428
    %v1430 = vsub.f32 %v1418, %v1423
    %v1431 = vsub.f32 %v1419, %v1426
    %v1432 = vsub.f32 %v1420, %v1429
    %v1433 = vmul.f32 %v1430, 1.442695
    %v1434 = vpow.pop %v1433
    %v1435 = vmul.f32 %v1431, 1.442695
    %v1436 = vpow.pop %v1435
    %v1437 = vmul.f32 %v1432, 1.442695
    %v1438 = vpow.pop %v1437
    %v1439 = vsel %vm417, %v1434, 0.0
    %1440 = vadd.xlane.f32.xlu0 %v1439
    %v1441 = vpop.xlane.xlu0 %1440
    %v1442 = vsel %vm417, %v1436, 0.0
    %1443 = vadd.xlane.f32.xlu0 %v1442
    %v1444 = vpop.xlane.xlu0 %1443
    %v1445 = vsel %vm417, %v1438, 0.0
    %1446 = vadd.xlane.f32.xlu0 %v1445
    %v1447 = vpop.xlane.xlu0 %1446
    %v1448 = vrcp.pop %v1441
    %v1449 = vmul.f32 %v1441, %v1448
    %v1450 = vsub.f32 1.0, %v1449
    %v1451 = vmul.f32 %v1448, %v1450
    %v1452 = vadd.f32 %v1448, %v1451
    %vm1453 = vweird.f32 %v1441
    %vm1454 = vweird.f32 %v1448
    %vm1455 = vmor %vm1453, %vm1454
    %v1456 = vsel %vm1455, %v1448, %v1452
    %v1457 = vand.u32 2147483647, %v1441
    %vm1458 = vcmp.eq.f32.partialorder %v1457, 8.507059e+37
    %v1459 = vand.u32 %v1441, 2147483648
    %v1460 = vor.u32 1.1754944e-38, %v1459
    %v1461 = vsel %vm1458, %v1460, %v1456
    %v1462 = vmul.f32 %v1434, %v1461
    %v1463 = vrcp.pop %v1444
    %v1464 = vmul.f32 %v1444, %v1463
    %v1465 = vsub.f32 1.0, %v1464
    %v1466 = vmul.f32 %v1463, %v1465
    %v1467 = vadd.f32 %v1463, %v1466
    %vm1468 = vweird.f32 %v1444
    %vm1469 = vweird.f32 %v1463
    %vm1470 = vmor %vm1468, %vm1469
    %v1471 = vsel %vm1470, %v1463, %v1467
    %v1472 = vand.u32 2147483647, %v1444
    %vm1473 = vcmp.eq.f32.partialorder %v1472, 8.507059e+37
    %v1474 = vand.u32 %v1444, 2147483648
    %v1475 = vor.u32 1.1754944e-38, %v1474
    %v1476 = vsel %vm1473, %v1475, %v1471
    %v1477 = vmul.f32 %v1436, %v1476
    %v1478 = vrcp.pop %v1447
    %v1479 = vmul.f32 %v1447, %v1478
    %v1480 = vsub.f32 1.0, %v1479
    %v1481 = vmul.f32 %v1478, %v1480
    %v1482 = vadd.f32 %v1478, %v1481
    %vm1483 = vweird.f32 %v1447
    %vm1484 = vweird.f32 %v1478
    %vm1485 = vmor %vm1483, %vm1484
    %v1486 = vsel %vm1485, %v1478, %v1482
    %v1487 = vand.u32 2147483647, %v1447
    %vm1488 = vcmp.eq.f32.partialorder %v1487, 8.507059e+37
    %v1489 = vand.u32 %v1447, 2147483648
    %v1490 = vor.u32 1.1754944e-38, %v1489
    %v1491 = vsel %vm1488, %v1490, %v1486
    %v1492 = vmul.f32 %v1438, %v1491
    %1493 = vrot.lane.b32.xlu0 %v351, 56
    %v1494 = vpop.permute.xlu0 %1493
    %1495 = vrot.lane.b32.xlu0 %v354, 56
    %v1496 = vpop.permute.xlu0 %1495
    %1497 = vrot.lane.b32.xlu0 %v357, 56
    %v1498 = vpop.permute.xlu0 %1497
    %v1503 = vsel %vm417, %v1462, 0
    %v1506 = vsel %vm417, %v1477, 0
    %v1509 = vsel %vm417, %v1492, 0
    %1511 = vmatpush.msra.mxu0 0.0
    %1512 = vmatpush.msra.mxu0 0.0
    %1513 = vmatpush.msra.mxu0 0.0
    %1514 = vmatpush.msra.mxu0 0.0
    %1515 = vmatpush.msra.mxu0 0.0
    %1516 = vmatpush.msra.mxu0 0.0
    %1517 = vmatpush.msra.mxu0 0.0
    %1518 = vmatpush.msra.mxu0 0.0
    %1519 = vmatpush.msra.mxu0 0.0
    %1520 = vmatpush.msra.mxu0 0.0
    %1521 = vmatpush.msra.mxu0 0.0
    %1522 = vmatpush.msra.mxu0 0.0
    %1523 = vmatpush.msra.mxu0 0.0
    %1524 = vmatpush.msra.mxu0 %v1498
    %1525 = vmatpush.msra.mxu0 %v1496
    %1526 = vmatpush.msra.mxu0 %v1494
    %1527 = vmatmul.f32.gmra.mxu0 %v1503
    %v1528 = vpop.f32.mrf.mxu0
    %v1529 = vadd.f32 0.0, %v1528
    %1530 = vmatmul.f32.gmra.mxu0 %v1506
    %v1531 = vpop.f32.mrf.mxu0
    %v1532 = vadd.f32 0.0, %v1531
    %1533 = vmatmul.f32.gmra.mxu0 %v1509
    %v1534 = vpop.f32.mrf.mxu0
    %v1535 = vadd.f32 0.0, %v1534
    %1536 = vdwg.mxu0
    %v1538 = vsel %vm372, %v1529, 0
    %v1541 = vsel %vm372, %v1532, 0
    %v1544 = vsel %vm372, %v1535, 0
    %1546 = vmatpush.msra.mxu0 0.0
    %1547 = vmatpush.msra.mxu0 0.0
    %1548 = vmatpush.msra.mxu0 0.0
    %1549 = vmatpush.msra.mxu0 0.0
    %1550 = vmatpush.msra.mxu0 0.0
    %1551 = vmatpush.msra.mxu0 0.0
    %1552 = vmatpush.msra.mxu0 0.0
    %1553 = vmatpush.msra.mxu0 0.0
    %1554 = vmatpush.msra.mxu0 0.0
    %1555 = vmatpush.msra.mxu0 0.0
    %1556 = vmatpush.msra.mxu0 0.0
    %1557 = vmatpush.msra.mxu0 0.0
    %1558 = vmatpush.msra.mxu0 0.0
    %1559 = vmatpush.msra.mxu0 0.0
    %1560 = vmatpush.msra.mxu0 0.0
    %1561 = vmatpush.msra.mxu0 %v360
    %1562 = vmatmul.f32.gmra.mxu0 %v1538
    %v1563 = vpop.f32.mrf.mxu0
    %v1564 = vadd.f32 0.0, %v1563
    %1565 = vmatmul.f32.gmra.mxu0 %v1541
    %v1566 = vpop.f32.mrf.mxu0
    %v1567 = vadd.f32 0.0, %v1566
    %1568 = vmatmul.f32.gmra.mxu0 %v1544
    %v1569 = vpop.f32.mrf.mxu0
    %v1570 = vadd.f32 0.0, %v1569
    %1571 = vdwg.mxu0
    %v1573 = vsel %vm372, %v1357, 0
    %v1576 = vsel %vm372, %v1360, 0
    %v1579 = vsel %vm372, %v1363, 0
    %1581 = vmatpush.msra.mxu0 0.0
    %1582 = vmatpush.msra.mxu0 0.0
    %1583 = vmatpush.msra.mxu0 0.0
    %1584 = vmatpush.msra.mxu0 0.0
    %1585 = vmatpush.msra.mxu0 0.0
    %1586 = vmatpush.msra.mxu0 0.0
    %1587 = vmatpush.msra.mxu0 0.0
    %1588 = vmatpush.msra.mxu0 0.0
    %1589 = vmatpush.msra.mxu0 0.0
    %1590 = vmatpush.msra.mxu0 0.0
    %1591 = vmatpush.msra.mxu0 0.0
    %1592 = vmatpush.msra.mxu0 0.0
    %1593 = vmatpush.msra.mxu0 0.0
    %1594 = vmatpush.msra.mxu0 0.0
    %1595 = vmatpush.msra.mxu0 0.0
    %1596 = vmatpush.msra.mxu0 %v359
    %1597 = vmatmul.f32.gmra.mxu0 %v1573
    %v1598 = vpop.f32.mrf.mxu0
    %v1599 = vadd.f32 %v1564, %v1598
    %1600 = vmatmul.f32.gmra.mxu0 %v1576
    %v1601 = vpop.f32.mrf.mxu0
    %v1602 = vadd.f32 %v1567, %v1601
    %1603 = vmatmul.f32.gmra.mxu0 %v1579
    %v1604 = vpop.f32.mrf.mxu0
    %v1605 = vadd.f32 %v1570, %v1604
    %1606 = vdwg.mxu0
    %1607 = vrot.lane.b32.xlu0 %v351, 112
    %v1608 = vpop.permute.xlu0 %1607
    %1609 = vrot.lane.b32.xlu0 %v354, 112
    %v1610 = vpop.permute.xlu0 %1609
    %1611 = vrot.lane.b32.xlu0 %v357, 112
    %v1612 = vpop.permute.xlu0 %1611
    %1613 = vrot.lane.b32.xlu0 %v351, 80
    %v1614 = vpop.permute.xlu0 %1613
    %1615 = vrot.lane.b32.xlu0 %v354, 80
    %v1616 = vpop.permute.xlu0 %1615
    %1617 = vrot.lane.b32.xlu0 %v357, 80
    %v1618 = vpop.permute.xlu0 %1617
    %v1619 = vsel %vm372, %v1608, 0
    %v1621 = vsel %vm372, %v1610, 0
    %v1623 = vsel %vm372, %v1612, 0
    %v1625 = vsel %vm372, %v1614, 0
    %v1627 = vsel %vm372, %v1616, 0
    %v1629 = vsel %vm372, %v1618, 0
    %1631 = vmatpush.xpose.msra.mxu0 0.0
    %1632 = vmatpush.xpose.msra.mxu0 0.0
    %1633 = vmatpush.xpose.msra.mxu0 0.0
    %1634 = vmatpush.xpose.msra.mxu0 0.0
    %1635 = vmatpush.xpose.msra.mxu0 0.0
    %1636 = vmatpush.xpose.msra.mxu0 0.0
    %1637 = vmatpush.xpose.msra.mxu0 0.0
    %1638 = vmatpush.xpose.msra.mxu0 0.0
    %1639 = vmatpush.xpose.msra.mxu0 0.0
    %1640 = vmatpush.xpose.msra.mxu0 0.0
    %1641 = vmatpush.xpose.msra.mxu0 0.0
    %1642 = vmatpush.xpose.msra.mxu0 0.0
    %1643 = vmatpush.xpose.msra.mxu0 0.0
    %1644 = vmatpush.xpose.msra.mxu0 %v1629
    %1645 = vmatpush.xpose.msra.mxu0 %v1627
    %1646 = vmatpush.xpose.msra.mxu0 %v1625
    %1647 = vmatmul.f32.gmra.mxu0 %v1619
    %v1648 = vpop.f32.mrf.mxu0
    %v1649 = vadd.f32 0.0, %v1648
    %1650 = vmatmul.f32.gmra.mxu0 %v1621
    %v1651 = vpop.f32.mrf.mxu0
    %v1652 = vadd.f32 0.0, %v1651
    %1653 = vmatmul.f32.gmra.mxu0 %v1623
    %v1654 = vpop.f32.mrf.mxu0
    %v1655 = vadd.f32 0.0, %v1654
    %1656 = vdwg.mxu0
    %v1657 = vmul.f32 %v1649, 0.35355338
    %v1658 = vmul.f32 %v1652, 0.35355338
    %v1659 = vmul.f32 %v1655, 0.35355338
    %v1660 = vsel %vm65, %v1657, -1e+30
    %v1661 = vsel %vm65, %v1658, -1e+30
    %v1662 = vsel %vm65, %v1659, -1e+30
    %v1663 = vsel %vm417, %v1660, -inf
    %1664 = vmax.xlane.f32.xlu0 %v1663
    %v1665 = vpop.xlane.xlu0 %1664
    %v1666 = vsel %vm417, %v1661, -inf
    %1667 = vmax.xlane.f32.xlu0 %v1666
    %v1668 = vpop.xlane.xlu0 %1667
    %v1669 = vsel %vm417, %v1662, -inf
    %1670 = vmax.xlane.f32.xlu0 %v1669
    %v1671 = vpop.xlane.xlu0 %1670
    %v1672 = vsub.f32 %v1660, %v1665
    %v1673 = vsub.f32 %v1661, %v1668
    %v1674 = vsub.f32 %v1662, %v1671
    %v1675 = vmul.f32 %v1672, 1.442695
    %v1676 = vpow.pop %v1675
    %v1677 = vmul.f32 %v1673, 1.442695
    %v1678 = vpow.pop %v1677
    %v1679 = vmul.f32 %v1674, 1.442695
    %v1680 = vpow.pop %v1679
    %v1681 = vsel %vm417, %v1676, 0.0
    %1682 = vadd.xlane.f32.xlu0 %v1681
    %v1683 = vpop.xlane.xlu0 %1682
    %v1684 = vsel %vm417, %v1678, 0.0
    %1685 = vadd.xlane.f32.xlu0 %v1684
    %v1686 = vpop.xlane.xlu0 %1685
    %v1687 = vsel %vm417, %v1680, 0.0
    %1688 = vadd.xlane.f32.xlu0 %v1687
    %v1689 = vpop.xlane.xlu0 %1688
    %v1690 = vrcp.pop %v1683
    %v1691 = vmul.f32 %v1683, %v1690
    %v1692 = vsub.f32 1.0, %v1691
    %v1693 = vmul.f32 %v1690, %v1692
    %v1694 = vadd.f32 %v1690, %v1693
    %vm1695 = vweird.f32 %v1683
    %vm1696 = vweird.f32 %v1690
    %vm1697 = vmor %vm1695, %vm1696
    %v1698 = vsel %vm1697, %v1690, %v1694
    %v1699 = vand.u32 2147483647, %v1683
    %vm1700 = vcmp.eq.f32.partialorder %v1699, 8.507059e+37
    %v1701 = vand.u32 %v1683, 2147483648
    %v1702 = vor.u32 1.1754944e-38, %v1701
    %v1703 = vsel %vm1700, %v1702, %v1698
    %v1704 = vmul.f32 %v1676, %v1703
    %v1705 = vrcp.pop %v1686
    %v1706 = vmul.f32 %v1686, %v1705
    %v1707 = vsub.f32 1.0, %v1706
    %v1708 = vmul.f32 %v1705, %v1707
    %v1709 = vadd.f32 %v1705, %v1708
    %vm1710 = vweird.f32 %v1686
    %vm1711 = vweird.f32 %v1705
    %vm1712 = vmor %vm1710, %vm1711
    %v1713 = vsel %vm1712, %v1705, %v1709
    %v1714 = vand.u32 2147483647, %v1686
    %vm1715 = vcmp.eq.f32.partialorder %v1714, 8.507059e+37
    %v1716 = vand.u32 %v1686, 2147483648
    %v1717 = vor.u32 1.1754944e-38, %v1716
    %v1718 = vsel %vm1715, %v1717, %v1713
    %v1719 = vmul.f32 %v1678, %v1718
    %v1720 = vrcp.pop %v1689
    %v1721 = vmul.f32 %v1689, %v1720
    %v1722 = vsub.f32 1.0, %v1721
    %v1723 = vmul.f32 %v1720, %v1722
    %v1724 = vadd.f32 %v1720, %v1723
    %vm1725 = vweird.f32 %v1689
    %vm1726 = vweird.f32 %v1720
    %vm1727 = vmor %vm1725, %vm1726
    %v1728 = vsel %vm1727, %v1720, %v1724
    %v1729 = vand.u32 2147483647, %v1689
    %vm1730 = vcmp.eq.f32.partialorder %v1729, 8.507059e+37
    %v1731 = vand.u32 %v1689, 2147483648
    %v1732 = vor.u32 1.1754944e-38, %v1731
    %v1733 = vsel %vm1730, %v1732, %v1728
    %v1734 = vmul.f32 %v1680, %v1733
    %1735 = vrot.lane.b32.xlu0 %v351, 48
    %v1736 = vpop.permute.xlu0 %1735
    %1737 = vrot.lane.b32.xlu0 %v354, 48
    %v1738 = vpop.permute.xlu0 %1737
    %1739 = vrot.lane.b32.xlu0 %v357, 48
    %v1740 = vpop.permute.xlu0 %1739
    %v1745 = vsel %vm417, %v1704, 0
    %v1748 = vsel %vm417, %v1719, 0
    %v1751 = vsel %vm417, %v1734, 0
    %1753 = vmatpush.msra.mxu0 0.0
    %1754 = vmatpush.msra.mxu0 0.0
    %1755 = vmatpush.msra.mxu0 0.0
    %1756 = vmatpush.msra.mxu0 0.0
    %1757 = vmatpush.msra.mxu0 0.0
    %1758 = vmatpush.msra.mxu0 0.0
    %1759 = vmatpush.msra.mxu0 0.0
    %1760 = vmatpush.msra.mxu0 0.0
    %1761 = vmatpush.msra.mxu0 0.0
    %1762 = vmatpush.msra.mxu0 0.0
    %1763 = vmatpush.msra.mxu0 0.0
    %1764 = vmatpush.msra.mxu0 0.0
    %1765 = vmatpush.msra.mxu0 0.0
    %1766 = vmatpush.msra.mxu0 %v1740
    %1767 = vmatpush.msra.mxu0 %v1738
    %1768 = vmatpush.msra.mxu0 %v1736
    %1769 = vmatmul.f32.gmra.mxu0 %v1745
    %v1770 = vpop.f32.mrf.mxu0
    %v1771 = vadd.f32 0.0, %v1770
    %1772 = vmatmul.f32.gmra.mxu0 %v1748
    %v1773 = vpop.f32.mrf.mxu0
    %v1774 = vadd.f32 0.0, %v1773
    %1775 = vmatmul.f32.gmra.mxu0 %v1751
    %v1776 = vpop.f32.mrf.mxu0
    %v1777 = vadd.f32 0.0, %v1776
    %1778 = vdwg.mxu0
    %v1780 = vsel %vm372, %v1771, 0
    %v1783 = vsel %vm372, %v1774, 0
    %v1786 = vsel %vm372, %v1777, 0
    %1788 = vmatpush.msra.mxu0 0.0
    %1789 = vmatpush.msra.mxu0 0.0
    %1790 = vmatpush.msra.mxu0 0.0
    %1791 = vmatpush.msra.mxu0 0.0
    %1792 = vmatpush.msra.mxu0 0.0
    %1793 = vmatpush.msra.mxu0 0.0
    %1794 = vmatpush.msra.mxu0 0.0
    %1795 = vmatpush.msra.mxu0 0.0
    %1796 = vmatpush.msra.mxu0 0.0
    %1797 = vmatpush.msra.mxu0 0.0
    %1798 = vmatpush.msra.mxu0 0.0
    %1799 = vmatpush.msra.mxu0 0.0
    %1800 = vmatpush.msra.mxu0 0.0
    %1801 = vmatpush.msra.mxu0 0.0
    %1802 = vmatpush.msra.mxu0 0.0
    %1803 = vmatpush.msra.mxu0 %v361
    %1804 = vmatmul.f32.gmra.mxu0 %v1780
    %v1805 = vpop.f32.mrf.mxu0
    %v1806 = vadd.f32 0.0, %v1805
    %1807 = vmatmul.f32.gmra.mxu0 %v1783
    %v1808 = vpop.f32.mrf.mxu0
    %v1809 = vadd.f32 0.0, %v1808
    %1810 = vmatmul.f32.gmra.mxu0 %v1786
    %v1811 = vpop.f32.mrf.mxu0
    %v1812 = vadd.f32 0.0, %v1811
    %1813 = vdwg.mxu0
    %v1814 = vadd.f32 %v1599, %v1806
    %v1815 = vadd.f32 %v1602, %v1809
    %v1816 = vadd.f32 %v1605, %v1812
    %1817 = vrot.lane.b32.xlu0 %v351, 104
    %v1818 = vpop.permute.xlu0 %1817
    %1819 = vrot.lane.b32.xlu0 %v354, 104
    %v1820 = vpop.permute.xlu0 %1819
    %1821 = vrot.lane.b32.xlu0 %v357, 104
    %v1822 = vpop.permute.xlu0 %1821
    %1823 = vrot.lane.b32.xlu0 %v351, 72
    %v1824 = vpop.permute.xlu0 %1823
    %1825 = vrot.lane.b32.xlu0 %v354, 72
    %v1826 = vpop.permute.xlu0 %1825
    %1827 = vrot.lane.b32.xlu0 %v357, 72
    %v1828 = vpop.permute.xlu0 %1827
    %v1829 = vsel %vm372, %v1818, 0
    %v1831 = vsel %vm372, %v1820, 0
    %v1833 = vsel %vm372, %v1822, 0
    %v1835 = vsel %vm372, %v1824, 0
    %v1837 = vsel %vm372, %v1826, 0
    %v1839 = vsel %vm372, %v1828, 0
    %1841 = vmatpush.xpose.msra.mxu0 0.0
    %1842 = vmatpush.xpose.msra.mxu0 0.0
    %1843 = vmatpush.xpose.msra.mxu0 0.0
    %1844 = vmatpush.xpose.msra.mxu0 0.0
    %1845 = vmatpush.xpose.msra.mxu0 0.0
    %1846 = vmatpush.xpose.msra.mxu0 0.0
    %1847 = vmatpush.xpose.msra.mxu0 0.0
    %1848 = vmatpush.xpose.msra.mxu0 0.0
    %1849 = vmatpush.xpose.msra.mxu0 0.0
    %1850 = vmatpush.xpose.msra.mxu0 0.0
    %1851 = vmatpush.xpose.msra.mxu0 0.0
    %1852 = vmatpush.xpose.msra.mxu0 0.0
    %1853 = vmatpush.xpose.msra.mxu0 0.0
    %1854 = vmatpush.xpose.msra.mxu0 %v1839
    %1855 = vmatpush.xpose.msra.mxu0 %v1837
    %1856 = vmatpush.xpose.msra.mxu0 %v1835
    %1857 = vmatmul.f32.gmra.mxu0 %v1829
    %v1858 = vpop.f32.mrf.mxu0
    %v1859 = vadd.f32 0.0, %v1858
    %1860 = vmatmul.f32.gmra.mxu0 %v1831
    %v1861 = vpop.f32.mrf.mxu0
    %v1862 = vadd.f32 0.0, %v1861
    %1863 = vmatmul.f32.gmra.mxu0 %v1833
    %v1864 = vpop.f32.mrf.mxu0
    %v1865 = vadd.f32 0.0, %v1864
    %1866 = vdwg.mxu0
    %v1867 = vmul.f32 %v1859, 0.35355338
    %v1868 = vmul.f32 %v1862, 0.35355338
    %v1869 = vmul.f32 %v1865, 0.35355338
    %v1870 = vsel %vm65, %v1867, -1e+30
    %v1871 = vsel %vm65, %v1868, -1e+30
    %v1872 = vsel %vm65, %v1869, -1e+30
    %v1873 = vsel %vm417, %v1870, -inf
    %1874 = vmax.xlane.f32.xlu0 %v1873
    %v1875 = vpop.xlane.xlu0 %1874
    %v1876 = vsel %vm417, %v1871, -inf
    %1877 = vmax.xlane.f32.xlu0 %v1876
    %v1878 = vpop.xlane.xlu0 %1877
    %v1879 = vsel %vm417, %v1872, -inf
    %1880 = vmax.xlane.f32.xlu0 %v1879
    %v1881 = vpop.xlane.xlu0 %1880
    %v1882 = vsub.f32 %v1870, %v1875
    %v1883 = vsub.f32 %v1871, %v1878
    %v1884 = vsub.f32 %v1872, %v1881
    %v1885 = vmul.f32 %v1882, 1.442695
    %v1886 = vpow.pop %v1885
    %v1887 = vmul.f32 %v1883, 1.442695
    %v1888 = vpow.pop %v1887
    %v1889 = vmul.f32 %v1884, 1.442695
    %v1890 = vpow.pop %v1889
    %v1891 = vsel %vm417, %v1886, 0.0
    %1892 = vadd.xlane.f32.xlu0 %v1891
    %v1893 = vpop.xlane.xlu0 %1892
    %v1894 = vsel %vm417, %v1888, 0.0
    %1895 = vadd.xlane.f32.xlu0 %v1894
    %v1896 = vpop.xlane.xlu0 %1895
    %v1897 = vsel %vm417, %v1890, 0.0
    %1898 = vadd.xlane.f32.xlu0 %v1897
    %v1899 = vpop.xlane.xlu0 %1898
    %v1900 = vrcp.pop %v1893
    %v1901 = vmul.f32 %v1893, %v1900
    %v1902 = vsub.f32 1.0, %v1901
    %v1903 = vmul.f32 %v1900, %v1902
    %v1904 = vadd.f32 %v1900, %v1903
    %vm1905 = vweird.f32 %v1893
    %vm1906 = vweird.f32 %v1900
    %vm1907 = vmor %vm1905, %vm1906
    %v1908 = vsel %vm1907, %v1900, %v1904
    %v1909 = vand.u32 2147483647, %v1893
    %vm1910 = vcmp.eq.f32.partialorder %v1909, 8.507059e+37
    %v1911 = vand.u32 %v1893, 2147483648
    %v1912 = vor.u32 1.1754944e-38, %v1911
    %v1913 = vsel %vm1910, %v1912, %v1908
    %v1914 = vmul.f32 %v1886, %v1913
    %v1915 = vrcp.pop %v1896
    %v1916 = vmul.f32 %v1896, %v1915
    %v1917 = vsub.f32 1.0, %v1916
    %v1918 = vmul.f32 %v1915, %v1917
    %v1919 = vadd.f32 %v1915, %v1918
    %vm1920 = vweird.f32 %v1896
    %vm1921 = vweird.f32 %v1915
    %vm1922 = vmor %vm1920, %vm1921
    %v1923 = vsel %vm1922, %v1915, %v1919
    %v1924 = vand.u32 2147483647, %v1896
    %vm1925 = vcmp.eq.f32.partialorder %v1924, 8.507059e+37
    %v1926 = vand.u32 %v1896, 2147483648
    %v1927 = vor.u32 1.1754944e-38, %v1926
    %v1928 = vsel %vm1925, %v1927, %v1923
    %v1929 = vmul.f32 %v1888, %v1928
    %v1930 = vrcp.pop %v1899
    %v1931 = vmul.f32 %v1899, %v1930
    %v1932 = vsub.f32 1.0, %v1931
    %v1933 = vmul.f32 %v1930, %v1932
    %v1934 = vadd.f32 %v1930, %v1933
    %vm1935 = vweird.f32 %v1899
    %vm1936 = vweird.f32 %v1930
    %vm1937 = vmor %vm1935, %vm1936
    %v1938 = vsel %vm1937, %v1930, %v1934
    %v1939 = vand.u32 2147483647, %v1899
    %vm1940 = vcmp.eq.f32.partialorder %v1939, 8.507059e+37
    %v1941 = vand.u32 %v1899, 2147483648
    %v1942 = vor.u32 1.1754944e-38, %v1941
    %v1943 = vsel %vm1940, %v1942, %v1938
    %v1944 = vmul.f32 %v1890, %v1943
    %1945 = vrot.lane.b32.xlu0 %v351, 40
    %v1946 = vpop.permute.xlu0 %1945
    %1947 = vrot.lane.b32.xlu0 %v354, 40
    %v1948 = vpop.permute.xlu0 %1947
    %1949 = vrot.lane.b32.xlu0 %v357, 40
    %v1950 = vpop.permute.xlu0 %1949
    %v1955 = vsel %vm417, %v1914, 0
    %v1958 = vsel %vm417, %v1929, 0
    %v1961 = vsel %vm417, %v1944, 0
    %1963 = vmatpush.msra.mxu0 0.0
    %1964 = vmatpush.msra.mxu0 0.0
    %1965 = vmatpush.msra.mxu0 0.0
    %1966 = vmatpush.msra.mxu0 0.0
    %1967 = vmatpush.msra.mxu0 0.0
    %1968 = vmatpush.msra.mxu0 0.0
    %1969 = vmatpush.msra.mxu0 0.0
    %1970 = vmatpush.msra.mxu0 0.0
    %1971 = vmatpush.msra.mxu0 0.0
    %1972 = vmatpush.msra.mxu0 0.0
    %1973 = vmatpush.msra.mxu0 0.0
    %1974 = vmatpush.msra.mxu0 0.0
    %1975 = vmatpush.msra.mxu0 0.0
    %1976 = vmatpush.msra.mxu0 %v1950
    %1977 = vmatpush.msra.mxu0 %v1948
    %1978 = vmatpush.msra.mxu0 %v1946
    %1979 = vmatmul.f32.gmra.mxu0 %v1955
    %v1980 = vpop.f32.mrf.mxu0
    %v1981 = vadd.f32 0.0, %v1980
    %1982 = vmatmul.f32.gmra.mxu0 %v1958
    %v1983 = vpop.f32.mrf.mxu0
    %v1984 = vadd.f32 0.0, %v1983
    %1985 = vmatmul.f32.gmra.mxu0 %v1961
    %v1986 = vpop.f32.mrf.mxu0
    %v1987 = vadd.f32 0.0, %v1986
    %1988 = vdwg.mxu0
    %v1990 = vsel %vm372, %v1981, 0
    %v1993 = vsel %vm372, %v1984, 0
    %v1996 = vsel %vm372, %v1987, 0
    %1998 = vmatpush.msra.mxu0 0.0
    %1999 = vmatpush.msra.mxu0 0.0
    %2000 = vmatpush.msra.mxu0 0.0
    %2001 = vmatpush.msra.mxu0 0.0
    %2002 = vmatpush.msra.mxu0 0.0
    %2003 = vmatpush.msra.mxu0 0.0
    %2004 = vmatpush.msra.mxu0 0.0
    %2005 = vmatpush.msra.mxu0 0.0
    %2006 = vmatpush.msra.mxu0 0.0
    %2007 = vmatpush.msra.mxu0 0.0
    %2008 = vmatpush.msra.mxu0 0.0
    %2009 = vmatpush.msra.mxu0 0.0
    %2010 = vmatpush.msra.mxu0 0.0
    %2011 = vmatpush.msra.mxu0 0.0
    %2012 = vmatpush.msra.mxu0 0.0
    %2013 = vmatpush.msra.mxu0 %v362
    %2014 = vmatmul.f32.gmra.mxu0 %v1990
    %v2015 = vpop.f32.mrf.mxu0
    %v2016 = vadd.f32 0.0, %v2015
    %2017 = vmatmul.f32.gmra.mxu0 %v1993
    %v2018 = vpop.f32.mrf.mxu0
    %v2019 = vadd.f32 0.0, %v2018
    %2020 = vmatmul.f32.gmra.mxu0 %v1996
    %v2021 = vpop.f32.mrf.mxu0
    %v2022 = vadd.f32 0.0, %v2021
    %2023 = vdwg.mxu0
    %v2024 = vadd.f32 %v1814, %v2016
    %v2025 = vadd.f32 %v1815, %v2019
    %v2026 = vadd.f32 %v1816, %v2022
    %v2027 = vld [vmem:[%s8] sm:$0x1]
    %v2029 = vperm.slane %v2027, 0
    %v2031 = vadd.f32 %v1193, %v2029
    %v2032 = vadd.f32 %v1194, %v2029
    %v2033 = vadd.f32 %v1195, %v2029
    %v2034 = vadd.f32 %v2024, %v2029
    %v2035 = vadd.f32 %v2025, %v2029
    %v2036 = vadd.f32 %v2026, %v2029
    %v2037 = vadd.f32 %v121, %v2031
    %v2038 = vadd.f32 %v124, %v2032
    %v2039 = vadd.f32 %v127, %v2033
    %v2040 = vadd.f32 %v130, %v2034
    %v2041 = vadd.f32 %v133, %v2035
    %v2042 = vadd.f32 %v136, %v2036
    %v2043 = vld [vmem:[%s9] sm:$0x1]
    %v2044 = vld [vmem:[%s10] sm:$0x1]
    %v2045 = vsel %vm140, %v2037, 0.0
    %2046 = vadd.xlane.f32.xlu0 %v2045
    %v2047 = vpop.xlane.xlu0 %2046
    %v2048 = vsel %vm140, %v2038, 0.0
    %2049 = vadd.xlane.f32.xlu0 %v2048
    %v2050 = vpop.xlane.xlu0 %2049
    %v2051 = vsel %vm140, %v2039, 0.0
    %2052 = vadd.xlane.f32.xlu0 %v2051
    %v2053 = vpop.xlane.xlu0 %2052
    %v2054 = vsel %vm140, %v2040, 0.0
    %2055 = vadd.xlane.f32.xlu0 %v2054
    %v2056 = vpop.xlane.xlu0 %2055
    %v2057 = vsel %vm140, %v2041, 0.0
    %2058 = vadd.xlane.f32.xlu0 %v2057
    %v2059 = vpop.xlane.xlu0 %2058
    %v2060 = vsel %vm140, %v2042, 0.0
    %2061 = vadd.xlane.f32.xlu0 %v2060
    %v2062 = vpop.xlane.xlu0 %2061
    %v2063 = vmul.f32 %v2047, %v165
    %v2064 = vmul.f32 %v2050, %v165
    %v2065 = vmul.f32 %v2053, %v165
    %v2066 = vmul.f32 %v2056, %v165
    %v2067 = vmul.f32 %v2059, %v165
    %v2068 = vmul.f32 %v2062, %v165
    %v2069 = vsub.f32 %v2037, %v2063
    %v2070 = vsub.f32 %v2038, %v2064
    %v2071 = vsub.f32 %v2039, %v2065
    %v2072 = vsub.f32 %v2040, %v2066
    %v2073 = vsub.f32 %v2041, %v2067
    %v2074 = vsub.f32 %v2042, %v2068
    %v2075 = vmul.f32 %v2069, %v2069
    %v2076 = vmul.f32 %v2070, %v2070
    %v2077 = vmul.f32 %v2071, %v2071
    %v2078 = vmul.f32 %v2072, %v2072
    %v2079 = vmul.f32 %v2073, %v2073
    %v2080 = vmul.f32 %v2074, %v2074
    %v2081 = vsel %vm140, %v2075, 0.0
    %2082 = vadd.xlane.f32.xlu0 %v2081
    %v2083 = vpop.xlane.xlu0 %2082
    %v2084 = vsel %vm140, %v2076, 0.0
    %2085 = vadd.xlane.f32.xlu0 %v2084
    %v2086 = vpop.xlane.xlu0 %2085
    %v2087 = vsel %vm140, %v2077, 0.0
    %2088 = vadd.xlane.f32.xlu0 %v2087
    %v2089 = vpop.xlane.xlu0 %2088
    %v2090 = vsel %vm140, %v2078, 0.0
    %2091 = vadd.xlane.f32.xlu0 %v2090
    %v2092 = vpop.xlane.xlu0 %2091
    %v2093 = vsel %vm140, %v2079, 0.0
    %2094 = vadd.xlane.f32.xlu0 %v2093
    %v2095 = vpop.xlane.xlu0 %2094
    %v2096 = vsel %vm140, %v2080, 0.0
    %2097 = vadd.xlane.f32.xlu0 %v2096
    %v2098 = vpop.xlane.xlu0 %2097
    %v2099 = vmul.f32 %v2083, %v165
    %v2100 = vmul.f32 %v2086, %v165
    %v2101 = vmul.f32 %v2089, %v165
    %v2102 = vmul.f32 %v2092, %v165
    %v2103 = vmul.f32 %v2095, %v165
    %v2104 = vmul.f32 %v2098, %v165
    %v2105 = vadd.f32 %v2099, 1e-06
    %v2106 = vadd.f32 %v2100, 1e-06
    %v2107 = vadd.f32 %v2101, 1e-06
    %v2108 = vadd.f32 %v2102, 1e-06
    %v2109 = vadd.f32 %v2103, 1e-06
    %v2110 = vadd.f32 %v2104, 1e-06
    %v2111 = vrsqrt.pop %v2105
    %v2112 = vmul.f32 %v2111, %v2105
    %v2113 = vmul.f32 %v2112, %v2111
    %v2114 = vmul.f32 0.5, %v2113
    %v2115 = vsub.f32 1.5, %v2114
    %v2116 = vmul.f32 %v2111, %v2115
    %vm2117 = vweird.f32 %v2105
    %vm2118 = vweird.f32 %v2111
    %vm2119 = vmor %vm2117, %vm2118
    %v2120 = vsel %vm2119, %v2111, %v2116
    %v2121 = vrsqrt.pop %v2106
    %v2122 = vmul.f32 %v2121, %v2106
    %v2123 = vmul.f32 %v2122, %v2121
    %v2124 = vmul.f32 0.5, %v2123
    %v2125 = vsub.f32 1.5, %v2124
    %v2126 = vmul.f32 %v2121, %v2125
    %vm2127 = vweird.f32 %v2106
    %vm2128 = vweird.f32 %v2121
    %vm2129 = vmor %vm2127, %vm2128
    %v2130 = vsel %vm2129, %v2121, %v2126
    %v2131 = vrsqrt.pop %v2107
    %v2132 = vmul.f32 %v2131, %v2107
    %v2133 = vmul.f32 %v2132, %v2131
    %v2134 = vmul.f32 0.5, %v2133
    %v2135 = vsub.f32 1.5, %v2134
    %v2136 = vmul.f32 %v2131, %v2135
    %vm2137 = vweird.f32 %v2107
    %vm2138 = vweird.f32 %v2131
    %vm2139 = vmor %vm2137, %vm2138
    %v2140 = vsel %vm2139, %v2131, %v2136
    %v2141 = vrsqrt.pop %v2108
    %v2142 = vmul.f32 %v2141, %v2108
    %v2143 = vmul.f32 %v2142, %v2141
    %v2144 = vmul.f32 0.5, %v2143
    %v2145 = vsub.f32 1.5, %v2144
    %v2146 = vmul.f32 %v2141, %v2145
    %vm2147 = vweird.f32 %v2108
    %vm2148 = vweird.f32 %v2141
    %vm2149 = vmor %vm2147, %vm2148
    %v2150 = vsel %vm2149, %v2141, %v2146
    %v2151 = vrsqrt.pop %v2109
    %v2152 = vmul.f32 %v2151, %v2109
    %v2153 = vmul.f32 %v2152, %v2151
    %v2154 = vmul.f32 0.5, %v2153
    %v2155 = vsub.f32 1.5, %v2154
    %v2156 = vmul.f32 %v2151, %v2155
    %vm2157 = vweird.f32 %v2109
    %vm2158 = vweird.f32 %v2151
    %vm2159 = vmor %vm2157, %vm2158
    %v2160 = vsel %vm2159, %v2151, %v2156
    %v2161 = vrsqrt.pop %v2110
    %v2162 = vmul.f32 %v2161, %v2110
    %v2163 = vmul.f32 %v2162, %v2161
    %v2164 = vmul.f32 0.5, %v2163
    %v2165 = vsub.f32 1.5, %v2164
    %v2166 = vmul.f32 %v2161, %v2165
    %vm2167 = vweird.f32 %v2110
    %vm2168 = vweird.f32 %v2161
    %vm2169 = vmor %vm2167, %vm2168
    %v2170 = vsel %vm2169, %v2161, %v2166
    %v2171 = vmul.f32 %v2069, %v2120
    %v2172 = vmul.f32 %v2070, %v2130
    %v2173 = vmul.f32 %v2071, %v2140
    %v2174 = vmul.f32 %v2072, %v2150
    %v2175 = vmul.f32 %v2073, %v2160
    %v2176 = vmul.f32 %v2074, %v2170
    %v2178 = vperm.slane %v2043, 0
    %v2180 = vmul.f32 %v2171, %v2178
    %v2181 = vmul.f32 %v2172, %v2178
    %v2182 = vmul.f32 %v2173, %v2178
    %v2183 = vmul.f32 %v2174, %v2178
    %v2184 = vmul.f32 %v2175, %v2178
    %v2185 = vmul.f32 %v2176, %v2178
    %v2187 = vperm.slane %v2044, 0
    %v2189 = vadd.f32 %v2180, %v2187
    %v2190 = vadd.f32 %v2181, %v2187
    %v2191 = vadd.f32 %v2182, %v2187
    %v2192 = vadd.f32 %v2183, %v2187
    %v2193 = vadd.f32 %v2184, %v2187
    %v2194 = vadd.f32 %v2185, %v2187
    %v2195 = vld [vmem:[%s11] sm:$0xff]
    %v2196 = vld [vmem:[%s11 + $0x8] sm:$0xff]
    %v2197 = vld [vmem:[%s11 + $0x10] sm:$0xff]
    %v2198 = vld [vmem:[%s11 + $0x18] sm:$0xff]
    %v2199 = vld [vmem:[%s12] sm:$0x1]
    %v2201 = vperm.slane %v2199, 0
    %v2204 = vsel %vm140, %v2189, 0
    %v2207 = vsel %vm140, %v2190, 0
    %v2210 = vsel %vm140, %v2191, 0
    %v2213 = vsel %vm140, %v2192, 0
    %v2216 = vsel %vm140, %v2193, 0
    %v2219 = vsel %vm140, %v2194, 0
    %2221 = vmatpush.msra.mxu0 0.0
    %2222 = vmatpush.msra.mxu0 0.0
    %2223 = vmatpush.msra.mxu0 0.0
    %2224 = vmatpush.msra.mxu0 0.0
    %2225 = vmatpush.msra.mxu0 0.0
    %2226 = vmatpush.msra.mxu0 0.0
    %2227 = vmatpush.msra.mxu0 0.0
    %2228 = vmatpush.msra.mxu0 0.0
    %2229 = vmatpush.msra.mxu0 0.0
    %2230 = vmatpush.msra.mxu0 0.0
    %2231 = vmatpush.msra.mxu0 0.0
    %2232 = vmatpush.msra.mxu0 0.0
    %2233 = vmatpush.msra.mxu0 %v2198
    %2234 = vmatpush.msra.mxu0 %v2197
    %2235 = vmatpush.msra.mxu0 %v2196
    %2236 = vmatpush.msra.mxu0 %v2195
    %2237 = vmatmul.f32.gmra.mxu0 %v2204
    %v2238 = vpop.f32.mrf.mxu0
    %v2239 = vadd.f32 %v2201, %v2238
    %2240 = vmatmul.f32.gmra.mxu0 %v2207
    %v2241 = vpop.f32.mrf.mxu0
    %v2242 = vadd.f32 %v2201, %v2241
    %2243 = vmatmul.f32.gmra.mxu0 %v2210
    %v2244 = vpop.f32.mrf.mxu0
    %v2245 = vadd.f32 %v2201, %v2244
    %2246 = vmatmul.f32.gmra.mxu0 %v2213
    %v2247 = vpop.f32.mrf.mxu0
    %v2248 = vadd.f32 %v2201, %v2247
    %2249 = vmatmul.f32.gmra.mxu0 %v2216
    %v2250 = vpop.f32.mrf.mxu0
    %v2251 = vadd.f32 %v2201, %v2250
    %2252 = vmatmul.f32.gmra.mxu0 %v2219
    %v2253 = vpop.f32.mrf.mxu0
    %v2254 = vadd.f32 %v2201, %v2253
    %2255 = vdwg.mxu0
    %v2256 = vmul.f32 %v2239, 0.5
    %v2257 = vmul.f32 %v2242, 0.5
    %v2258 = vmul.f32 %v2245, 0.5
    %v2259 = vmul.f32 %v2248, 0.5
    %v2260 = vmul.f32 %v2251, 0.5
    %v2261 = vmul.f32 %v2254, 0.5
    %v2262 = vmul.f32 %v2239, 0.70710677
    %v2263 = vmul.f32 %v2242, 0.70710677
    %v2264 = vmul.f32 %v2245, 0.70710677
    %v2265 = vmul.f32 %v2248, 0.70710677
    %v2266 = vmul.f32 %v2251, 0.70710677
    %v2267 = vmul.f32 %v2254, 0.70710677
    %v2268 = vmul.f32 %v2262, %v2262
    %v2269 = vmin.f32 16.0, %v2268
    %v2270 = vmul.f32 %v2269, 2.1237322e-06
    %v2271 = vadd.f32 %v2270, 0.00028619796
    %v2272 = vmul.f32 %v2269, %v2271
    %v2273 = vadd.f32 %v2272, 0.0036580483
    %v2274 = vmul.f32 %v2269, %v2273
    %v2275 = vadd.f32 %v2274, 0.05243302
    %v2276 = vmul.f32 %v2269, %v2275
    %v2277 = vadd.f32 %v2276, 0.18741608
    %v2278 = vmul.f32 %v2269, %v2277
    %v2279 = vadd.f32 %v2278, 1.1283791
    %v2280 = vmul.f32 %v2262, %v2279
    %v2281 = vmul.f32 %v2269, 3.8918573e-05
    %v2282 = vadd.f32 %v2281, 0.001143296
    %v2283 = vmul.f32 %v2269, %v2282
    %v2284 = vadd.f32 %v2283, 0.014752088
    %v2285 = vmul.f32 %v2269, %v2284
    %v2286 = vadd.f32 %v2285, 0.112945676
    %v2287 = vmul.f32 %v2269, %v2286
    %v2288 = vadd.f32 %v2287, 0.4994258
    %v2289 = vmul.f32 %v2269, %v2288
    %v2290 = vadd.f32 %v2289, 1.0
    %v2291 = vrcp.pop %v2290
    %v2292 = vmul.f32 %v2290, %v2291
    %v2293 = vsub.f32 1.0, %v2292
    %v2294 = vmul.f32 %v2291, %v2293
    %v2295 = vadd.f32 %v2291, %v2294
    %vm2296 = vweird.f32 %v2290
    %vm2297 = vweird.f32 %v2291
    %vm2298 = vmor %vm2296, %vm2297
    %v2299 = vsel %vm2298, %v2291, %v2295
    %v2300 = vand.u32 2147483647, %v2290
    %vm2301 = vcmp.eq.f32.partialorder %v2300, 8.507059e+37
    %v2302 = vand.u32 %v2290, 2147483648
    %v2303 = vor.u32 1.1754944e-38, %v2302
    %v2304 = vsel %vm2301, %v2303, %v2299
    %v2305 = vmul.f32 %v2280, %v2304
    %v2306 = vmin.f32 %v2305, 1.0
    %v2307 = vmax.f32 %v2306, -1.0
    %v2308 = vmul.f32 %v2263, %v2263
    %v2309 = vmin.f32 16.0, %v2308
    %v2310 = vmul.f32 %v2309, 2.1237322e-06
    %v2311 = vadd.f32 %v2310, 0.00028619796
    %v2312 = vmul.f32 %v2309, %v2311
    %v2313 = vadd.f32 %v2312, 0.0036580483
    %v2314 = vmul.f32 %v2309, %v2313
    %v2315 = vadd.f32 %v2314, 0.05243302
    %v2316 = vmul.f32 %v2309, %v2315
    %v2317 = vadd.f32 %v2316, 0.18741608
    %v2318 = vmul.f32 %v2309, %v2317
    %v2319 = vadd.f32 %v2318, 1.1283791
    %v2320 = vmul.f32 %v2263, %v2319
    %v2321 = vmul.f32 %v2309, 3.8918573e-05
    %v2322 = vadd.f32 %v2321, 0.001143296
    %v2323 = vmul.f32 %v2309, %v2322
    %v2324 = vadd.f32 %v2323, 0.014752088
    %v2325 = vmul.f32 %v2309, %v2324
    %v2326 = vadd.f32 %v2325, 0.112945676
    %v2327 = vmul.f32 %v2309, %v2326
    %v2328 = vadd.f32 %v2327, 0.4994258
    %v2329 = vmul.f32 %v2309, %v2328
    %v2330 = vadd.f32 %v2329, 1.0
    %v2331 = vrcp.pop %v2330
    %v2332 = vmul.f32 %v2330, %v2331
    %v2333 = vsub.f32 1.0, %v2332
    %v2334 = vmul.f32 %v2331, %v2333
    %v2335 = vadd.f32 %v2331, %v2334
    %vm2336 = vweird.f32 %v2330
    %vm2337 = vweird.f32 %v2331
    %vm2338 = vmor %vm2336, %vm2337
    %v2339 = vsel %vm2338, %v2331, %v2335
    %v2340 = vand.u32 2147483647, %v2330
    %vm2341 = vcmp.eq.f32.partialorder %v2340, 8.507059e+37
    %v2342 = vand.u32 %v2330, 2147483648
    %v2343 = vor.u32 1.1754944e-38, %v2342
    %v2344 = vsel %vm2341, %v2343, %v2339
    %v2345 = vmul.f32 %v2320, %v2344
    %v2346 = vmin.f32 %v2345, 1.0
    %v2347 = vmax.f32 %v2346, -1.0
    %v2348 = vmul.f32 %v2264, %v2264
    %v2349 = vmin.f32 16.0, %v2348
    %v2350 = vmul.f32 %v2349, 2.1237322e-06
    %v2351 = vadd.f32 %v2350, 0.00028619796
    %v2352 = vmul.f32 %v2349, %v2351
    %v2353 = vadd.f32 %v2352, 0.0036580483
    %v2354 = vmul.f32 %v2349, %v2353
    %v2355 = vadd.f32 %v2354, 0.05243302
    %v2356 = vmul.f32 %v2349, %v2355
    %v2357 = vadd.f32 %v2356, 0.18741608
    %v2358 = vmul.f32 %v2349, %v2357
    %v2359 = vadd.f32 %v2358, 1.1283791
    %v2360 = vmul.f32 %v2264, %v2359
    %v2361 = vmul.f32 %v2349, 3.8918573e-05
    %v2362 = vadd.f32 %v2361, 0.001143296
    %v2363 = vmul.f32 %v2349, %v2362
    %v2364 = vadd.f32 %v2363, 0.014752088
    %v2365 = vmul.f32 %v2349, %v2364
    %v2366 = vadd.f32 %v2365, 0.112945676
    %v2367 = vmul.f32 %v2349, %v2366
    %v2368 = vadd.f32 %v2367, 0.4994258
    %v2369 = vmul.f32 %v2349, %v2368
    %v2370 = vadd.f32 %v2369, 1.0
    %v2371 = vrcp.pop %v2370
    %v2372 = vmul.f32 %v2370, %v2371
    %v2373 = vsub.f32 1.0, %v2372
    %v2374 = vmul.f32 %v2371, %v2373
    %v2375 = vadd.f32 %v2371, %v2374
    %vm2376 = vweird.f32 %v2370
    %vm2377 = vweird.f32 %v2371
    %vm2378 = vmor %vm2376, %vm2377
    %v2379 = vsel %vm2378, %v2371, %v2375
    %v2380 = vand.u32 2147483647, %v2370
    %vm2381 = vcmp.eq.f32.partialorder %v2380, 8.507059e+37
    %v2382 = vand.u32 %v2370, 2147483648
    %v2383 = vor.u32 1.1754944e-38, %v2382
    %v2384 = vsel %vm2381, %v2383, %v2379
    %v2385 = vmul.f32 %v2360, %v2384
    %v2386 = vmin.f32 %v2385, 1.0
    %v2387 = vmax.f32 %v2386, -1.0
    %v2388 = vmul.f32 %v2265, %v2265
    %v2389 = vmin.f32 16.0, %v2388
    %v2390 = vmul.f32 %v2389, 2.1237322e-06
    %v2391 = vadd.f32 %v2390, 0.00028619796
    %v2392 = vmul.f32 %v2389, %v2391
    %v2393 = vadd.f32 %v2392, 0.0036580483
    %v2394 = vmul.f32 %v2389, %v2393
    %v2395 = vadd.f32 %v2394, 0.05243302
    %v2396 = vmul.f32 %v2389, %v2395
    %v2397 = vadd.f32 %v2396, 0.18741608
    %v2398 = vmul.f32 %v2389, %v2397
    %v2399 = vadd.f32 %v2398, 1.1283791
    %v2400 = vmul.f32 %v2265, %v2399
    %v2401 = vmul.f32 %v2389, 3.8918573e-05
    %v2402 = vadd.f32 %v2401, 0.001143296
    %v2403 = vmul.f32 %v2389, %v2402
    %v2404 = vadd.f32 %v2403, 0.014752088
    %v2405 = vmul.f32 %v2389, %v2404
    %v2406 = vadd.f32 %v2405, 0.112945676
    %v2407 = vmul.f32 %v2389, %v2406
    %v2408 = vadd.f32 %v2407, 0.4994258
    %v2409 = vmul.f32 %v2389, %v2408
    %v2410 = vadd.f32 %v2409, 1.0
    %v2411 = vrcp.pop %v2410
    %v2412 = vmul.f32 %v2410, %v2411
    %v2413 = vsub.f32 1.0, %v2412
    %v2414 = vmul.f32 %v2411, %v2413
    %v2415 = vadd.f32 %v2411, %v2414
    %vm2416 = vweird.f32 %v2410
    %vm2417 = vweird.f32 %v2411
    %vm2418 = vmor %vm2416, %vm2417
    %v2419 = vsel %vm2418, %v2411, %v2415
    %v2420 = vand.u32 2147483647, %v2410
    %vm2421 = vcmp.eq.f32.partialorder %v2420, 8.507059e+37
    %v2422 = vand.u32 %v2410, 2147483648
    %v2423 = vor.u32 1.1754944e-38, %v2422
    %v2424 = vsel %vm2421, %v2423, %v2419
    %v2425 = vmul.f32 %v2400, %v2424
    %v2426 = vmin.f32 %v2425, 1.0
    %v2427 = vmax.f32 %v2426, -1.0
    %v2428 = vmul.f32 %v2266, %v2266
    %v2429 = vmin.f32 16.0, %v2428
    %v2430 = vmul.f32 %v2429, 2.1237322e-06
    %v2431 = vadd.f32 %v2430, 0.00028619796
    %v2432 = vmul.f32 %v2429, %v2431
    %v2433 = vadd.f32 %v2432, 0.0036580483
    %v2434 = vmul.f32 %v2429, %v2433
    %v2435 = vadd.f32 %v2434, 0.05243302
    %v2436 = vmul.f32 %v2429, %v2435
    %v2437 = vadd.f32 %v2436, 0.18741608
    %v2438 = vmul.f32 %v2429, %v2437
    %v2439 = vadd.f32 %v2438, 1.1283791
    %v2440 = vmul.f32 %v2266, %v2439
    %v2441 = vmul.f32 %v2429, 3.8918573e-05
    %v2442 = vadd.f32 %v2441, 0.001143296
    %v2443 = vmul.f32 %v2429, %v2442
    %v2444 = vadd.f32 %v2443, 0.014752088
    %v2445 = vmul.f32 %v2429, %v2444
    %v2446 = vadd.f32 %v2445, 0.112945676
    %v2447 = vmul.f32 %v2429, %v2446
    %v2448 = vadd.f32 %v2447, 0.4994258
    %v2449 = vmul.f32 %v2429, %v2448
    %v2450 = vadd.f32 %v2449, 1.0
    %v2451 = vrcp.pop %v2450
    %v2452 = vmul.f32 %v2450, %v2451
    %v2453 = vsub.f32 1.0, %v2452
    %v2454 = vmul.f32 %v2451, %v2453
    %v2455 = vadd.f32 %v2451, %v2454
    %vm2456 = vweird.f32 %v2450
    %vm2457 = vweird.f32 %v2451
    %vm2458 = vmor %vm2456, %vm2457
    %v2459 = vsel %vm2458, %v2451, %v2455
    %v2460 = vand.u32 2147483647, %v2450
    %vm2461 = vcmp.eq.f32.partialorder %v2460, 8.507059e+37
    %v2462 = vand.u32 %v2450, 2147483648
    %v2463 = vor.u32 1.1754944e-38, %v2462
    %v2464 = vsel %vm2461, %v2463, %v2459
    %v2465 = vmul.f32 %v2440, %v2464
    %v2466 = vmin.f32 %v2465, 1.0
    %v2467 = vmax.f32 %v2466, -1.0
    %v2468 = vmul.f32 %v2267, %v2267
    %v2469 = vmin.f32 16.0, %v2468
    %v2470 = vmul.f32 %v2469, 2.1237322e-06
    %v2471 = vadd.f32 %v2470, 0.00028619796
    %v2472 = vmul.f32 %v2469, %v2471
    %v2473 = vadd.f32 %v2472, 0.0036580483
    %v2474 = vmul.f32 %v2469, %v2473
    %v2475 = vadd.f32 %v2474, 0.05243302
    %v2476 = vmul.f32 %v2469, %v2475
    %v2477 = vadd.f32 %v2476, 0.18741608
    %v2478 = vmul.f32 %v2469, %v2477
    %v2479 = vadd.f32 %v2478, 1.1283791
    %v2480 = vmul.f32 %v2267, %v2479
    %v2481 = vmul.f32 %v2469, 3.8918573e-05
    %v2482 = vadd.f32 %v2481, 0.001143296
    %v2483 = vmul.f32 %v2469, %v2482
    %v2484 = vadd.f32 %v2483, 0.014752088
    %v2485 = vmul.f32 %v2469, %v2484
    %v2486 = vadd.f32 %v2485, 0.112945676
    %v2487 = vmul.f32 %v2469, %v2486
    %v2488 = vadd.f32 %v2487, 0.4994258
    %v2489 = vmul.f32 %v2469, %v2488
    %v2490 = vadd.f32 %v2489, 1.0
    %v2491 = vrcp.pop %v2490
    %v2492 = vmul.f32 %v2490, %v2491
    %v2493 = vsub.f32 1.0, %v2492
    %v2494 = vmul.f32 %v2491, %v2493
    %v2495 = vadd.f32 %v2491, %v2494
    %vm2496 = vweird.f32 %v2490
    %vm2497 = vweird.f32 %v2491
    %vm2498 = vmor %vm2496, %vm2497
    %v2499 = vsel %vm2498, %v2491, %v2495
    %v2500 = vand.u32 2147483647, %v2490
    %vm2501 = vcmp.eq.f32.partialorder %v2500, 8.507059e+37
    %v2502 = vand.u32 %v2490, 2147483648
    %v2503 = vor.u32 1.1754944e-38, %v2502
    %v2504 = vsel %vm2501, %v2503, %v2499
    %v2505 = vmul.f32 %v2480, %v2504
    %v2506 = vmin.f32 %v2505, 1.0
    %v2507 = vmax.f32 %v2506, -1.0
    %v2508 = vadd.f32 %v2307, 1.0
    %v2509 = vadd.f32 %v2347, 1.0
    %v2510 = vadd.f32 %v2387, 1.0
    %v2511 = vadd.f32 %v2427, 1.0
    %v2512 = vadd.f32 %v2467, 1.0
    %v2513 = vadd.f32 %v2507, 1.0
    %v2514 = vmul.f32 %v2256, %v2508
    %v2515 = vmul.f32 %v2257, %v2509
    %v2516 = vmul.f32 %v2258, %v2510
    %v2517 = vmul.f32 %v2259, %v2511
    %v2518 = vmul.f32 %v2260, %v2512
    %v2519 = vmul.f32 %v2261, %v2513
    %v2520 = vld [vmem:[%s13] sm:$0xff]
    %v2521 = vld [vmem:[%s13 + $0x8] sm:$0xff]
    %v2522 = vld [vmem:[%s13 + $0x10] sm:$0xff]
    %v2523 = vld [vmem:[%s13 + $0x18] sm:$0xff]
    %v2524 = vld [vmem:[%s13 + $0x20] sm:$0xff]
    %v2525 = vld [vmem:[%s13 + $0x28] sm:$0xff]
    %v2526 = vld [vmem:[%s13 + $0x30] sm:$0xff]
    %v2527 = vld [vmem:[%s13 + $0x38] sm:$0xff]
    %v2528 = vld [vmem:[%s13 + $0x40] sm:$0xff]
    %v2529 = vld [vmem:[%s13 + $0x48] sm:$0xff]
    %v2530 = vld [vmem:[%s13 + $0x50] sm:$0xff]
    %v2531 = vld [vmem:[%s13 + $0x58] sm:$0xff]
    %v2532 = vld [vmem:[%s13 + $0x60] sm:$0xff]
    %v2533 = vld [vmem:[%s13 + $0x68] sm:$0xff]
    %v2534 = vld [vmem:[%s13 + $0x70] sm:$0xff]
    %v2535 = vld [vmem:[%s13 + $0x78] sm:$0xff]
    %v2536 = vld [vmem:[%s14] sm:$0x1]
    %v2538 = vperm.slane %v2536, 0
    %2540 = vmatpush.msra.mxu0 %v2535
    %2541 = vmatpush.msra.mxu0 %v2534
    %2542 = vmatpush.msra.mxu0 %v2533
    %2543 = vmatpush.msra.mxu0 %v2532
    %2544 = vmatpush.msra.mxu0 %v2531
    %2545 = vmatpush.msra.mxu0 %v2530
    %2546 = vmatpush.msra.mxu0 %v2529
    %2547 = vmatpush.msra.mxu0 %v2528
    %2548 = vmatpush.msra.mxu0 %v2527
    %2549 = vmatpush.msra.mxu0 %v2526
    %2550 = vmatpush.msra.mxu0 %v2525
    %2551 = vmatpush.msra.mxu0 %v2524
    %2552 = vmatpush.msra.mxu0 %v2523
    %2553 = vmatpush.msra.mxu0 %v2522
    %2554 = vmatpush.msra.mxu0 %v2521
    %2555 = vmatpush.msra.mxu0 %v2520
    %2556 = vmatmul.f32.gmra.mxu0 %v2514
    %v2557 = vpop.f32.mrf.mxu0
    %v2558 = vadd.f32 %v2538, %v2557
    %2559 = vmatmul.f32.gmra.mxu0 %v2515
    %v2560 = vpop.f32.mrf.mxu0
    %v2561 = vadd.f32 %v2538, %v2560
    %2562 = vmatmul.f32.gmra.mxu0 %v2516
    %v2563 = vpop.f32.mrf.mxu0
    %v2564 = vadd.f32 %v2538, %v2563
    %2565 = vmatmul.f32.gmra.mxu0 %v2517
    %v2566 = vpop.f32.mrf.mxu0
    %v2567 = vadd.f32 %v2538, %v2566
    %2568 = vmatmul.f32.gmra.mxu0 %v2518
    %v2569 = vpop.f32.mrf.mxu0
    %v2570 = vadd.f32 %v2538, %v2569
    %2571 = vmatmul.f32.gmra.mxu0 %v2519
    %v2572 = vpop.f32.mrf.mxu0
    %v2573 = vadd.f32 %v2538, %v2572
    %2574 = vdwg.mxu0
    %v2575 = vadd.f32 %v2037, %v2558
    %v2576 = vadd.f32 %v2038, %v2561
    %v2577 = vadd.f32 %v2039, %v2564
    %v2578 = vadd.f32 %v2040, %v2567
    %v2579 = vadd.f32 %v2041, %v2570
    %v2580 = vadd.f32 %v2042, %v2573
    %s2581 = scalar_lea.vmem %s3, 1
    %v2582 = vld [vmem:[%s2581] sm:$0x1]
    %s2583 = scalar_lea.vmem %s4, 1
    %v2584 = vld [vmem:[%s2583] sm:$0x1]
    %v2585 = vsel %vm140, %v2575, 0.0
    %2586 = vadd.xlane.f32.xlu0 %v2585
    %v2587 = vpop.xlane.xlu0 %2586
    %v2588 = vsel %vm140, %v2576, 0.0
    %2589 = vadd.xlane.f32.xlu0 %v2588
    %v2590 = vpop.xlane.xlu0 %2589
    %v2591 = vsel %vm140, %v2577, 0.0
    %2592 = vadd.xlane.f32.xlu0 %v2591
    %v2593 = vpop.xlane.xlu0 %2592
    %v2594 = vsel %vm140, %v2578, 0.0
    %2595 = vadd.xlane.f32.xlu0 %v2594
    %v2596 = vpop.xlane.xlu0 %2595
    %v2597 = vsel %vm140, %v2579, 0.0
    %2598 = vadd.xlane.f32.xlu0 %v2597
    %v2599 = vpop.xlane.xlu0 %2598
    %v2600 = vsel %vm140, %v2580, 0.0
    %2601 = vadd.xlane.f32.xlu0 %v2600
    %v2602 = vpop.xlane.xlu0 %2601
    %v2603 = vmul.f32 %v2587, %v165
    %v2604 = vmul.f32 %v2590, %v165
    %v2605 = vmul.f32 %v2593, %v165
    %v2606 = vmul.f32 %v2596, %v165
    %v2607 = vmul.f32 %v2599, %v165
    %v2608 = vmul.f32 %v2602, %v165
    %v2609 = vsub.f32 %v2575, %v2603
    %v2610 = vsub.f32 %v2576, %v2604
    %v2611 = vsub.f32 %v2577, %v2605
    %v2612 = vsub.f32 %v2578, %v2606
    %v2613 = vsub.f32 %v2579, %v2607
    %v2614 = vsub.f32 %v2580, %v2608
    %v2615 = vmul.f32 %v2609, %v2609
    %v2616 = vmul.f32 %v2610, %v2610
    %v2617 = vmul.f32 %v2611, %v2611
    %v2618 = vmul.f32 %v2612, %v2612
    %v2619 = vmul.f32 %v2613, %v2613
    %v2620 = vmul.f32 %v2614, %v2614
    %v2621 = vsel %vm140, %v2615, 0.0
    %2622 = vadd.xlane.f32.xlu0 %v2621
    %v2623 = vpop.xlane.xlu0 %2622
    %v2624 = vsel %vm140, %v2616, 0.0
    %2625 = vadd.xlane.f32.xlu0 %v2624
    %v2626 = vpop.xlane.xlu0 %2625
    %v2627 = vsel %vm140, %v2617, 0.0
    %2628 = vadd.xlane.f32.xlu0 %v2627
    %v2629 = vpop.xlane.xlu0 %2628
    %v2630 = vsel %vm140, %v2618, 0.0
    %2631 = vadd.xlane.f32.xlu0 %v2630
    %v2632 = vpop.xlane.xlu0 %2631
    %v2633 = vsel %vm140, %v2619, 0.0
    %2634 = vadd.xlane.f32.xlu0 %v2633
    %v2635 = vpop.xlane.xlu0 %2634
    %v2636 = vsel %vm140, %v2620, 0.0
    %2637 = vadd.xlane.f32.xlu0 %v2636
    %v2638 = vpop.xlane.xlu0 %2637
    %v2639 = vmul.f32 %v2623, %v165
    %v2640 = vmul.f32 %v2626, %v165
    %v2641 = vmul.f32 %v2629, %v165
    %v2642 = vmul.f32 %v2632, %v165
    %v2643 = vmul.f32 %v2635, %v165
    %v2644 = vmul.f32 %v2638, %v165
    %v2645 = vadd.f32 %v2639, 1e-06
    %v2646 = vadd.f32 %v2640, 1e-06
    %v2647 = vadd.f32 %v2641, 1e-06
    %v2648 = vadd.f32 %v2642, 1e-06
    %v2649 = vadd.f32 %v2643, 1e-06
    %v2650 = vadd.f32 %v2644, 1e-06
    %v2651 = vrsqrt.pop %v2645
    %v2652 = vmul.f32 %v2651, %v2645
    %v2653 = vmul.f32 %v2652, %v2651
    %v2654 = vmul.f32 0.5, %v2653
    %v2655 = vsub.f32 1.5, %v2654
    %v2656 = vmul.f32 %v2651, %v2655
    %vm2657 = vweird.f32 %v2645
    %vm2658 = vweird.f32 %v2651
    %vm2659 = vmor %vm2657, %vm2658
    %v2660 = vsel %vm2659, %v2651, %v2656
    %v2661 = vrsqrt.pop %v2646
    %v2662 = vmul.f32 %v2661, %v2646
    %v2663 = vmul.f32 %v2662, %v2661
    %v2664 = vmul.f32 0.5, %v2663
    %v2665 = vsub.f32 1.5, %v2664
    %v2666 = vmul.f32 %v2661, %v2665
    %vm2667 = vweird.f32 %v2646
    %vm2668 = vweird.f32 %v2661
    %vm2669 = vmor %vm2667, %vm2668
    %v2670 = vsel %vm2669, %v2661, %v2666
    %v2671 = vrsqrt.pop %v2647
    %v2672 = vmul.f32 %v2671, %v2647
    %v2673 = vmul.f32 %v2672, %v2671
    %v2674 = vmul.f32 0.5, %v2673
    %v2675 = vsub.f32 1.5, %v2674
    %v2676 = vmul.f32 %v2671, %v2675
    %vm2677 = vweird.f32 %v2647
    %vm2678 = vweird.f32 %v2671
    %vm2679 = vmor %vm2677, %vm2678
    %v2680 = vsel %vm2679, %v2671, %v2676
    %v2681 = vrsqrt.pop %v2648
    %v2682 = vmul.f32 %v2681, %v2648
    %v2683 = vmul.f32 %v2682, %v2681
    %v2684 = vmul.f32 0.5, %v2683
    %v2685 = vsub.f32 1.5, %v2684
    %v2686 = vmul.f32 %v2681, %v2685
    %vm2687 = vweird.f32 %v2648
    %vm2688 = vweird.f32 %v2681
    %vm2689 = vmor %vm2687, %vm2688
    %v2690 = vsel %vm2689, %v2681, %v2686
    %v2691 = vrsqrt.pop %v2649
    %v2692 = vmul.f32 %v2691, %v2649
    %v2693 = vmul.f32 %v2692, %v2691
    %v2694 = vmul.f32 0.5, %v2693
    %v2695 = vsub.f32 1.5, %v2694
    %v2696 = vmul.f32 %v2691, %v2695
    %vm2697 = vweird.f32 %v2649
    %vm2698 = vweird.f32 %v2691
    %vm2699 = vmor %vm2697, %vm2698
    %v2700 = vsel %vm2699, %v2691, %v2696
    %v2701 = vrsqrt.pop %v2650
    %v2702 = vmul.f32 %v2701, %v2650
    %v2703 = vmul.f32 %v2702, %v2701
    %v2704 = vmul.f32 0.5, %v2703
    %v2705 = vsub.f32 1.5, %v2704
    %v2706 = vmul.f32 %v2701, %v2705
    %vm2707 = vweird.f32 %v2650
    %vm2708 = vweird.f32 %v2701
    %vm2709 = vmor %vm2707, %vm2708
    %v2710 = vsel %vm2709, %v2701, %v2706
    %v2711 = vmul.f32 %v2609, %v2660
    %v2712 = vmul.f32 %v2610, %v2670
    %v2713 = vmul.f32 %v2611, %v2680
    %v2714 = vmul.f32 %v2612, %v2690
    %v2715 = vmul.f32 %v2613, %v2700
    %v2716 = vmul.f32 %v2614, %v2710
    %v2718 = vperm.slane %v2582, 0
    %v2720 = vmul.f32 %v2711, %v2718
    %v2721 = vmul.f32 %v2712, %v2718
    %v2722 = vmul.f32 %v2713, %v2718
    %v2723 = vmul.f32 %v2714, %v2718
    %v2724 = vmul.f32 %v2715, %v2718
    %v2725 = vmul.f32 %v2716, %v2718
    %v2727 = vperm.slane %v2584, 0
    %v2729 = vadd.f32 %v2720, %v2727
    %v2730 = vadd.f32 %v2721, %v2727
    %v2731 = vadd.f32 %v2722, %v2727
    %v2732 = vadd.f32 %v2723, %v2727
    %v2733 = vadd.f32 %v2724, %v2727
    %v2734 = vadd.f32 %v2725, %v2727
    %s2735 = scalar_lea.vmem %s5, 32
    %v2736 = vld [vmem:[%s2735] sm:$0xff]
    %v2737 = vld [vmem:[%s2735 + $0x8] sm:$0xff]
    %v2738 = vld [vmem:[%s2735 + $0x10] sm:$0xff]
    %v2739 = vld [vmem:[%s2735 + $0x18] sm:$0xff]
    %s2740 = scalar_lea.vmem %s6, 1
    %v2741 = vld [vmem:[%s2740] sm:$0x1]
    %v2743 = vperm.slane %v2741, 0
    %v2746 = vsel %vm140, %v2729, 0
    %v2749 = vsel %vm140, %v2730, 0
    %v2752 = vsel %vm140, %v2731, 0
    %v2755 = vsel %vm140, %v2732, 0
    %v2758 = vsel %vm140, %v2733, 0
    %v2761 = vsel %vm140, %v2734, 0
    %2763 = vmatpush.msra.mxu0 0.0
    %2764 = vmatpush.msra.mxu0 0.0
    %2765 = vmatpush.msra.mxu0 0.0
    %2766 = vmatpush.msra.mxu0 0.0
    %2767 = vmatpush.msra.mxu0 0.0
    %2768 = vmatpush.msra.mxu0 0.0
    %2769 = vmatpush.msra.mxu0 0.0
    %2770 = vmatpush.msra.mxu0 0.0
    %2771 = vmatpush.msra.mxu0 0.0
    %2772 = vmatpush.msra.mxu0 0.0
    %2773 = vmatpush.msra.mxu0 0.0
    %2774 = vmatpush.msra.mxu0 0.0
    %2775 = vmatpush.msra.mxu0 %v2739
    %2776 = vmatpush.msra.mxu0 %v2738
    %2777 = vmatpush.msra.mxu0 %v2737
    %2778 = vmatpush.msra.mxu0 %v2736
    %2779 = vmatmul.f32.gmra.mxu0 %v2746
    %v2780 = vpop.f32.mrf.mxu0
    %v2781 = vadd.f32 %v2743, %v2780
    %2782 = vmatmul.f32.gmra.mxu0 %v2749
    %v2783 = vpop.f32.mrf.mxu0
    %v2784 = vadd.f32 %v2743, %v2783
    %2785 = vmatmul.f32.gmra.mxu0 %v2752
    %v2786 = vpop.f32.mrf.mxu0
    %v2787 = vadd.f32 %v2743, %v2786
    %2788 = vmatmul.f32.gmra.mxu0 %v2755
    %v2789 = vpop.f32.mrf.mxu0
    %v2790 = vadd.f32 %v2743, %v2789
    %2791 = vmatmul.f32.gmra.mxu0 %v2758
    %v2792 = vpop.f32.mrf.mxu0
    %v2793 = vadd.f32 %v2743, %v2792
    %2794 = vmatmul.f32.gmra.mxu0 %v2761
    %v2795 = vpop.f32.mrf.mxu0
    %v2796 = vadd.f32 %v2743, %v2795
    %2797 = vdwg.mxu0
    %s2798 = scalar_lea.vmem %s7, 32
    %v2799 = vld [vmem:[%s2798] sm:$0xff]
    %v2800 = vld [vmem:[%s2798 + $0x8] sm:$0xff]
    %v2801 = vld [vmem:[%s2798 + $0x10] sm:$0xff]
    %v2802 = vld [vmem:[%s2798 + $0x18] sm:$0xff]
    %2806 = vrot.lane.b32.xlu0 %v2781, 96
    %v2807 = vpop.permute.xlu0 %2806
    %2808 = vrot.lane.b32.xlu0 %v2784, 96
    %v2809 = vpop.permute.xlu0 %2808
    %2810 = vrot.lane.b32.xlu0 %v2787, 96
    %v2811 = vpop.permute.xlu0 %2810
    %v2812 = vsel %vm372, %v2781, 0
    %v2814 = vsel %vm372, %v2784, 0
    %v2816 = vsel %vm372, %v2787, 0
    %v2818 = vsel %vm372, %v2807, 0
    %v2820 = vsel %vm372, %v2809, 0
    %v2822 = vsel %vm372, %v2811, 0
    %2824 = vmatpush.xpose.msra.mxu0 0.0
    %2825 = vmatpush.xpose.msra.mxu0 0.0
    %2826 = vmatpush.xpose.msra.mxu0 0.0
    %2827 = vmatpush.xpose.msra.mxu0 0.0
    %2828 = vmatpush.xpose.msra.mxu0 0.0
    %2829 = vmatpush.xpose.msra.mxu0 0.0
    %2830 = vmatpush.xpose.msra.mxu0 0.0
    %2831 = vmatpush.xpose.msra.mxu0 0.0
    %2832 = vmatpush.xpose.msra.mxu0 0.0
    %2833 = vmatpush.xpose.msra.mxu0 0.0
    %2834 = vmatpush.xpose.msra.mxu0 0.0
    %2835 = vmatpush.xpose.msra.mxu0 0.0
    %2836 = vmatpush.xpose.msra.mxu0 0.0
    %2837 = vmatpush.xpose.msra.mxu0 %v2822
    %2838 = vmatpush.xpose.msra.mxu0 %v2820
    %2839 = vmatpush.xpose.msra.mxu0 %v2818
    %2840 = vmatmul.f32.gmra.mxu0 %v2812
    %v2841 = vpop.f32.mrf.mxu0
    %v2842 = vadd.f32 0.0, %v2841
    %2843 = vmatmul.f32.gmra.mxu0 %v2814
    %v2844 = vpop.f32.mrf.mxu0
    %v2845 = vadd.f32 0.0, %v2844
    %2846 = vmatmul.f32.gmra.mxu0 %v2816
    %v2847 = vpop.f32.mrf.mxu0
    %v2848 = vadd.f32 0.0, %v2847
    %2849 = vdwg.mxu0
    %v2850 = vmul.f32 %v2842, 0.35355338
    %v2851 = vmul.f32 %v2845, 0.35355338
    %v2852 = vmul.f32 %v2848, 0.35355338
    %v2853 = vsel %vm65, %v2850, -1e+30
    %v2854 = vsel %vm65, %v2851, -1e+30
    %v2855 = vsel %vm65, %v2852, -1e+30
    %v2856 = vsel %vm417, %v2853, -inf
    %2857 = vmax.xlane.f32.xlu0 %v2856
    %v2858 = vpop.xlane.xlu0 %2857
    %v2859 = vsel %vm417, %v2854, -inf
    %2860 = vmax.xlane.f32.xlu0 %v2859
    %v2861 = vpop.xlane.xlu0 %2860
    %v2862 = vsel %vm417, %v2855, -inf
    %2863 = vmax.xlane.f32.xlu0 %v2862
    %v2864 = vpop.xlane.xlu0 %2863
    %v2865 = vsub.f32 %v2853, %v2858
    %v2866 = vsub.f32 %v2854, %v2861
    %v2867 = vsub.f32 %v2855, %v2864
    %v2868 = vmul.f32 %v2865, 1.442695
    %v2869 = vpow.pop %v2868
    %v2870 = vmul.f32 %v2866, 1.442695
    %v2871 = vpow.pop %v2870
    %v2872 = vmul.f32 %v2867, 1.442695
    %v2873 = vpow.pop %v2872
    %v2874 = vsel %vm417, %v2869, 0.0
    %2875 = vadd.xlane.f32.xlu0 %v2874
    %v2876 = vpop.xlane.xlu0 %2875
    %v2877 = vsel %vm417, %v2871, 0.0
    %2878 = vadd.xlane.f32.xlu0 %v2877
    %v2879 = vpop.xlane.xlu0 %2878
    %v2880 = vsel %vm417, %v2873, 0.0
    %2881 = vadd.xlane.f32.xlu0 %v2880
    %v2882 = vpop.xlane.xlu0 %2881
    %v2883 = vrcp.pop %v2876
    %v2884 = vmul.f32 %v2876, %v2883
    %v2885 = vsub.f32 1.0, %v2884
    %v2886 = vmul.f32 %v2883, %v2885
    %v2887 = vadd.f32 %v2883, %v2886
    %vm2888 = vweird.f32 %v2876
    %vm2889 = vweird.f32 %v2883
    %vm2890 = vmor %vm2888, %vm2889
    %v2891 = vsel %vm2890, %v2883, %v2887
    %v2892 = vand.u32 2147483647, %v2876
    %vm2893 = vcmp.eq.f32.partialorder %v2892, 8.507059e+37
    %v2894 = vand.u32 %v2876, 2147483648
    %v2895 = vor.u32 1.1754944e-38, %v2894
    %v2896 = vsel %vm2893, %v2895, %v2891
    %v2897 = vmul.f32 %v2869, %v2896
    %v2898 = vrcp.pop %v2879
    %v2899 = vmul.f32 %v2879, %v2898
    %v2900 = vsub.f32 1.0, %v2899
    %v2901 = vmul.f32 %v2898, %v2900
    %v2902 = vadd.f32 %v2898, %v2901
    %vm2903 = vweird.f32 %v2879
    %vm2904 = vweird.f32 %v2898
    %vm2905 = vmor %vm2903, %vm2904
    %v2906 = vsel %vm2905, %v2898, %v2902
    %v2907 = vand.u32 2147483647, %v2879
    %vm2908 = vcmp.eq.f32.partialorder %v2907, 8.507059e+37
    %v2909 = vand.u32 %v2879, 2147483648
    %v2910 = vor.u32 1.1754944e-38, %v2909
    %v2911 = vsel %vm2908, %v2910, %v2906
    %v2912 = vmul.f32 %v2871, %v2911
    %v2913 = vrcp.pop %v2882
    %v2914 = vmul.f32 %v2882, %v2913
    %v2915 = vsub.f32 1.0, %v2914
    %v2916 = vmul.f32 %v2913, %v2915
    %v2917 = vadd.f32 %v2913, %v2916
    %vm2918 = vweird.f32 %v2882
    %vm2919 = vweird.f32 %v2913
    %vm2920 = vmor %vm2918, %vm2919
    %v2921 = vsel %vm2920, %v2913, %v2917
    %v2922 = vand.u32 2147483647, %v2882
    %vm2923 = vcmp.eq.f32.partialorder %v2922, 8.507059e+37
    %v2924 = vand.u32 %v2882, 2147483648
    %v2925 = vor.u32 1.1754944e-38, %v2924
    %v2926 = vsel %vm2923, %v2925, %v2921
    %v2927 = vmul.f32 %v2873, %v2926
    %2928 = vrot.lane.b32.xlu0 %v2781, 64
    %v2929 = vpop.permute.xlu0 %2928
    %2930 = vrot.lane.b32.xlu0 %v2784, 64
    %v2931 = vpop.permute.xlu0 %2930
    %2932 = vrot.lane.b32.xlu0 %v2787, 64
    %v2933 = vpop.permute.xlu0 %2932
    %v2938 = vsel %vm417, %v2897, 0
    %v2941 = vsel %vm417, %v2912, 0
    %v2944 = vsel %vm417, %v2927, 0
    %2946 = vmatpush.msra.mxu0 0.0
    %2947 = vmatpush.msra.mxu0 0.0
    %2948 = vmatpush.msra.mxu0 0.0
    %2949 = vmatpush.msra.mxu0 0.0
    %2950 = vmatpush.msra.mxu0 0.0
    %2951 = vmatpush.msra.mxu0 0.0
    %2952 = vmatpush.msra.mxu0 0.0
    %2953 = vmatpush.msra.mxu0 0.0
    %2954 = vmatpush.msra.mxu0 0.0
    %2955 = vmatpush.msra.mxu0 0.0
    %2956 = vmatpush.msra.mxu0 0.0
    %2957 = vmatpush.msra.mxu0 0.0
    %2958 = vmatpush.msra.mxu0 0.0
    %2959 = vmatpush.msra.mxu0 %v2933
    %2960 = vmatpush.msra.mxu0 %v2931
    %2961 = vmatpush.msra.mxu0 %v2929
    %2962 = vmatmul.f32.gmra.mxu0 %v2938
    %v2963 = vpop.f32.mrf.mxu0
    %v2964 = vadd.f32 0.0, %v2963
    %2965 = vmatmul.f32.gmra.mxu0 %v2941
    %v2966 = vpop.f32.mrf.mxu0
    %v2967 = vadd.f32 0.0, %v2966
    %2968 = vmatmul.f32.gmra.mxu0 %v2944
    %v2969 = vpop.f32.mrf.mxu0
    %v2970 = vadd.f32 0.0, %v2969
    %2971 = vdwg.mxu0
    %2972 = vrot.lane.b32.xlu0 %v2781, 120
    %v2973 = vpop.permute.xlu0 %2972
    %2974 = vrot.lane.b32.xlu0 %v2784, 120
    %v2975 = vpop.permute.xlu0 %2974
    %2976 = vrot.lane.b32.xlu0 %v2787, 120
    %v2977 = vpop.permute.xlu0 %2976
    %2978 = vrot.lane.b32.xlu0 %v2781, 88
    %v2979 = vpop.permute.xlu0 %2978
    %2980 = vrot.lane.b32.xlu0 %v2784, 88
    %v2981 = vpop.permute.xlu0 %2980
    %2982 = vrot.lane.b32.xlu0 %v2787, 88
    %v2983 = vpop.permute.xlu0 %2982
    %v2984 = vsel %vm372, %v2973, 0
    %v2986 = vsel %vm372, %v2975, 0
    %v2988 = vsel %vm372, %v2977, 0
    %v2990 = vsel %vm372, %v2979, 0
    %v2992 = vsel %vm372, %v2981, 0
    %v2994 = vsel %vm372, %v2983, 0
    %2996 = vmatpush.xpose.msra.mxu0 0.0
    %2997 = vmatpush.xpose.msra.mxu0 0.0
    %2998 = vmatpush.xpose.msra.mxu0 0.0
    %2999 = vmatpush.xpose.msra.mxu0 0.0
    %3000 = vmatpush.xpose.msra.mxu0 0.0
    %3001 = vmatpush.xpose.msra.mxu0 0.0
    %3002 = vmatpush.xpose.msra.mxu0 0.0
    %3003 = vmatpush.xpose.msra.mxu0 0.0
    %3004 = vmatpush.xpose.msra.mxu0 0.0
    %3005 = vmatpush.xpose.msra.mxu0 0.0
    %3006 = vmatpush.xpose.msra.mxu0 0.0
    %3007 = vmatpush.xpose.msra.mxu0 0.0
    %3008 = vmatpush.xpose.msra.mxu0 0.0
    %3009 = vmatpush.xpose.msra.mxu0 %v2994
    %3010 = vmatpush.xpose.msra.mxu0 %v2992
    %3011 = vmatpush.xpose.msra.mxu0 %v2990
    %3012 = vmatmul.f32.gmra.mxu0 %v2984
    %v3013 = vpop.f32.mrf.mxu0
    %v3014 = vadd.f32 0.0, %v3013
    %3015 = vmatmul.f32.gmra.mxu0 %v2986
    %v3016 = vpop.f32.mrf.mxu0
    %v3017 = vadd.f32 0.0, %v3016
    %3018 = vmatmul.f32.gmra.mxu0 %v2988
    %v3019 = vpop.f32.mrf.mxu0
    %v3020 = vadd.f32 0.0, %v3019
    %3021 = vdwg.mxu0
    %v3022 = vmul.f32 %v3014, 0.35355338
    %v3023 = vmul.f32 %v3017, 0.35355338
    %v3024 = vmul.f32 %v3020, 0.35355338
    %v3025 = vsel %vm65, %v3022, -1e+30
    %v3026 = vsel %vm65, %v3023, -1e+30
    %v3027 = vsel %vm65, %v3024, -1e+30
    %v3028 = vsel %vm417, %v3025, -inf
    %3029 = vmax.xlane.f32.xlu0 %v3028
    %v3030 = vpop.xlane.xlu0 %3029
    %v3031 = vsel %vm417, %v3026, -inf
    %3032 = vmax.xlane.f32.xlu0 %v3031
    %v3033 = vpop.xlane.xlu0 %3032
    %v3034 = vsel %vm417, %v3027, -inf
    %3035 = vmax.xlane.f32.xlu0 %v3034
    %v3036 = vpop.xlane.xlu0 %3035
    %v3037 = vsub.f32 %v3025, %v3030
    %v3038 = vsub.f32 %v3026, %v3033
    %v3039 = vsub.f32 %v3027, %v3036
    %v3040 = vmul.f32 %v3037, 1.442695
    %v3041 = vpow.pop %v3040
    %v3042 = vmul.f32 %v3038, 1.442695
    %v3043 = vpow.pop %v3042
    %v3044 = vmul.f32 %v3039, 1.442695
    %v3045 = vpow.pop %v3044
    %v3046 = vsel %vm417, %v3041, 0.0
    %3047 = vadd.xlane.f32.xlu0 %v3046
    %v3048 = vpop.xlane.xlu0 %3047
    %v3049 = vsel %vm417, %v3043, 0.0
    %3050 = vadd.xlane.f32.xlu0 %v3049
    %v3051 = vpop.xlane.xlu0 %3050
    %v3052 = vsel %vm417, %v3045, 0.0
    %3053 = vadd.xlane.f32.xlu0 %v3052
    %v3054 = vpop.xlane.xlu0 %3053
    %v3055 = vrcp.pop %v3048
    %v3056 = vmul.f32 %v3048, %v3055
    %v3057 = vsub.f32 1.0, %v3056
    %v3058 = vmul.f32 %v3055, %v3057
    %v3059 = vadd.f32 %v3055, %v3058
    %vm3060 = vweird.f32 %v3048
    %vm3061 = vweird.f32 %v3055
    %vm3062 = vmor %vm3060, %vm3061
    %v3063 = vsel %vm3062, %v3055, %v3059
    %v3064 = vand.u32 2147483647, %v3048
    %vm3065 = vcmp.eq.f32.partialorder %v3064, 8.507059e+37
    %v3066 = vand.u32 %v3048, 2147483648
    %v3067 = vor.u32 1.1754944e-38, %v3066
    %v3068 = vsel %vm3065, %v3067, %v3063
    %v3069 = vmul.f32 %v3041, %v3068
    %v3070 = vrcp.pop %v3051
    %v3071 = vmul.f32 %v3051, %v3070
    %v3072 = vsub.f32 1.0, %v3071
    %v3073 = vmul.f32 %v3070, %v3072
    %v3074 = vadd.f32 %v3070, %v3073
    %vm3075 = vweird.f32 %v3051
    %vm3076 = vweird.f32 %v3070
    %vm3077 = vmor %vm3075, %vm3076
    %v3078 = vsel %vm3077, %v3070, %v3074
    %v3079 = vand.u32 2147483647, %v3051
    %vm3080 = vcmp.eq.f32.partialorder %v3079, 8.507059e+37
    %v3081 = vand.u32 %v3051, 2147483648
    %v3082 = vor.u32 1.1754944e-38, %v3081
    %v3083 = vsel %vm3080, %v3082, %v3078
    %v3084 = vmul.f32 %v3043, %v3083
    %v3085 = vrcp.pop %v3054
    %v3086 = vmul.f32 %v3054, %v3085
    %v3087 = vsub.f32 1.0, %v3086
    %v3088 = vmul.f32 %v3085, %v3087
    %v3089 = vadd.f32 %v3085, %v3088
    %vm3090 = vweird.f32 %v3054
    %vm3091 = vweird.f32 %v3085
    %vm3092 = vmor %vm3090, %vm3091
    %v3093 = vsel %vm3092, %v3085, %v3089
    %v3094 = vand.u32 2147483647, %v3054
    %vm3095 = vcmp.eq.f32.partialorder %v3094, 8.507059e+37
    %v3096 = vand.u32 %v3054, 2147483648
    %v3097 = vor.u32 1.1754944e-38, %v3096
    %v3098 = vsel %vm3095, %v3097, %v3093
    %v3099 = vmul.f32 %v3045, %v3098
    %3100 = vrot.lane.b32.xlu0 %v2781, 56
    %v3101 = vpop.permute.xlu0 %3100
    %3102 = vrot.lane.b32.xlu0 %v2784, 56
    %v3103 = vpop.permute.xlu0 %3102
    %3104 = vrot.lane.b32.xlu0 %v2787, 56
    %v3105 = vpop.permute.xlu0 %3104
    %v3110 = vsel %vm417, %v3069, 0
    %v3113 = vsel %vm417, %v3084, 0
    %v3116 = vsel %vm417, %v3099, 0
    %3118 = vmatpush.msra.mxu0 0.0
    %3119 = vmatpush.msra.mxu0 0.0
    %3120 = vmatpush.msra.mxu0 0.0
    %3121 = vmatpush.msra.mxu0 0.0
    %3122 = vmatpush.msra.mxu0 0.0
    %3123 = vmatpush.msra.mxu0 0.0
    %3124 = vmatpush.msra.mxu0 0.0
    %3125 = vmatpush.msra.mxu0 0.0
    %3126 = vmatpush.msra.mxu0 0.0
    %3127 = vmatpush.msra.mxu0 0.0
    %3128 = vmatpush.msra.mxu0 0.0
    %3129 = vmatpush.msra.mxu0 0.0
    %3130 = vmatpush.msra.mxu0 0.0
    %3131 = vmatpush.msra.mxu0 %v3105
    %3132 = vmatpush.msra.mxu0 %v3103
    %3133 = vmatpush.msra.mxu0 %v3101
    %3134 = vmatmul.f32.gmra.mxu0 %v3110
    %v3135 = vpop.f32.mrf.mxu0
    %v3136 = vadd.f32 0.0, %v3135
    %3137 = vmatmul.f32.gmra.mxu0 %v3113
    %v3138 = vpop.f32.mrf.mxu0
    %v3139 = vadd.f32 0.0, %v3138
    %3140 = vmatmul.f32.gmra.mxu0 %v3116
    %v3141 = vpop.f32.mrf.mxu0
    %v3142 = vadd.f32 0.0, %v3141
    %3143 = vdwg.mxu0
    %v3145 = vsel %vm372, %v3136, 0
    %v3148 = vsel %vm372, %v3139, 0
    %v3151 = vsel %vm372, %v3142, 0
    %3153 = vmatpush.msra.mxu0 0.0
    %3154 = vmatpush.msra.mxu0 0.0
    %3155 = vmatpush.msra.mxu0 0.0
    %3156 = vmatpush.msra.mxu0 0.0
    %3157 = vmatpush.msra.mxu0 0.0
    %3158 = vmatpush.msra.mxu0 0.0
    %3159 = vmatpush.msra.mxu0 0.0
    %3160 = vmatpush.msra.mxu0 0.0
    %3161 = vmatpush.msra.mxu0 0.0
    %3162 = vmatpush.msra.mxu0 0.0
    %3163 = vmatpush.msra.mxu0 0.0
    %3164 = vmatpush.msra.mxu0 0.0
    %3165 = vmatpush.msra.mxu0 0.0
    %3166 = vmatpush.msra.mxu0 0.0
    %3167 = vmatpush.msra.mxu0 0.0
    %3168 = vmatpush.msra.mxu0 %v2800
    %3169 = vmatmul.f32.gmra.mxu0 %v3145
    %v3170 = vpop.f32.mrf.mxu0
    %v3171 = vadd.f32 0.0, %v3170
    %3172 = vmatmul.f32.gmra.mxu0 %v3148
    %v3173 = vpop.f32.mrf.mxu0
    %v3174 = vadd.f32 0.0, %v3173
    %3175 = vmatmul.f32.gmra.mxu0 %v3151
    %v3176 = vpop.f32.mrf.mxu0
    %v3177 = vadd.f32 0.0, %v3176
    %3178 = vdwg.mxu0
    %v3180 = vsel %vm372, %v2964, 0
    %v3183 = vsel %vm372, %v2967, 0
    %v3186 = vsel %vm372, %v2970, 0
    %3188 = vmatpush.msra.mxu0 0.0
    %3189 = vmatpush.msra.mxu0 0.0
    %3190 = vmatpush.msra.mxu0 0.0
    %3191 = vmatpush.msra.mxu0 0.0
    %3192 = vmatpush.msra.mxu0 0.0
    %3193 = vmatpush.msra.mxu0 0.0
    %3194 = vmatpush.msra.mxu0 0.0
    %3195 = vmatpush.msra.mxu0 0.0
    %3196 = vmatpush.msra.mxu0 0.0
    %3197 = vmatpush.msra.mxu0 0.0
    %3198 = vmatpush.msra.mxu0 0.0
    %3199 = vmatpush.msra.mxu0 0.0
    %3200 = vmatpush.msra.mxu0 0.0
    %3201 = vmatpush.msra.mxu0 0.0
    %3202 = vmatpush.msra.mxu0 0.0
    %3203 = vmatpush.msra.mxu0 %v2799
    %3204 = vmatmul.f32.gmra.mxu0 %v3180
    %v3205 = vpop.f32.mrf.mxu0
    %v3206 = vadd.f32 %v3171, %v3205
    %3207 = vmatmul.f32.gmra.mxu0 %v3183
    %v3208 = vpop.f32.mrf.mxu0
    %v3209 = vadd.f32 %v3174, %v3208
    %3210 = vmatmul.f32.gmra.mxu0 %v3186
    %v3211 = vpop.f32.mrf.mxu0
    %v3212 = vadd.f32 %v3177, %v3211
    %3213 = vdwg.mxu0
    %3214 = vrot.lane.b32.xlu0 %v2781, 112
    %v3215 = vpop.permute.xlu0 %3214
    %3216 = vrot.lane.b32.xlu0 %v2784, 112
    %v3217 = vpop.permute.xlu0 %3216
    %3218 = vrot.lane.b32.xlu0 %v2787, 112
    %v3219 = vpop.permute.xlu0 %3218
    %3220 = vrot.lane.b32.xlu0 %v2781, 80
    %v3221 = vpop.permute.xlu0 %3220
    %3222 = vrot.lane.b32.xlu0 %v2784, 80
    %v3223 = vpop.permute.xlu0 %3222
    %3224 = vrot.lane.b32.xlu0 %v2787, 80
    %v3225 = vpop.permute.xlu0 %3224
    %v3226 = vsel %vm372, %v3215, 0
    %v3228 = vsel %vm372, %v3217, 0
    %v3230 = vsel %vm372, %v3219, 0
    %v3232 = vsel %vm372, %v3221, 0
    %v3234 = vsel %vm372, %v3223, 0
    %v3236 = vsel %vm372, %v3225, 0
    %3238 = vmatpush.xpose.msra.mxu0 0.0
    %3239 = vmatpush.xpose.msra.mxu0 0.0
    %3240 = vmatpush.xpose.msra.mxu0 0.0
    %3241 = vmatpush.xpose.msra.mxu0 0.0
    %3242 = vmatpush.xpose.msra.mxu0 0.0
    %3243 = vmatpush.xpose.msra.mxu0 0.0
    %3244 = vmatpush.xpose.msra.mxu0 0.0
    %3245 = vmatpush.xpose.msra.mxu0 0.0
    %3246 = vmatpush.xpose.msra.mxu0 0.0
    %3247 = vmatpush.xpose.msra.mxu0 0.0
    %3248 = vmatpush.xpose.msra.mxu0 0.0
    %3249 = vmatpush.xpose.msra.mxu0 0.0
    %3250 = vmatpush.xpose.msra.mxu0 0.0
    %3251 = vmatpush.xpose.msra.mxu0 %v3236
    %3252 = vmatpush.xpose.msra.mxu0 %v3234
    %3253 = vmatpush.xpose.msra.mxu0 %v3232
    %3254 = vmatmul.f32.gmra.mxu0 %v3226
    %v3255 = vpop.f32.mrf.mxu0
    %v3256 = vadd.f32 0.0, %v3255
    %3257 = vmatmul.f32.gmra.mxu0 %v3228
    %v3258 = vpop.f32.mrf.mxu0
    %v3259 = vadd.f32 0.0, %v3258
    %3260 = vmatmul.f32.gmra.mxu0 %v3230
    %v3261 = vpop.f32.mrf.mxu0
    %v3262 = vadd.f32 0.0, %v3261
    %3263 = vdwg.mxu0
    %v3264 = vmul.f32 %v3256, 0.35355338
    %v3265 = vmul.f32 %v3259, 0.35355338
    %v3266 = vmul.f32 %v3262, 0.35355338
    %v3267 = vsel %vm65, %v3264, -1e+30
    %v3268 = vsel %vm65, %v3265, -1e+30
    %v3269 = vsel %vm65, %v3266, -1e+30
    %v3270 = vsel %vm417, %v3267, -inf
    %3271 = vmax.xlane.f32.xlu0 %v3270
    %v3272 = vpop.xlane.xlu0 %3271
    %v3273 = vsel %vm417, %v3268, -inf
    %3274 = vmax.xlane.f32.xlu0 %v3273
    %v3275 = vpop.xlane.xlu0 %3274
    %v3276 = vsel %vm417, %v3269, -inf
    %3277 = vmax.xlane.f32.xlu0 %v3276
    %v3278 = vpop.xlane.xlu0 %3277
    %v3279 = vsub.f32 %v3267, %v3272
    %v3280 = vsub.f32 %v3268, %v3275
    %v3281 = vsub.f32 %v3269, %v3278
    %v3282 = vmul.f32 %v3279, 1.442695
    %v3283 = vpow.pop %v3282
    %v3284 = vmul.f32 %v3280, 1.442695
    %v3285 = vpow.pop %v3284
    %v3286 = vmul.f32 %v3281, 1.442695
    %v3287 = vpow.pop %v3286
    %v3288 = vsel %vm417, %v3283, 0.0
    %3289 = vadd.xlane.f32.xlu0 %v3288
    %v3290 = vpop.xlane.xlu0 %3289
    %v3291 = vsel %vm417, %v3285, 0.0
    %3292 = vadd.xlane.f32.xlu0 %v3291
    %v3293 = vpop.xlane.xlu0 %3292
    %v3294 = vsel %vm417, %v3287, 0.0
    %3295 = vadd.xlane.f32.xlu0 %v3294
    %v3296 = vpop.xlane.xlu0 %3295
    %v3297 = vrcp.pop %v3290
    %v3298 = vmul.f32 %v3290, %v3297
    %v3299 = vsub.f32 1.0, %v3298
    %v3300 = vmul.f32 %v3297, %v3299
    %v3301 = vadd.f32 %v3297, %v3300
    %vm3302 = vweird.f32 %v3290
    %vm3303 = vweird.f32 %v3297
    %vm3304 = vmor %vm3302, %vm3303
    %v3305 = vsel %vm3304, %v3297, %v3301
    %v3306 = vand.u32 2147483647, %v3290
    %vm3307 = vcmp.eq.f32.partialorder %v3306, 8.507059e+37
    %v3308 = vand.u32 %v3290, 2147483648
    %v3309 = vor.u32 1.1754944e-38, %v3308
    %v3310 = vsel %vm3307, %v3309, %v3305
    %v3311 = vmul.f32 %v3283, %v3310
    %v3312 = vrcp.pop %v3293
    %v3313 = vmul.f32 %v3293, %v3312
    %v3314 = vsub.f32 1.0, %v3313
    %v3315 = vmul.f32 %v3312, %v3314
    %v3316 = vadd.f32 %v3312, %v3315
    %vm3317 = vweird.f32 %v3293
    %vm3318 = vweird.f32 %v3312
    %vm3319 = vmor %vm3317, %vm3318
    %v3320 = vsel %vm3319, %v3312, %v3316
    %v3321 = vand.u32 2147483647, %v3293
    %vm3322 = vcmp.eq.f32.partialorder %v3321, 8.507059e+37
    %v3323 = vand.u32 %v3293, 2147483648
    %v3324 = vor.u32 1.1754944e-38, %v3323
    %v3325 = vsel %vm3322, %v3324, %v3320
    %v3326 = vmul.f32 %v3285, %v3325
    %v3327 = vrcp.pop %v3296
    %v3328 = vmul.f32 %v3296, %v3327
    %v3329 = vsub.f32 1.0, %v3328
    %v3330 = vmul.f32 %v3327, %v3329
    %v3331 = vadd.f32 %v3327, %v3330
    %vm3332 = vweird.f32 %v3296
    %vm3333 = vweird.f32 %v3327
    %vm3334 = vmor %vm3332, %vm3333
    %v3335 = vsel %vm3334, %v3327, %v3331
    %v3336 = vand.u32 2147483647, %v3296
    %vm3337 = vcmp.eq.f32.partialorder %v3336, 8.507059e+37
    %v3338 = vand.u32 %v3296, 2147483648
    %v3339 = vor.u32 1.1754944e-38, %v3338
    %v3340 = vsel %vm3337, %v3339, %v3335
    %v3341 = vmul.f32 %v3287, %v3340
    %3342 = vrot.lane.b32.xlu0 %v2781, 48
    %v3343 = vpop.permute.xlu0 %3342
    %3344 = vrot.lane.b32.xlu0 %v2784, 48
    %v3345 = vpop.permute.xlu0 %3344
    %3346 = vrot.lane.b32.xlu0 %v2787, 48
    %v3347 = vpop.permute.xlu0 %3346
    %v3352 = vsel %vm417, %v3311, 0
    %v3355 = vsel %vm417, %v3326, 0
    %v3358 = vsel %vm417, %v3341, 0
    %3360 = vmatpush.msra.mxu0 0.0
    %3361 = vmatpush.msra.mxu0 0.0
    %3362 = vmatpush.msra.mxu0 0.0
    %3363 = vmatpush.msra.mxu0 0.0
    %3364 = vmatpush.msra.mxu0 0.0
    %3365 = vmatpush.msra.mxu0 0.0
    %3366 = vmatpush.msra.mxu0 0.0
    %3367 = vmatpush.msra.mxu0 0.0
    %3368 = vmatpush.msra.mxu0 0.0
    %3369 = vmatpush.msra.mxu0 0.0
    %3370 = vmatpush.msra.mxu0 0.0
    %3371 = vmatpush.msra.mxu0 0.0
    %3372 = vmatpush.msra.mxu0 0.0
    %3373 = vmatpush.msra.mxu0 %v3347
    %3374 = vmatpush.msra.mxu0 %v3345
    %3375 = vmatpush.msra.mxu0 %v3343
    %3376 = vmatmul.f32.gmra.mxu0 %v3352
    %v3377 = vpop.f32.mrf.mxu0
    %v3378 = vadd.f32 0.0, %v3377
    %3379 = vmatmul.f32.gmra.mxu0 %v3355
    %v3380 = vpop.f32.mrf.mxu0
    %v3381 = vadd.f32 0.0, %v3380
    %3382 = vmatmul.f32.gmra.mxu0 %v3358
    %v3383 = vpop.f32.mrf.mxu0
    %v3384 = vadd.f32 0.0, %v3383
    %3385 = vdwg.mxu0
    %v3387 = vsel %vm372, %v3378, 0
    %v3390 = vsel %vm372, %v3381, 0
    %v3393 = vsel %vm372, %v3384, 0
    %3395 = vmatpush.msra.mxu0 0.0
    %3396 = vmatpush.msra.mxu0 0.0
    %3397 = vmatpush.msra.mxu0 0.0
    %3398 = vmatpush.msra.mxu0 0.0
    %3399 = vmatpush.msra.mxu0 0.0
    %3400 = vmatpush.msra.mxu0 0.0
    %3401 = vmatpush.msra.mxu0 0.0
    %3402 = vmatpush.msra.mxu0 0.0
    %3403 = vmatpush.msra.mxu0 0.0
    %3404 = vmatpush.msra.mxu0 0.0
    %3405 = vmatpush.msra.mxu0 0.0
    %3406 = vmatpush.msra.mxu0 0.0
    %3407 = vmatpush.msra.mxu0 0.0
    %3408 = vmatpush.msra.mxu0 0.0
    %3409 = vmatpush.msra.mxu0 0.0
    %3410 = vmatpush.msra.mxu0 %v2801
    %3411 = vmatmul.f32.gmra.mxu0 %v3387
    %v3412 = vpop.f32.mrf.mxu0
    %v3413 = vadd.f32 0.0, %v3412
    %3414 = vmatmul.f32.gmra.mxu0 %v3390
    %v3415 = vpop.f32.mrf.mxu0
    %v3416 = vadd.f32 0.0, %v3415
    %3417 = vmatmul.f32.gmra.mxu0 %v3393
    %v3418 = vpop.f32.mrf.mxu0
    %v3419 = vadd.f32 0.0, %v3418
    %3420 = vdwg.mxu0
    %v3421 = vadd.f32 %v3206, %v3413
    %v3422 = vadd.f32 %v3209, %v3416
    %v3423 = vadd.f32 %v3212, %v3419
    %3424 = vrot.lane.b32.xlu0 %v2781, 104
    %v3425 = vpop.permute.xlu0 %3424
    %3426 = vrot.lane.b32.xlu0 %v2784, 104
    %v3427 = vpop.permute.xlu0 %3426
    %3428 = vrot.lane.b32.xlu0 %v2787, 104
    %v3429 = vpop.permute.xlu0 %3428
    %3430 = vrot.lane.b32.xlu0 %v2781, 72
    %v3431 = vpop.permute.xlu0 %3430
    %3432 = vrot.lane.b32.xlu0 %v2784, 72
    %v3433 = vpop.permute.xlu0 %3432
    %3434 = vrot.lane.b32.xlu0 %v2787, 72
    %v3435 = vpop.permute.xlu0 %3434
    %v3436 = vsel %vm372, %v3425, 0
    %v3438 = vsel %vm372, %v3427, 0
    %v3440 = vsel %vm372, %v3429, 0
    %v3442 = vsel %vm372, %v3431, 0
    %v3444 = vsel %vm372, %v3433, 0
    %v3446 = vsel %vm372, %v3435, 0
    %3448 = vmatpush.xpose.msra.mxu0 0.0
    %3449 = vmatpush.xpose.msra.mxu0 0.0
    %3450 = vmatpush.xpose.msra.mxu0 0.0
    %3451 = vmatpush.xpose.msra.mxu0 0.0
    %3452 = vmatpush.xpose.msra.mxu0 0.0
    %3453 = vmatpush.xpose.msra.mxu0 0.0
    %3454 = vmatpush.xpose.msra.mxu0 0.0
    %3455 = vmatpush.xpose.msra.mxu0 0.0
    %3456 = vmatpush.xpose.msra.mxu0 0.0
    %3457 = vmatpush.xpose.msra.mxu0 0.0
    %3458 = vmatpush.xpose.msra.mxu0 0.0
    %3459 = vmatpush.xpose.msra.mxu0 0.0
    %3460 = vmatpush.xpose.msra.mxu0 0.0
    %3461 = vmatpush.xpose.msra.mxu0 %v3446
    %3462 = vmatpush.xpose.msra.mxu0 %v3444
    %3463 = vmatpush.xpose.msra.mxu0 %v3442
    %3464 = vmatmul.f32.gmra.mxu0 %v3436
    %v3465 = vpop.f32.mrf.mxu0
    %v3466 = vadd.f32 0.0, %v3465
    %3467 = vmatmul.f32.gmra.mxu0 %v3438
    %v3468 = vpop.f32.mrf.mxu0
    %v3469 = vadd.f32 0.0, %v3468
    %3470 = vmatmul.f32.gmra.mxu0 %v3440
    %v3471 = vpop.f32.mrf.mxu0
    %v3472 = vadd.f32 0.0, %v3471
    %3473 = vdwg.mxu0
    %v3474 = vmul.f32 %v3466, 0.35355338
    %v3475 = vmul.f32 %v3469, 0.35355338
    %v3476 = vmul.f32 %v3472, 0.35355338
    %v3477 = vsel %vm65, %v3474, -1e+30
    %v3478 = vsel %vm65, %v3475, -1e+30
    %v3479 = vsel %vm65, %v3476, -1e+30
    %v3480 = vsel %vm417, %v3477, -inf
    %3481 = vmax.xlane.f32.xlu0 %v3480
    %v3482 = vpop.xlane.xlu0 %3481
    %v3483 = vsel %vm417, %v3478, -inf
    %3484 = vmax.xlane.f32.xlu0 %v3483
    %v3485 = vpop.xlane.xlu0 %3484
    %v3486 = vsel %vm417, %v3479, -inf
    %3487 = vmax.xlane.f32.xlu0 %v3486
    %v3488 = vpop.xlane.xlu0 %3487
    %v3489 = vsub.f32 %v3477, %v3482
    %v3490 = vsub.f32 %v3478, %v3485
    %v3491 = vsub.f32 %v3479, %v3488
    %v3492 = vmul.f32 %v3489, 1.442695
    %v3493 = vpow.pop %v3492
    %v3494 = vmul.f32 %v3490, 1.442695
    %v3495 = vpow.pop %v3494
    %v3496 = vmul.f32 %v3491, 1.442695
    %v3497 = vpow.pop %v3496
    %v3498 = vsel %vm417, %v3493, 0.0
    %3499 = vadd.xlane.f32.xlu0 %v3498
    %v3500 = vpop.xlane.xlu0 %3499
    %v3501 = vsel %vm417, %v3495, 0.0
    %3502 = vadd.xlane.f32.xlu0 %v3501
    %v3503 = vpop.xlane.xlu0 %3502
    %v3504 = vsel %vm417, %v3497, 0.0
    %3505 = vadd.xlane.f32.xlu0 %v3504
    %v3506 = vpop.xlane.xlu0 %3505
    %v3507 = vrcp.pop %v3500
    %v3508 = vmul.f32 %v3500, %v3507
    %v3509 = vsub.f32 1.0, %v3508
    %v3510 = vmul.f32 %v3507, %v3509
    %v3511 = vadd.f32 %v3507, %v3510
    %vm3512 = vweird.f32 %v3500
    %vm3513 = vweird.f32 %v3507
    %vm3514 = vmor %vm3512, %vm3513
    %v3515 = vsel %vm3514, %v3507, %v3511
    %v3516 = vand.u32 2147483647, %v3500
    %vm3517 = vcmp.eq.f32.partialorder %v3516, 8.507059e+37
    %v3518 = vand.u32 %v3500, 2147483648
    %v3519 = vor.u32 1.1754944e-38, %v3518
    %v3520 = vsel %vm3517, %v3519, %v3515
    %v3521 = vmul.f32 %v3493, %v3520
    %v3522 = vrcp.pop %v3503
    %v3523 = vmul.f32 %v3503, %v3522
    %v3524 = vsub.f32 1.0, %v3523
    %v3525 = vmul.f32 %v3522, %v3524
    %v3526 = vadd.f32 %v3522, %v3525
    %vm3527 = vweird.f32 %v3503
    %vm3528 = vweird.f32 %v3522
    %vm3529 = vmor %vm3527, %vm3528
    %v3530 = vsel %vm3529, %v3522, %v3526
    %v3531 = vand.u32 2147483647, %v3503
    %vm3532 = vcmp.eq.f32.partialorder %v3531, 8.507059e+37
    %v3533 = vand.u32 %v3503, 2147483648
    %v3534 = vor.u32 1.1754944e-38, %v3533
    %v3535 = vsel %vm3532, %v3534, %v3530
    %v3536 = vmul.f32 %v3495, %v3535
    %v3537 = vrcp.pop %v3506
    %v3538 = vmul.f32 %v3506, %v3537
    %v3539 = vsub.f32 1.0, %v3538
    %v3540 = vmul.f32 %v3537, %v3539
    %v3541 = vadd.f32 %v3537, %v3540
    %vm3542 = vweird.f32 %v3506
    %vm3543 = vweird.f32 %v3537
    %vm3544 = vmor %vm3542, %vm3543
    %v3545 = vsel %vm3544, %v3537, %v3541
    %v3546 = vand.u32 2147483647, %v3506
    %vm3547 = vcmp.eq.f32.partialorder %v3546, 8.507059e+37
    %v3548 = vand.u32 %v3506, 2147483648
    %v3549 = vor.u32 1.1754944e-38, %v3548
    %v3550 = vsel %vm3547, %v3549, %v3545
    %v3551 = vmul.f32 %v3497, %v3550
    %3552 = vrot.lane.b32.xlu0 %v2781, 40
    %v3553 = vpop.permute.xlu0 %3552
    %3554 = vrot.lane.b32.xlu0 %v2784, 40
    %v3555 = vpop.permute.xlu0 %3554
    %3556 = vrot.lane.b32.xlu0 %v2787, 40
    %v3557 = vpop.permute.xlu0 %3556
    %v3562 = vsel %vm417, %v3521, 0
    %v3565 = vsel %vm417, %v3536, 0
    %v3568 = vsel %vm417, %v3551, 0
    %3570 = vmatpush.msra.mxu0 0.0
    %3571 = vmatpush.msra.mxu0 0.0
    %3572 = vmatpush.msra.mxu0 0.0
    %3573 = vmatpush.msra.mxu0 0.0
    %3574 = vmatpush.msra.mxu0 0.0
    %3575 = vmatpush.msra.mxu0 0.0
    %3576 = vmatpush.msra.mxu0 0.0
    %3577 = vmatpush.msra.mxu0 0.0
    %3578 = vmatpush.msra.mxu0 0.0
    %3579 = vmatpush.msra.mxu0 0.0
    %3580 = vmatpush.msra.mxu0 0.0
    %3581 = vmatpush.msra.mxu0 0.0
    %3582 = vmatpush.msra.mxu0 0.0
    %3583 = vmatpush.msra.mxu0 %v3557
    %3584 = vmatpush.msra.mxu0 %v3555
    %3585 = vmatpush.msra.mxu0 %v3553
    %3586 = vmatmul.f32.gmra.mxu0 %v3562
    %v3587 = vpop.f32.mrf.mxu0
    %v3588 = vadd.f32 0.0, %v3587
    %3589 = vmatmul.f32.gmra.mxu0 %v3565
    %v3590 = vpop.f32.mrf.mxu0
    %v3591 = vadd.f32 0.0, %v3590
    %3592 = vmatmul.f32.gmra.mxu0 %v3568
    %v3593 = vpop.f32.mrf.mxu0
    %v3594 = vadd.f32 0.0, %v3593
    %3595 = vdwg.mxu0
    %v3597 = vsel %vm372, %v3588, 0
    %v3600 = vsel %vm372, %v3591, 0
    %v3603 = vsel %vm372, %v3594, 0
    %3605 = vmatpush.msra.mxu0 0.0
    %3606 = vmatpush.msra.mxu0 0.0
    %3607 = vmatpush.msra.mxu0 0.0
    %3608 = vmatpush.msra.mxu0 0.0
    %3609 = vmatpush.msra.mxu0 0.0
    %3610 = vmatpush.msra.mxu0 0.0
    %3611 = vmatpush.msra.mxu0 0.0
    %3612 = vmatpush.msra.mxu0 0.0
    %3613 = vmatpush.msra.mxu0 0.0
    %3614 = vmatpush.msra.mxu0 0.0
    %3615 = vmatpush.msra.mxu0 0.0
    %3616 = vmatpush.msra.mxu0 0.0
    %3617 = vmatpush.msra.mxu0 0.0
    %3618 = vmatpush.msra.mxu0 0.0
    %3619 = vmatpush.msra.mxu0 0.0
    %3620 = vmatpush.msra.mxu0 %v2802
    %3621 = vmatmul.f32.gmra.mxu0 %v3597
    %v3622 = vpop.f32.mrf.mxu0
    %v3623 = vadd.f32 0.0, %v3622
    %3624 = vmatmul.f32.gmra.mxu0 %v3600
    %v3625 = vpop.f32.mrf.mxu0
    %v3626 = vadd.f32 0.0, %v3625
    %3627 = vmatmul.f32.gmra.mxu0 %v3603
    %v3628 = vpop.f32.mrf.mxu0
    %v3629 = vadd.f32 0.0, %v3628
    %3630 = vdwg.mxu0
    %v3631 = vadd.f32 %v3421, %v3623
    %v3632 = vadd.f32 %v3422, %v3626
    %v3633 = vadd.f32 %v3423, %v3629
    %3637 = vrot.lane.b32.xlu0 %v2790, 96
    %v3638 = vpop.permute.xlu0 %3637
    %3639 = vrot.lane.b32.xlu0 %v2793, 96
    %v3640 = vpop.permute.xlu0 %3639
    %3641 = vrot.lane.b32.xlu0 %v2796, 96
    %v3642 = vpop.permute.xlu0 %3641
    %v3643 = vsel %vm372, %v2790, 0
    %v3645 = vsel %vm372, %v2793, 0
    %v3647 = vsel %vm372, %v2796, 0
    %v3649 = vsel %vm372, %v3638, 0
    %v3651 = vsel %vm372, %v3640, 0
    %v3653 = vsel %vm372, %v3642, 0
    %3655 = vmatpush.xpose.msra.mxu0 0.0
    %3656 = vmatpush.xpose.msra.mxu0 0.0
    %3657 = vmatpush.xpose.msra.mxu0 0.0
    %3658 = vmatpush.xpose.msra.mxu0 0.0
    %3659 = vmatpush.xpose.msra.mxu0 0.0
    %3660 = vmatpush.xpose.msra.mxu0 0.0
    %3661 = vmatpush.xpose.msra.mxu0 0.0
    %3662 = vmatpush.xpose.msra.mxu0 0.0
    %3663 = vmatpush.xpose.msra.mxu0 0.0
    %3664 = vmatpush.xpose.msra.mxu0 0.0
    %3665 = vmatpush.xpose.msra.mxu0 0.0
    %3666 = vmatpush.xpose.msra.mxu0 0.0
    %3667 = vmatpush.xpose.msra.mxu0 0.0
    %3668 = vmatpush.xpose.msra.mxu0 %v3653
    %3669 = vmatpush.xpose.msra.mxu0 %v3651
    %3670 = vmatpush.xpose.msra.mxu0 %v3649
    %3671 = vmatmul.f32.gmra.mxu0 %v3643
    %v3672 = vpop.f32.mrf.mxu0
    %v3673 = vadd.f32 0.0, %v3672
    %3674 = vmatmul.f32.gmra.mxu0 %v3645
    %v3675 = vpop.f32.mrf.mxu0
    %v3676 = vadd.f32 0.0, %v3675
    %3677 = vmatmul.f32.gmra.mxu0 %v3647
    %v3678 = vpop.f32.mrf.mxu0
    %v3679 = vadd.f32 0.0, %v3678
    %3680 = vdwg.mxu0
    %v3681 = vmul.f32 %v3673, 0.35355338
    %v3682 = vmul.f32 %v3676, 0.35355338
    %v3683 = vmul.f32 %v3679, 0.35355338
    %v3684 = vsel %vm65, %v3681, -1e+30
    %v3685 = vsel %vm65, %v3682, -1e+30
    %v3686 = vsel %vm65, %v3683, -1e+30
    %v3687 = vsel %vm417, %v3684, -inf
    %3688 = vmax.xlane.f32.xlu0 %v3687
    %v3689 = vpop.xlane.xlu0 %3688
    %v3690 = vsel %vm417, %v3685, -inf
    %3691 = vmax.xlane.f32.xlu0 %v3690
    %v3692 = vpop.xlane.xlu0 %3691
    %v3693 = vsel %vm417, %v3686, -inf
    %3694 = vmax.xlane.f32.xlu0 %v3693
    %v3695 = vpop.xlane.xlu0 %3694
    %v3696 = vsub.f32 %v3684, %v3689
    %v3697 = vsub.f32 %v3685, %v3692
    %v3698 = vsub.f32 %v3686, %v3695
    %v3699 = vmul.f32 %v3696, 1.442695
    %v3700 = vpow.pop %v3699
    %v3701 = vmul.f32 %v3697, 1.442695
    %v3702 = vpow.pop %v3701
    %v3703 = vmul.f32 %v3698, 1.442695
    %v3704 = vpow.pop %v3703
    %v3705 = vsel %vm417, %v3700, 0.0
    %3706 = vadd.xlane.f32.xlu0 %v3705
    %v3707 = vpop.xlane.xlu0 %3706
    %v3708 = vsel %vm417, %v3702, 0.0
    %3709 = vadd.xlane.f32.xlu0 %v3708
    %v3710 = vpop.xlane.xlu0 %3709
    %v3711 = vsel %vm417, %v3704, 0.0
    %3712 = vadd.xlane.f32.xlu0 %v3711
    %v3713 = vpop.xlane.xlu0 %3712
    %v3714 = vrcp.pop %v3707
    %v3715 = vmul.f32 %v3707, %v3714
    %v3716 = vsub.f32 1.0, %v3715
    %v3717 = vmul.f32 %v3714, %v3716
    %v3718 = vadd.f32 %v3714, %v3717
    %vm3719 = vweird.f32 %v3707
    %vm3720 = vweird.f32 %v3714
    %vm3721 = vmor %vm3719, %vm3720
    %v3722 = vsel %vm3721, %v3714, %v3718
    %v3723 = vand.u32 2147483647, %v3707
    %vm3724 = vcmp.eq.f32.partialorder %v3723, 8.507059e+37
    %v3725 = vand.u32 %v3707, 2147483648
    %v3726 = vor.u32 1.1754944e-38, %v3725
    %v3727 = vsel %vm3724, %v3726, %v3722
    %v3728 = vmul.f32 %v3700, %v3727
    %v3729 = vrcp.pop %v3710
    %v3730 = vmul.f32 %v3710, %v3729
    %v3731 = vsub.f32 1.0, %v3730
    %v3732 = vmul.f32 %v3729, %v3731
    %v3733 = vadd.f32 %v3729, %v3732
    %vm3734 = vweird.f32 %v3710
    %vm3735 = vweird.f32 %v3729
    %vm3736 = vmor %vm3734, %vm3735
    %v3737 = vsel %vm3736, %v3729, %v3733
    %v3738 = vand.u32 2147483647, %v3710
    %vm3739 = vcmp.eq.f32.partialorder %v3738, 8.507059e+37
    %v3740 = vand.u32 %v3710, 2147483648
    %v3741 = vor.u32 1.1754944e-38, %v3740
    %v3742 = vsel %vm3739, %v3741, %v3737
    %v3743 = vmul.f32 %v3702, %v3742
    %v3744 = vrcp.pop %v3713
    %v3745 = vmul.f32 %v3713, %v3744
    %v3746 = vsub.f32 1.0, %v3745
    %v3747 = vmul.f32 %v3744, %v3746
    %v3748 = vadd.f32 %v3744, %v3747
    %vm3749 = vweird.f32 %v3713
    %vm3750 = vweird.f32 %v3744
    %vm3751 = vmor %vm3749, %vm3750
    %v3752 = vsel %vm3751, %v3744, %v3748
    %v3753 = vand.u32 2147483647, %v3713
    %vm3754 = vcmp.eq.f32.partialorder %v3753, 8.507059e+37
    %v3755 = vand.u32 %v3713, 2147483648
    %v3756 = vor.u32 1.1754944e-38, %v3755
    %v3757 = vsel %vm3754, %v3756, %v3752
    %v3758 = vmul.f32 %v3704, %v3757
    %3759 = vrot.lane.b32.xlu0 %v2790, 64
    %v3760 = vpop.permute.xlu0 %3759
    %3761 = vrot.lane.b32.xlu0 %v2793, 64
    %v3762 = vpop.permute.xlu0 %3761
    %3763 = vrot.lane.b32.xlu0 %v2796, 64
    %v3764 = vpop.permute.xlu0 %3763
    %v3769 = vsel %vm417, %v3728, 0
    %v3772 = vsel %vm417, %v3743, 0
    %v3775 = vsel %vm417, %v3758, 0
    %3777 = vmatpush.msra.mxu0 0.0
    %3778 = vmatpush.msra.mxu0 0.0
    %3779 = vmatpush.msra.mxu0 0.0
    %3780 = vmatpush.msra.mxu0 0.0
    %3781 = vmatpush.msra.mxu0 0.0
    %3782 = vmatpush.msra.mxu0 0.0
    %3783 = vmatpush.msra.mxu0 0.0
    %3784 = vmatpush.msra.mxu0 0.0
    %3785 = vmatpush.msra.mxu0 0.0
    %3786 = vmatpush.msra.mxu0 0.0
    %3787 = vmatpush.msra.mxu0 0.0
    %3788 = vmatpush.msra.mxu0 0.0
    %3789 = vmatpush.msra.mxu0 0.0
    %3790 = vmatpush.msra.mxu0 %v3764
    %3791 = vmatpush.msra.mxu0 %v3762
    %3792 = vmatpush.msra.mxu0 %v3760
    %3793 = vmatmul.f32.gmra.mxu0 %v3769
    %v3794 = vpop.f32.mrf.mxu0
    %v3795 = vadd.f32 0.0, %v3794
    %3796 = vmatmul.f32.gmra.mxu0 %v3772
    %v3797 = vpop.f32.mrf.mxu0
    %v3798 = vadd.f32 0.0, %v3797
    %3799 = vmatmul.f32.gmra.mxu0 %v3775
    %v3800 = vpop.f32.mrf.mxu0
    %v3801 = vadd.f32 0.0, %v3800
    %3802 = vdwg.mxu0
    %3803 = vrot.lane.b32.xlu0 %v2790, 120
    %v3804 = vpop.permute.xlu0 %3803
    %3805 = vrot.lane.b32.xlu0 %v2793, 120
    %v3806 = vpop.permute.xlu0 %3805
    %3807 = vrot.lane.b32.xlu0 %v2796, 120
    %v3808 = vpop.permute.xlu0 %3807
    %3809 = vrot.lane.b32.xlu0 %v2790, 88
    %v3810 = vpop.permute.xlu0 %3809
    %3811 = vrot.lane.b32.xlu0 %v2793, 88
    %v3812 = vpop.permute.xlu0 %3811
    %3813 = vrot.lane.b32.xlu0 %v2796, 88
    %v3814 = vpop.permute.xlu0 %3813
    %v3815 = vsel %vm372, %v3804, 0
    %v3817 = vsel %vm372, %v3806, 0
    %v3819 = vsel %vm372, %v3808, 0
    %v3821 = vsel %vm372, %v3810, 0
    %v3823 = vsel %vm372, %v3812, 0
    %v3825 = vsel %vm372, %v3814, 0
    %3827 = vmatpush.xpose.msra.mxu0 0.0
    %3828 = vmatpush.xpose.msra.mxu0 0.0
    %3829 = vmatpush.xpose.msra.mxu0 0.0
    %3830 = vmatpush.xpose.msra.mxu0 0.0
    %3831 = vmatpush.xpose.msra.mxu0 0.0
    %3832 = vmatpush.xpose.msra.mxu0 0.0
    %3833 = vmatpush.xpose.msra.mxu0 0.0
    %3834 = vmatpush.xpose.msra.mxu0 0.0
    %3835 = vmatpush.xpose.msra.mxu0 0.0
    %3836 = vmatpush.xpose.msra.mxu0 0.0
    %3837 = vmatpush.xpose.msra.mxu0 0.0
    %3838 = vmatpush.xpose.msra.mxu0 0.0
    %3839 = vmatpush.xpose.msra.mxu0 0.0
    %3840 = vmatpush.xpose.msra.mxu0 %v3825
    %3841 = vmatpush.xpose.msra.mxu0 %v3823
    %3842 = vmatpush.xpose.msra.mxu0 %v3821
    %3843 = vmatmul.f32.gmra.mxu0 %v3815
    %v3844 = vpop.f32.mrf.mxu0
    %v3845 = vadd.f32 0.0, %v3844
    %3846 = vmatmul.f32.gmra.mxu0 %v3817
    %v3847 = vpop.f32.mrf.mxu0
    %v3848 = vadd.f32 0.0, %v3847
    %3849 = vmatmul.f32.gmra.mxu0 %v3819
    %v3850 = vpop.f32.mrf.mxu0
    %v3851 = vadd.f32 0.0, %v3850
    %3852 = vdwg.mxu0
    %v3853 = vmul.f32 %v3845, 0.35355338
    %v3854 = vmul.f32 %v3848, 0.35355338
    %v3855 = vmul.f32 %v3851, 0.35355338
    %v3856 = vsel %vm65, %v3853, -1e+30
    %v3857 = vsel %vm65, %v3854, -1e+30
    %v3858 = vsel %vm65, %v3855, -1e+30
    %v3859 = vsel %vm417, %v3856, -inf
    %3860 = vmax.xlane.f32.xlu0 %v3859
    %v3861 = vpop.xlane.xlu0 %3860
    %v3862 = vsel %vm417, %v3857, -inf
    %3863 = vmax.xlane.f32.xlu0 %v3862
    %v3864 = vpop.xlane.xlu0 %3863
    %v3865 = vsel %vm417, %v3858, -inf
    %3866 = vmax.xlane.f32.xlu0 %v3865
    %v3867 = vpop.xlane.xlu0 %3866
    %v3868 = vsub.f32 %v3856, %v3861
    %v3869 = vsub.f32 %v3857, %v3864
    %v3870 = vsub.f32 %v3858, %v3867
    %v3871 = vmul.f32 %v3868, 1.442695
    %v3872 = vpow.pop %v3871
    %v3873 = vmul.f32 %v3869, 1.442695
    %v3874 = vpow.pop %v3873
    %v3875 = vmul.f32 %v3870, 1.442695
    %v3876 = vpow.pop %v3875
    %v3877 = vsel %vm417, %v3872, 0.0
    %3878 = vadd.xlane.f32.xlu0 %v3877
    %v3879 = vpop.xlane.xlu0 %3878
    %v3880 = vsel %vm417, %v3874, 0.0
    %3881 = vadd.xlane.f32.xlu0 %v3880
    %v3882 = vpop.xlane.xlu0 %3881
    %v3883 = vsel %vm417, %v3876, 0.0
    %3884 = vadd.xlane.f32.xlu0 %v3883
    %v3885 = vpop.xlane.xlu0 %3884
    %v3886 = vrcp.pop %v3879
    %v3887 = vmul.f32 %v3879, %v3886
    %v3888 = vsub.f32 1.0, %v3887
    %v3889 = vmul.f32 %v3886, %v3888
    %v3890 = vadd.f32 %v3886, %v3889
    %vm3891 = vweird.f32 %v3879
    %vm3892 = vweird.f32 %v3886
    %vm3893 = vmor %vm3891, %vm3892
    %v3894 = vsel %vm3893, %v3886, %v3890
    %v3895 = vand.u32 2147483647, %v3879
    %vm3896 = vcmp.eq.f32.partialorder %v3895, 8.507059e+37
    %v3897 = vand.u32 %v3879, 2147483648
    %v3898 = vor.u32 1.1754944e-38, %v3897
    %v3899 = vsel %vm3896, %v3898, %v3894
    %v3900 = vmul.f32 %v3872, %v3899
    %v3901 = vrcp.pop %v3882
    %v3902 = vmul.f32 %v3882, %v3901
    %v3903 = vsub.f32 1.0, %v3902
    %v3904 = vmul.f32 %v3901, %v3903
    %v3905 = vadd.f32 %v3901, %v3904
    %vm3906 = vweird.f32 %v3882
    %vm3907 = vweird.f32 %v3901
    %vm3908 = vmor %vm3906, %vm3907
    %v3909 = vsel %vm3908, %v3901, %v3905
    %v3910 = vand.u32 2147483647, %v3882
    %vm3911 = vcmp.eq.f32.partialorder %v3910, 8.507059e+37
    %v3912 = vand.u32 %v3882, 2147483648
    %v3913 = vor.u32 1.1754944e-38, %v3912
    %v3914 = vsel %vm3911, %v3913, %v3909
    %v3915 = vmul.f32 %v3874, %v3914
    %v3916 = vrcp.pop %v3885
    %v3917 = vmul.f32 %v3885, %v3916
    %v3918 = vsub.f32 1.0, %v3917
    %v3919 = vmul.f32 %v3916, %v3918
    %v3920 = vadd.f32 %v3916, %v3919
    %vm3921 = vweird.f32 %v3885
    %vm3922 = vweird.f32 %v3916
    %vm3923 = vmor %vm3921, %vm3922
    %v3924 = vsel %vm3923, %v3916, %v3920
    %v3925 = vand.u32 2147483647, %v3885
    %vm3926 = vcmp.eq.f32.partialorder %v3925, 8.507059e+37
    %v3927 = vand.u32 %v3885, 2147483648
    %v3928 = vor.u32 1.1754944e-38, %v3927
    %v3929 = vsel %vm3926, %v3928, %v3924
    %v3930 = vmul.f32 %v3876, %v3929
    %3931 = vrot.lane.b32.xlu0 %v2790, 56
    %v3932 = vpop.permute.xlu0 %3931
    %3933 = vrot.lane.b32.xlu0 %v2793, 56
    %v3934 = vpop.permute.xlu0 %3933
    %3935 = vrot.lane.b32.xlu0 %v2796, 56
    %v3936 = vpop.permute.xlu0 %3935
    %v3941 = vsel %vm417, %v3900, 0
    %v3944 = vsel %vm417, %v3915, 0
    %v3947 = vsel %vm417, %v3930, 0
    %3949 = vmatpush.msra.mxu0 0.0
    %3950 = vmatpush.msra.mxu0 0.0
    %3951 = vmatpush.msra.mxu0 0.0
    %3952 = vmatpush.msra.mxu0 0.0
    %3953 = vmatpush.msra.mxu0 0.0
    %3954 = vmatpush.msra.mxu0 0.0
    %3955 = vmatpush.msra.mxu0 0.0
    %3956 = vmatpush.msra.mxu0 0.0
    %3957 = vmatpush.msra.mxu0 0.0
    %3958 = vmatpush.msra.mxu0 0.0
    %3959 = vmatpush.msra.mxu0 0.0
    %3960 = vmatpush.msra.mxu0 0.0
    %3961 = vmatpush.msra.mxu0 0.0
    %3962 = vmatpush.msra.mxu0 %v3936
    %3963 = vmatpush.msra.mxu0 %v3934
    %3964 = vmatpush.msra.mxu0 %v3932
    %3965 = vmatmul.f32.gmra.mxu0 %v3941
    %v3966 = vpop.f32.mrf.mxu0
    %v3967 = vadd.f32 0.0, %v3966
    %3968 = vmatmul.f32.gmra.mxu0 %v3944
    %v3969 = vpop.f32.mrf.mxu0
    %v3970 = vadd.f32 0.0, %v3969
    %3971 = vmatmul.f32.gmra.mxu0 %v3947
    %v3972 = vpop.f32.mrf.mxu0
    %v3973 = vadd.f32 0.0, %v3972
    %3974 = vdwg.mxu0
    %v3976 = vsel %vm372, %v3967, 0
    %v3979 = vsel %vm372, %v3970, 0
    %v3982 = vsel %vm372, %v3973, 0
    %3984 = vmatpush.msra.mxu0 0.0
    %3985 = vmatpush.msra.mxu0 0.0
    %3986 = vmatpush.msra.mxu0 0.0
    %3987 = vmatpush.msra.mxu0 0.0
    %3988 = vmatpush.msra.mxu0 0.0
    %3989 = vmatpush.msra.mxu0 0.0
    %3990 = vmatpush.msra.mxu0 0.0
    %3991 = vmatpush.msra.mxu0 0.0
    %3992 = vmatpush.msra.mxu0 0.0
    %3993 = vmatpush.msra.mxu0 0.0
    %3994 = vmatpush.msra.mxu0 0.0
    %3995 = vmatpush.msra.mxu0 0.0
    %3996 = vmatpush.msra.mxu0 0.0
    %3997 = vmatpush.msra.mxu0 0.0
    %3998 = vmatpush.msra.mxu0 0.0
    %3999 = vmatpush.msra.mxu0 %v2800
    %4000 = vmatmul.f32.gmra.mxu0 %v3976
    %v4001 = vpop.f32.mrf.mxu0
    %v4002 = vadd.f32 0.0, %v4001
    %4003 = vmatmul.f32.gmra.mxu0 %v3979
    %v4004 = vpop.f32.mrf.mxu0
    %v4005 = vadd.f32 0.0, %v4004
    %4006 = vmatmul.f32.gmra.mxu0 %v3982
    %v4007 = vpop.f32.mrf.mxu0
    %v4008 = vadd.f32 0.0, %v4007
    %4009 = vdwg.mxu0
    %v4011 = vsel %vm372, %v3795, 0
    %v4014 = vsel %vm372, %v3798, 0
    %v4017 = vsel %vm372, %v3801, 0
    %4019 = vmatpush.msra.mxu0 0.0
    %4020 = vmatpush.msra.mxu0 0.0
    %4021 = vmatpush.msra.mxu0 0.0
    %4022 = vmatpush.msra.mxu0 0.0
    %4023 = vmatpush.msra.mxu0 0.0
    %4024 = vmatpush.msra.mxu0 0.0
    %4025 = vmatpush.msra.mxu0 0.0
    %4026 = vmatpush.msra.mxu0 0.0
    %4027 = vmatpush.msra.mxu0 0.0
    %4028 = vmatpush.msra.mxu0 0.0
    %4029 = vmatpush.msra.mxu0 0.0
    %4030 = vmatpush.msra.mxu0 0.0
    %4031 = vmatpush.msra.mxu0 0.0
    %4032 = vmatpush.msra.mxu0 0.0
    %4033 = vmatpush.msra.mxu0 0.0
    %4034 = vmatpush.msra.mxu0 %v2799
    %4035 = vmatmul.f32.gmra.mxu0 %v4011
    %v4036 = vpop.f32.mrf.mxu0
    %v4037 = vadd.f32 %v4002, %v4036
    %4038 = vmatmul.f32.gmra.mxu0 %v4014
    %v4039 = vpop.f32.mrf.mxu0
    %v4040 = vadd.f32 %v4005, %v4039
    %4041 = vmatmul.f32.gmra.mxu0 %v4017
    %v4042 = vpop.f32.mrf.mxu0
    %v4043 = vadd.f32 %v4008, %v4042
    %4044 = vdwg.mxu0
    %4045 = vrot.lane.b32.xlu0 %v2790, 112
    %v4046 = vpop.permute.xlu0 %4045
    %4047 = vrot.lane.b32.xlu0 %v2793, 112
    %v4048 = vpop.permute.xlu0 %4047
    %4049 = vrot.lane.b32.xlu0 %v2796, 112
    %v4050 = vpop.permute.xlu0 %4049
    %4051 = vrot.lane.b32.xlu0 %v2790, 80
    %v4052 = vpop.permute.xlu0 %4051
    %4053 = vrot.lane.b32.xlu0 %v2793, 80
    %v4054 = vpop.permute.xlu0 %4053
    %4055 = vrot.lane.b32.xlu0 %v2796, 80
    %v4056 = vpop.permute.xlu0 %4055
    %v4057 = vsel %vm372, %v4046, 0
    %v4059 = vsel %vm372, %v4048, 0
    %v4061 = vsel %vm372, %v4050, 0
    %v4063 = vsel %vm372, %v4052, 0
    %v4065 = vsel %vm372, %v4054, 0
    %v4067 = vsel %vm372, %v4056, 0
    %4069 = vmatpush.xpose.msra.mxu0 0.0
    %4070 = vmatpush.xpose.msra.mxu0 0.0
    %4071 = vmatpush.xpose.msra.mxu0 0.0
    %4072 = vmatpush.xpose.msra.mxu0 0.0
    %4073 = vmatpush.xpose.msra.mxu0 0.0
    %4074 = vmatpush.xpose.msra.mxu0 0.0
    %4075 = vmatpush.xpose.msra.mxu0 0.0
    %4076 = vmatpush.xpose.msra.mxu0 0.0
    %4077 = vmatpush.xpose.msra.mxu0 0.0
    %4078 = vmatpush.xpose.msra.mxu0 0.0
    %4079 = vmatpush.xpose.msra.mxu0 0.0
    %4080 = vmatpush.xpose.msra.mxu0 0.0
    %4081 = vmatpush.xpose.msra.mxu0 0.0
    %4082 = vmatpush.xpose.msra.mxu0 %v4067
    %4083 = vmatpush.xpose.msra.mxu0 %v4065
    %4084 = vmatpush.xpose.msra.mxu0 %v4063
    %4085 = vmatmul.f32.gmra.mxu0 %v4057
    %v4086 = vpop.f32.mrf.mxu0
    %v4087 = vadd.f32 0.0, %v4086
    %4088 = vmatmul.f32.gmra.mxu0 %v4059
    %v4089 = vpop.f32.mrf.mxu0
    %v4090 = vadd.f32 0.0, %v4089
    %4091 = vmatmul.f32.gmra.mxu0 %v4061
    %v4092 = vpop.f32.mrf.mxu0
    %v4093 = vadd.f32 0.0, %v4092
    %4094 = vdwg.mxu0
    %v4095 = vmul.f32 %v4087, 0.35355338
    %v4096 = vmul.f32 %v4090, 0.35355338
    %v4097 = vmul.f32 %v4093, 0.35355338
    %v4098 = vsel %vm65, %v4095, -1e+30
    %v4099 = vsel %vm65, %v4096, -1e+30
    %v4100 = vsel %vm65, %v4097, -1e+30
    %v4101 = vsel %vm417, %v4098, -inf
    %4102 = vmax.xlane.f32.xlu0 %v4101
    %v4103 = vpop.xlane.xlu0 %4102
    %v4104 = vsel %vm417, %v4099, -inf
    %4105 = vmax.xlane.f32.xlu0 %v4104
    %v4106 = vpop.xlane.xlu0 %4105
    %v4107 = vsel %vm417, %v4100, -inf
    %4108 = vmax.xlane.f32.xlu0 %v4107
    %v4109 = vpop.xlane.xlu0 %4108
    %v4110 = vsub.f32 %v4098, %v4103
    %v4111 = vsub.f32 %v4099, %v4106
    %v4112 = vsub.f32 %v4100, %v4109
    %v4113 = vmul.f32 %v4110, 1.442695
    %v4114 = vpow.pop %v4113
    %v4115 = vmul.f32 %v4111, 1.442695
    %v4116 = vpow.pop %v4115
    %v4117 = vmul.f32 %v4112, 1.442695
    %v4118 = vpow.pop %v4117
    %v4119 = vsel %vm417, %v4114, 0.0
    %4120 = vadd.xlane.f32.xlu0 %v4119
    %v4121 = vpop.xlane.xlu0 %4120
    %v4122 = vsel %vm417, %v4116, 0.0
    %4123 = vadd.xlane.f32.xlu0 %v4122
    %v4124 = vpop.xlane.xlu0 %4123
    %v4125 = vsel %vm417, %v4118, 0.0
    %4126 = vadd.xlane.f32.xlu0 %v4125
    %v4127 = vpop.xlane.xlu0 %4126
    %v4128 = vrcp.pop %v4121
    %v4129 = vmul.f32 %v4121, %v4128
    %v4130 = vsub.f32 1.0, %v4129
    %v4131 = vmul.f32 %v4128, %v4130
    %v4132 = vadd.f32 %v4128, %v4131
    %vm4133 = vweird.f32 %v4121
    %vm4134 = vweird.f32 %v4128
    %vm4135 = vmor %vm4133, %vm4134
    %v4136 = vsel %vm4135, %v4128, %v4132
    %v4137 = vand.u32 2147483647, %v4121
    %vm4138 = vcmp.eq.f32.partialorder %v4137, 8.507059e+37
    %v4139 = vand.u32 %v4121, 2147483648
    %v4140 = vor.u32 1.1754944e-38, %v4139
    %v4141 = vsel %vm4138, %v4140, %v4136
    %v4142 = vmul.f32 %v4114, %v4141
    %v4143 = vrcp.pop %v4124
    %v4144 = vmul.f32 %v4124, %v4143
    %v4145 = vsub.f32 1.0, %v4144
    %v4146 = vmul.f32 %v4143, %v4145
    %v4147 = vadd.f32 %v4143, %v4146
    %vm4148 = vweird.f32 %v4124
    %vm4149 = vweird.f32 %v4143
    %vm4150 = vmor %vm4148, %vm4149
    %v4151 = vsel %vm4150, %v4143, %v4147
    %v4152 = vand.u32 2147483647, %v4124
    %vm4153 = vcmp.eq.f32.partialorder %v4152, 8.507059e+37
    %v4154 = vand.u32 %v4124, 2147483648
    %v4155 = vor.u32 1.1754944e-38, %v4154
    %v4156 = vsel %vm4153, %v4155, %v4151
    %v4157 = vmul.f32 %v4116, %v4156
    %v4158 = vrcp.pop %v4127
    %v4159 = vmul.f32 %v4127, %v4158
    %v4160 = vsub.f32 1.0, %v4159
    %v4161 = vmul.f32 %v4158, %v4160
    %v4162 = vadd.f32 %v4158, %v4161
    %vm4163 = vweird.f32 %v4127
    %vm4164 = vweird.f32 %v4158
    %vm4165 = vmor %vm4163, %vm4164
    %v4166 = vsel %vm4165, %v4158, %v4162
    %v4167 = vand.u32 2147483647, %v4127
    %vm4168 = vcmp.eq.f32.partialorder %v4167, 8.507059e+37
    %v4169 = vand.u32 %v4127, 2147483648
    %v4170 = vor.u32 1.1754944e-38, %v4169
    %v4171 = vsel %vm4168, %v4170, %v4166
    %v4172 = vmul.f32 %v4118, %v4171
    %4173 = vrot.lane.b32.xlu0 %v2790, 48
    %v4174 = vpop.permute.xlu0 %4173
    %4175 = vrot.lane.b32.xlu0 %v2793, 48
    %v4176 = vpop.permute.xlu0 %4175
    %4177 = vrot.lane.b32.xlu0 %v2796, 48
    %v4178 = vpop.permute.xlu0 %4177
    %v4183 = vsel %vm417, %v4142, 0
    %v4186 = vsel %vm417, %v4157, 0
    %v4189 = vsel %vm417, %v4172, 0
    %4191 = vmatpush.msra.mxu0 0.0
    %4192 = vmatpush.msra.mxu0 0.0
    %4193 = vmatpush.msra.mxu0 0.0
    %4194 = vmatpush.msra.mxu0 0.0
    %4195 = vmatpush.msra.mxu0 0.0
    %4196 = vmatpush.msra.mxu0 0.0
    %4197 = vmatpush.msra.mxu0 0.0
    %4198 = vmatpush.msra.mxu0 0.0
    %4199 = vmatpush.msra.mxu0 0.0
    %4200 = vmatpush.msra.mxu0 0.0
    %4201 = vmatpush.msra.mxu0 0.0
    %4202 = vmatpush.msra.mxu0 0.0
    %4203 = vmatpush.msra.mxu0 0.0
    %4204 = vmatpush.msra.mxu0 %v4178
    %4205 = vmatpush.msra.mxu0 %v4176
    %4206 = vmatpush.msra.mxu0 %v4174
    %4207 = vmatmul.f32.gmra.mxu0 %v4183
    %v4208 = vpop.f32.mrf.mxu0
    %v4209 = vadd.f32 0.0, %v4208
    %4210 = vmatmul.f32.gmra.mxu0 %v4186
    %v4211 = vpop.f32.mrf.mxu0
    %v4212 = vadd.f32 0.0, %v4211
    %4213 = vmatmul.f32.gmra.mxu0 %v4189
    %v4214 = vpop.f32.mrf.mxu0
    %v4215 = vadd.f32 0.0, %v4214
    %4216 = vdwg.mxu0
    %v4218 = vsel %vm372, %v4209, 0
    %v4221 = vsel %vm372, %v4212, 0
    %v4224 = vsel %vm372, %v4215, 0
    %4226 = vmatpush.msra.mxu0 0.0
    %4227 = vmatpush.msra.mxu0 0.0
    %4228 = vmatpush.msra.mxu0 0.0
    %4229 = vmatpush.msra.mxu0 0.0
    %4230 = vmatpush.msra.mxu0 0.0
    %4231 = vmatpush.msra.mxu0 0.0
    %4232 = vmatpush.msra.mxu0 0.0
    %4233 = vmatpush.msra.mxu0 0.0
    %4234 = vmatpush.msra.mxu0 0.0
    %4235 = vmatpush.msra.mxu0 0.0
    %4236 = vmatpush.msra.mxu0 0.0
    %4237 = vmatpush.msra.mxu0 0.0
    %4238 = vmatpush.msra.mxu0 0.0
    %4239 = vmatpush.msra.mxu0 0.0
    %4240 = vmatpush.msra.mxu0 0.0
    %4241 = vmatpush.msra.mxu0 %v2801
    %4242 = vmatmul.f32.gmra.mxu0 %v4218
    %v4243 = vpop.f32.mrf.mxu0
    %v4244 = vadd.f32 0.0, %v4243
    %4245 = vmatmul.f32.gmra.mxu0 %v4221
    %v4246 = vpop.f32.mrf.mxu0
    %v4247 = vadd.f32 0.0, %v4246
    %4248 = vmatmul.f32.gmra.mxu0 %v4224
    %v4249 = vpop.f32.mrf.mxu0
    %v4250 = vadd.f32 0.0, %v4249
    %4251 = vdwg.mxu0
    %v4252 = vadd.f32 %v4037, %v4244
    %v4253 = vadd.f32 %v4040, %v4247
    %v4254 = vadd.f32 %v4043, %v4250
    %4255 = vrot.lane.b32.xlu0 %v2790, 104
    %v4256 = vpop.permute.xlu0 %4255
    %4257 = vrot.lane.b32.xlu0 %v2793, 104
    %v4258 = vpop.permute.xlu0 %4257
    %4259 = vrot.lane.b32.xlu0 %v2796, 104
    %v4260 = vpop.permute.xlu0 %4259
    %4261 = vrot.lane.b32.xlu0 %v2790, 72
    %v4262 = vpop.permute.xlu0 %4261
    %4263 = vrot.lane.b32.xlu0 %v2793, 72
    %v4264 = vpop.permute.xlu0 %4263
    %4265 = vrot.lane.b32.xlu0 %v2796, 72
    %v4266 = vpop.permute.xlu0 %4265
    %v4267 = vsel %vm372, %v4256, 0
    %v4269 = vsel %vm372, %v4258, 0
    %v4271 = vsel %vm372, %v4260, 0
    %v4273 = vsel %vm372, %v4262, 0
    %v4275 = vsel %vm372, %v4264, 0
    %v4277 = vsel %vm372, %v4266, 0
    %4279 = vmatpush.xpose.msra.mxu0 0.0
    %4280 = vmatpush.xpose.msra.mxu0 0.0
    %4281 = vmatpush.xpose.msra.mxu0 0.0
    %4282 = vmatpush.xpose.msra.mxu0 0.0
    %4283 = vmatpush.xpose.msra.mxu0 0.0
    %4284 = vmatpush.xpose.msra.mxu0 0.0
    %4285 = vmatpush.xpose.msra.mxu0 0.0
    %4286 = vmatpush.xpose.msra.mxu0 0.0
    %4287 = vmatpush.xpose.msra.mxu0 0.0
    %4288 = vmatpush.xpose.msra.mxu0 0.0
    %4289 = vmatpush.xpose.msra.mxu0 0.0
    %4290 = vmatpush.xpose.msra.mxu0 0.0
    %4291 = vmatpush.xpose.msra.mxu0 0.0
    %4292 = vmatpush.xpose.msra.mxu0 %v4277
    %4293 = vmatpush.xpose.msra.mxu0 %v4275
    %4294 = vmatpush.xpose.msra.mxu0 %v4273
    %4295 = vmatmul.f32.gmra.mxu0 %v4267
    %v4296 = vpop.f32.mrf.mxu0
    %v4297 = vadd.f32 0.0, %v4296
    %4298 = vmatmul.f32.gmra.mxu0 %v4269
    %v4299 = vpop.f32.mrf.mxu0
    %v4300 = vadd.f32 0.0, %v4299
    %4301 = vmatmul.f32.gmra.mxu0 %v4271
    %v4302 = vpop.f32.mrf.mxu0
    %v4303 = vadd.f32 0.0, %v4302
    %4304 = vdwg.mxu0
    %v4305 = vmul.f32 %v4297, 0.35355338
    %v4306 = vmul.f32 %v4300, 0.35355338
    %v4307 = vmul.f32 %v4303, 0.35355338
    %v4308 = vsel %vm65, %v4305, -1e+30
    %v4309 = vsel %vm65, %v4306, -1e+30
    %v4310 = vsel %vm65, %v4307, -1e+30
    %v4311 = vsel %vm417, %v4308, -inf
    %4312 = vmax.xlane.f32.xlu0 %v4311
    %v4313 = vpop.xlane.xlu0 %4312
    %v4314 = vsel %vm417, %v4309, -inf
    %4315 = vmax.xlane.f32.xlu0 %v4314
    %v4316 = vpop.xlane.xlu0 %4315
    %v4317 = vsel %vm417, %v4310, -inf
    %4318 = vmax.xlane.f32.xlu0 %v4317
    %v4319 = vpop.xlane.xlu0 %4318
    %v4320 = vsub.f32 %v4308, %v4313
    %v4321 = vsub.f32 %v4309, %v4316
    %v4322 = vsub.f32 %v4310, %v4319
    %v4323 = vmul.f32 %v4320, 1.442695
    %v4324 = vpow.pop %v4323
    %v4325 = vmul.f32 %v4321, 1.442695
    %v4326 = vpow.pop %v4325
    %v4327 = vmul.f32 %v4322, 1.442695
    %v4328 = vpow.pop %v4327
    %v4329 = vsel %vm417, %v4324, 0.0
    %4330 = vadd.xlane.f32.xlu0 %v4329
    %v4331 = vpop.xlane.xlu0 %4330
    %v4332 = vsel %vm417, %v4326, 0.0
    %4333 = vadd.xlane.f32.xlu0 %v4332
    %v4334 = vpop.xlane.xlu0 %4333
    %v4335 = vsel %vm417, %v4328, 0.0
    %4336 = vadd.xlane.f32.xlu0 %v4335
    %v4337 = vpop.xlane.xlu0 %4336
    %v4338 = vrcp.pop %v4331
    %v4339 = vmul.f32 %v4331, %v4338
    %v4340 = vsub.f32 1.0, %v4339
    %v4341 = vmul.f32 %v4338, %v4340
    %v4342 = vadd.f32 %v4338, %v4341
    %vm4343 = vweird.f32 %v4331
    %vm4344 = vweird.f32 %v4338
    %vm4345 = vmor %vm4343, %vm4344
    %v4346 = vsel %vm4345, %v4338, %v4342
    %v4347 = vand.u32 2147483647, %v4331
    %vm4348 = vcmp.eq.f32.partialorder %v4347, 8.507059e+37
    %v4349 = vand.u32 %v4331, 2147483648
    %v4350 = vor.u32 1.1754944e-38, %v4349
    %v4351 = vsel %vm4348, %v4350, %v4346
    %v4352 = vmul.f32 %v4324, %v4351
    %v4353 = vrcp.pop %v4334
    %v4354 = vmul.f32 %v4334, %v4353
    %v4355 = vsub.f32 1.0, %v4354
    %v4356 = vmul.f32 %v4353, %v4355
    %v4357 = vadd.f32 %v4353, %v4356
    %vm4358 = vweird.f32 %v4334
    %vm4359 = vweird.f32 %v4353
    %vm4360 = vmor %vm4358, %vm4359
    %v4361 = vsel %vm4360, %v4353, %v4357
    %v4362 = vand.u32 2147483647, %v4334
    %vm4363 = vcmp.eq.f32.partialorder %v4362, 8.507059e+37
    %v4364 = vand.u32 %v4334, 2147483648
    %v4365 = vor.u32 1.1754944e-38, %v4364
    %v4366 = vsel %vm4363, %v4365, %v4361
    %v4367 = vmul.f32 %v4326, %v4366
    %v4368 = vrcp.pop %v4337
    %v4369 = vmul.f32 %v4337, %v4368
    %v4370 = vsub.f32 1.0, %v4369
    %v4371 = vmul.f32 %v4368, %v4370
    %v4372 = vadd.f32 %v4368, %v4371
    %vm4373 = vweird.f32 %v4337
    %vm4374 = vweird.f32 %v4368
    %vm4375 = vmor %vm4373, %vm4374
    %v4376 = vsel %vm4375, %v4368, %v4372
    %v4377 = vand.u32 2147483647, %v4337
    %vm4378 = vcmp.eq.f32.partialorder %v4377, 8.507059e+37
    %v4379 = vand.u32 %v4337, 2147483648
    %v4380 = vor.u32 1.1754944e-38, %v4379
    %v4381 = vsel %vm4378, %v4380, %v4376
    %v4382 = vmul.f32 %v4328, %v4381
    %4383 = vrot.lane.b32.xlu0 %v2790, 40
    %v4384 = vpop.permute.xlu0 %4383
    %4385 = vrot.lane.b32.xlu0 %v2793, 40
    %v4386 = vpop.permute.xlu0 %4385
    %4387 = vrot.lane.b32.xlu0 %v2796, 40
    %v4388 = vpop.permute.xlu0 %4387
    %v4393 = vsel %vm417, %v4352, 0
    %v4396 = vsel %vm417, %v4367, 0
    %v4399 = vsel %vm417, %v4382, 0
    %4401 = vmatpush.msra.mxu0 0.0
    %4402 = vmatpush.msra.mxu0 0.0
    %4403 = vmatpush.msra.mxu0 0.0
    %4404 = vmatpush.msra.mxu0 0.0
    %4405 = vmatpush.msra.mxu0 0.0
    %4406 = vmatpush.msra.mxu0 0.0
    %4407 = vmatpush.msra.mxu0 0.0
    %4408 = vmatpush.msra.mxu0 0.0
    %4409 = vmatpush.msra.mxu0 0.0
    %4410 = vmatpush.msra.mxu0 0.0
    %4411 = vmatpush.msra.mxu0 0.0
    %4412 = vmatpush.msra.mxu0 0.0
    %4413 = vmatpush.msra.mxu0 0.0
    %4414 = vmatpush.msra.mxu0 %v4388
    %4415 = vmatpush.msra.mxu0 %v4386
    %4416 = vmatpush.msra.mxu0 %v4384
    %4417 = vmatmul.f32.gmra.mxu0 %v4393
    %v4418 = vpop.f32.mrf.mxu0
    %v4419 = vadd.f32 0.0, %v4418
    %4420 = vmatmul.f32.gmra.mxu0 %v4396
    %v4421 = vpop.f32.mrf.mxu0
    %v4422 = vadd.f32 0.0, %v4421
    %4423 = vmatmul.f32.gmra.mxu0 %v4399
    %v4424 = vpop.f32.mrf.mxu0
    %v4425 = vadd.f32 0.0, %v4424
    %4426 = vdwg.mxu0
    %v4428 = vsel %vm372, %v4419, 0
    %v4431 = vsel %vm372, %v4422, 0
    %v4434 = vsel %vm372, %v4425, 0
    %4436 = vmatpush.msra.mxu0 0.0
    %4437 = vmatpush.msra.mxu0 0.0
    %4438 = vmatpush.msra.mxu0 0.0
    %4439 = vmatpush.msra.mxu0 0.0
    %4440 = vmatpush.msra.mxu0 0.0
    %4441 = vmatpush.msra.mxu0 0.0
    %4442 = vmatpush.msra.mxu0 0.0
    %4443 = vmatpush.msra.mxu0 0.0
    %4444 = vmatpush.msra.mxu0 0.0
    %4445 = vmatpush.msra.mxu0 0.0
    %4446 = vmatpush.msra.mxu0 0.0
    %4447 = vmatpush.msra.mxu0 0.0
    %4448 = vmatpush.msra.mxu0 0.0
    %4449 = vmatpush.msra.mxu0 0.0
    %4450 = vmatpush.msra.mxu0 0.0
    %4451 = vmatpush.msra.mxu0 %v2802
    %4452 = vmatmul.f32.gmra.mxu0 %v4428
    %v4453 = vpop.f32.mrf.mxu0
    %v4454 = vadd.f32 0.0, %v4453
    %4455 = vmatmul.f32.gmra.mxu0 %v4431
    %v4456 = vpop.f32.mrf.mxu0
    %v4457 = vadd.f32 0.0, %v4456
    %4458 = vmatmul.f32.gmra.mxu0 %v4434
    %v4459 = vpop.f32.mrf.mxu0
    %v4460 = vadd.f32 0.0, %v4459
    %4461 = vdwg.mxu0
    %v4462 = vadd.f32 %v4252, %v4454
    %v4463 = vadd.f32 %v4253, %v4457
    %v4464 = vadd.f32 %v4254, %v4460
    %s4465 = scalar_lea.vmem %s8, 1
    %v4466 = vld [vmem:[%s4465] sm:$0x1]
    %v4468 = vperm.slane %v4466, 0
    %v4470 = vadd.f32 %v3631, %v4468
    %v4471 = vadd.f32 %v3632, %v4468
    %v4472 = vadd.f32 %v3633, %v4468
    %v4473 = vadd.f32 %v4462, %v4468
    %v4474 = vadd.f32 %v4463, %v4468
    %v4475 = vadd.f32 %v4464, %v4468
    %v4476 = vadd.f32 %v2575, %v4470
    %v4477 = vadd.f32 %v2576, %v4471
    %v4478 = vadd.f32 %v2577, %v4472
    %v4479 = vadd.f32 %v2578, %v4473
    %v4480 = vadd.f32 %v2579, %v4474
    %v4481 = vadd.f32 %v2580, %v4475
    %s4482 = scalar_lea.vmem %s9, 1
    %v4483 = vld [vmem:[%s4482] sm:$0x1]
    %s4484 = scalar_lea.vmem %s10, 1
    %v4485 = vld [vmem:[%s4484] sm:$0x1]
    %v4486 = vsel %vm140, %v4476, 0.0
    %4487 = vadd.xlane.f32.xlu0 %v4486
    %v4488 = vpop.xlane.xlu0 %4487
    %v4489 = vsel %vm140, %v4477, 0.0
    %4490 = vadd.xlane.f32.xlu0 %v4489
    %v4491 = vpop.xlane.xlu0 %4490
    %v4492 = vsel %vm140, %v4478, 0.0
    %4493 = vadd.xlane.f32.xlu0 %v4492
    %v4494 = vpop.xlane.xlu0 %4493
    %v4495 = vsel %vm140, %v4479, 0.0
    %4496 = vadd.xlane.f32.xlu0 %v4495
    %v4497 = vpop.xlane.xlu0 %4496
    %v4498 = vsel %vm140, %v4480, 0.0
    %4499 = vadd.xlane.f32.xlu0 %v4498
    %v4500 = vpop.xlane.xlu0 %4499
    %v4501 = vsel %vm140, %v4481, 0.0
    %4502 = vadd.xlane.f32.xlu0 %v4501
    %v4503 = vpop.xlane.xlu0 %4502
    %v4504 = vmul.f32 %v4488, %v165
    %v4505 = vmul.f32 %v4491, %v165
    %v4506 = vmul.f32 %v4494, %v165
    %v4507 = vmul.f32 %v4497, %v165
    %v4508 = vmul.f32 %v4500, %v165
    %v4509 = vmul.f32 %v4503, %v165
    %v4510 = vsub.f32 %v4476, %v4504
    %v4511 = vsub.f32 %v4477, %v4505
    %v4512 = vsub.f32 %v4478, %v4506
    %v4513 = vsub.f32 %v4479, %v4507
    %v4514 = vsub.f32 %v4480, %v4508
    %v4515 = vsub.f32 %v4481, %v4509
    %v4516 = vmul.f32 %v4510, %v4510
    %v4517 = vmul.f32 %v4511, %v4511
    %v4518 = vmul.f32 %v4512, %v4512
    %v4519 = vmul.f32 %v4513, %v4513
    %v4520 = vmul.f32 %v4514, %v4514
    %v4521 = vmul.f32 %v4515, %v4515
    %v4522 = vsel %vm140, %v4516, 0.0
    %4523 = vadd.xlane.f32.xlu0 %v4522
    %v4524 = vpop.xlane.xlu0 %4523
    %v4525 = vsel %vm140, %v4517, 0.0
    %4526 = vadd.xlane.f32.xlu0 %v4525
    %v4527 = vpop.xlane.xlu0 %4526
    %v4528 = vsel %vm140, %v4518, 0.0
    %4529 = vadd.xlane.f32.xlu0 %v4528
    %v4530 = vpop.xlane.xlu0 %4529
    %v4531 = vsel %vm140, %v4519, 0.0
    %4532 = vadd.xlane.f32.xlu0 %v4531
    %v4533 = vpop.xlane.xlu0 %4532
    %v4534 = vsel %vm140, %v4520, 0.0
    %4535 = vadd.xlane.f32.xlu0 %v4534
    %v4536 = vpop.xlane.xlu0 %4535
    %v4537 = vsel %vm140, %v4521, 0.0
    %4538 = vadd.xlane.f32.xlu0 %v4537
    %v4539 = vpop.xlane.xlu0 %4538
    %v4540 = vmul.f32 %v4524, %v165
    %v4541 = vmul.f32 %v4527, %v165
    %v4542 = vmul.f32 %v4530, %v165
    %v4543 = vmul.f32 %v4533, %v165
    %v4544 = vmul.f32 %v4536, %v165
    %v4545 = vmul.f32 %v4539, %v165
    %v4546 = vadd.f32 %v4540, 1e-06
    %v4547 = vadd.f32 %v4541, 1e-06
    %v4548 = vadd.f32 %v4542, 1e-06
    %v4549 = vadd.f32 %v4543, 1e-06
    %v4550 = vadd.f32 %v4544, 1e-06
    %v4551 = vadd.f32 %v4545, 1e-06
    %v4552 = vrsqrt.pop %v4546
    %v4553 = vmul.f32 %v4552, %v4546
    %v4554 = vmul.f32 %v4553, %v4552
    %v4555 = vmul.f32 0.5, %v4554
    %v4556 = vsub.f32 1.5, %v4555
    %v4557 = vmul.f32 %v4552, %v4556
    %vm4558 = vweird.f32 %v4546
    %vm4559 = vweird.f32 %v4552
    %vm4560 = vmor %vm4558, %vm4559
    %v4561 = vsel %vm4560, %v4552, %v4557
    %v4562 = vrsqrt.pop %v4547
    %v4563 = vmul.f32 %v4562, %v4547
    %v4564 = vmul.f32 %v4563, %v4562
    %v4565 = vmul.f32 0.5, %v4564
    %v4566 = vsub.f32 1.5, %v4565
    %v4567 = vmul.f32 %v4562, %v4566
    %vm4568 = vweird.f32 %v4547
    %vm4569 = vweird.f32 %v4562
    %vm4570 = vmor %vm4568, %vm4569
    %v4571 = vsel %vm4570, %v4562, %v4567
    %v4572 = vrsqrt.pop %v4548
    %v4573 = vmul.f32 %v4572, %v4548
    %v4574 = vmul.f32 %v4573, %v4572
    %v4575 = vmul.f32 0.5, %v4574
    %v4576 = vsub.f32 1.5, %v4575
    %v4577 = vmul.f32 %v4572, %v4576
    %vm4578 = vweird.f32 %v4548
    %vm4579 = vweird.f32 %v4572
    %vm4580 = vmor %vm4578, %vm4579
    %v4581 = vsel %vm4580, %v4572, %v4577
    %v4582 = vrsqrt.pop %v4549
    %v4583 = vmul.f32 %v4582, %v4549
    %v4584 = vmul.f32 %v4583, %v4582
    %v4585 = vmul.f32 0.5, %v4584
    %v4586 = vsub.f32 1.5, %v4585
    %v4587 = vmul.f32 %v4582, %v4586
    %vm4588 = vweird.f32 %v4549
    %vm4589 = vweird.f32 %v4582
    %vm4590 = vmor %vm4588, %vm4589
    %v4591 = vsel %vm4590, %v4582, %v4587
    %v4592 = vrsqrt.pop %v4550
    %v4593 = vmul.f32 %v4592, %v4550
    %v4594 = vmul.f32 %v4593, %v4592
    %v4595 = vmul.f32 0.5, %v4594
    %v4596 = vsub.f32 1.5, %v4595
    %v4597 = vmul.f32 %v4592, %v4596
    %vm4598 = vweird.f32 %v4550
    %vm4599 = vweird.f32 %v4592
    %vm4600 = vmor %vm4598, %vm4599
    %v4601 = vsel %vm4600, %v4592, %v4597
    %v4602 = vrsqrt.pop %v4551
    %v4603 = vmul.f32 %v4602, %v4551
    %v4604 = vmul.f32 %v4603, %v4602
    %v4605 = vmul.f32 0.5, %v4604
    %v4606 = vsub.f32 1.5, %v4605
    %v4607 = vmul.f32 %v4602, %v4606
    %vm4608 = vweird.f32 %v4551
    %vm4609 = vweird.f32 %v4602
    %vm4610 = vmor %vm4608, %vm4609
    %v4611 = vsel %vm4610, %v4602, %v4607
    %v4612 = vmul.f32 %v4510, %v4561
    %v4613 = vmul.f32 %v4511, %v4571
    %v4614 = vmul.f32 %v4512, %v4581
    %v4615 = vmul.f32 %v4513, %v4591
    %v4616 = vmul.f32 %v4514, %v4601
    %v4617 = vmul.f32 %v4515, %v4611
    %v4619 = vperm.slane %v4483, 0
    %v4621 = vmul.f32 %v4612, %v4619
    %v4622 = vmul.f32 %v4613, %v4619
    %v4623 = vmul.f32 %v4614, %v4619
    %v4624 = vmul.f32 %v4615, %v4619
    %v4625 = vmul.f32 %v4616, %v4619
    %v4626 = vmul.f32 %v4617, %v4619
    %v4628 = vperm.slane %v4485, 0
    %v4630 = vadd.f32 %v4621, %v4628
    %v4631 = vadd.f32 %v4622, %v4628
    %v4632 = vadd.f32 %v4623, %v4628
    %v4633 = vadd.f32 %v4624, %v4628
    %v4634 = vadd.f32 %v4625, %v4628
    %v4635 = vadd.f32 %v4626, %v4628
    %s4636 = scalar_lea.vmem %s11, 32
    %v4637 = vld [vmem:[%s4636] sm:$0xff]
    %v4638 = vld [vmem:[%s4636 + $0x8] sm:$0xff]
    %v4639 = vld [vmem:[%s4636 + $0x10] sm:$0xff]
    %v4640 = vld [vmem:[%s4636 + $0x18] sm:$0xff]
    %s4641 = scalar_lea.vmem %s12, 1
    %v4642 = vld [vmem:[%s4641] sm:$0x1]
    %v4644 = vperm.slane %v4642, 0
    %v4647 = vsel %vm140, %v4630, 0
    %v4650 = vsel %vm140, %v4631, 0
    %v4653 = vsel %vm140, %v4632, 0
    %v4656 = vsel %vm140, %v4633, 0
    %v4659 = vsel %vm140, %v4634, 0
    %v4662 = vsel %vm140, %v4635, 0
    %4664 = vmatpush.msra.mxu0 0.0
    %4665 = vmatpush.msra.mxu0 0.0
    %4666 = vmatpush.msra.mxu0 0.0
    %4667 = vmatpush.msra.mxu0 0.0
    %4668 = vmatpush.msra.mxu0 0.0
    %4669 = vmatpush.msra.mxu0 0.0
    %4670 = vmatpush.msra.mxu0 0.0
    %4671 = vmatpush.msra.mxu0 0.0
    %4672 = vmatpush.msra.mxu0 0.0
    %4673 = vmatpush.msra.mxu0 0.0
    %4674 = vmatpush.msra.mxu0 0.0
    %4675 = vmatpush.msra.mxu0 0.0
    %4676 = vmatpush.msra.mxu0 %v4640
    %4677 = vmatpush.msra.mxu0 %v4639
    %4678 = vmatpush.msra.mxu0 %v4638
    %4679 = vmatpush.msra.mxu0 %v4637
    %4680 = vmatmul.f32.gmra.mxu0 %v4647
    %v4681 = vpop.f32.mrf.mxu0
    %v4682 = vadd.f32 %v4644, %v4681
    %4683 = vmatmul.f32.gmra.mxu0 %v4650
    %v4684 = vpop.f32.mrf.mxu0
    %v4685 = vadd.f32 %v4644, %v4684
    %4686 = vmatmul.f32.gmra.mxu0 %v4653
    %v4687 = vpop.f32.mrf.mxu0
    %v4688 = vadd.f32 %v4644, %v4687
    %4689 = vmatmul.f32.gmra.mxu0 %v4656
    %v4690 = vpop.f32.mrf.mxu0
    %v4691 = vadd.f32 %v4644, %v4690
    %4692 = vmatmul.f32.gmra.mxu0 %v4659
    %v4693 = vpop.f32.mrf.mxu0
    %v4694 = vadd.f32 %v4644, %v4693
    %4695 = vmatmul.f32.gmra.mxu0 %v4662
    %v4696 = vpop.f32.mrf.mxu0
    %v4697 = vadd.f32 %v4644, %v4696
    %4698 = vdwg.mxu0
    %v4699 = vmul.f32 %v4682, 0.5
    %v4700 = vmul.f32 %v4685, 0.5
    %v4701 = vmul.f32 %v4688, 0.5
    %v4702 = vmul.f32 %v4691, 0.5
    %v4703 = vmul.f32 %v4694, 0.5
    %v4704 = vmul.f32 %v4697, 0.5
    %v4705 = vmul.f32 %v4682, 0.70710677
    %v4706 = vmul.f32 %v4685, 0.70710677
    %v4707 = vmul.f32 %v4688, 0.70710677
    %v4708 = vmul.f32 %v4691, 0.70710677
    %v4709 = vmul.f32 %v4694, 0.70710677
    %v4710 = vmul.f32 %v4697, 0.70710677
    %v4711 = vmul.f32 %v4705, %v4705
    %v4712 = vmin.f32 16.0, %v4711
    %v4713 = vmul.f32 %v4712, 2.1237322e-06
    %v4714 = vadd.f32 %v4713, 0.00028619796
    %v4715 = vmul.f32 %v4712, %v4714
    %v4716 = vadd.f32 %v4715, 0.0036580483
    %v4717 = vmul.f32 %v4712, %v4716
    %v4718 = vadd.f32 %v4717, 0.05243302
    %v4719 = vmul.f32 %v4712, %v4718
    %v4720 = vadd.f32 %v4719, 0.18741608
    %v4721 = vmul.f32 %v4712, %v4720
    %v4722 = vadd.f32 %v4721, 1.1283791
    %v4723 = vmul.f32 %v4705, %v4722
    %v4724 = vmul.f32 %v4712, 3.8918573e-05
    %v4725 = vadd.f32 %v4724, 0.001143296
    %v4726 = vmul.f32 %v4712, %v4725
    %v4727 = vadd.f32 %v4726, 0.014752088
    %v4728 = vmul.f32 %v4712, %v4727
    %v4729 = vadd.f32 %v4728, 0.112945676
    %v4730 = vmul.f32 %v4712, %v4729
    %v4731 = vadd.f32 %v4730, 0.4994258
    %v4732 = vmul.f32 %v4712, %v4731
    %v4733 = vadd.f32 %v4732, 1.0
    %v4734 = vrcp.pop %v4733
    %v4735 = vmul.f32 %v4733, %v4734
    %v4736 = vsub.f32 1.0, %v4735
    %v4737 = vmul.f32 %v4734, %v4736
    %v4738 = vadd.f32 %v4734, %v4737
    %vm4739 = vweird.f32 %v4733
    %vm4740 = vweird.f32 %v4734
    %vm4741 = vmor %vm4739, %vm4740
    %v4742 = vsel %vm4741, %v4734, %v4738
    %v4743 = vand.u32 2147483647, %v4733
    %vm4744 = vcmp.eq.f32.partialorder %v4743, 8.507059e+37
    %v4745 = vand.u32 %v4733, 2147483648
    %v4746 = vor.u32 1.1754944e-38, %v4745
    %v4747 = vsel %vm4744, %v4746, %v4742
    %v4748 = vmul.f32 %v4723, %v4747
    %v4749 = vmin.f32 %v4748, 1.0
    %v4750 = vmax.f32 %v4749, -1.0
    %v4751 = vmul.f32 %v4706, %v4706
    %v4752 = vmin.f32 16.0, %v4751
    %v4753 = vmul.f32 %v4752, 2.1237322e-06
    %v4754 = vadd.f32 %v4753, 0.00028619796
    %v4755 = vmul.f32 %v4752, %v4754
    %v4756 = vadd.f32 %v4755, 0.0036580483
    %v4757 = vmul.f32 %v4752, %v4756
    %v4758 = vadd.f32 %v4757, 0.05243302
    %v4759 = vmul.f32 %v4752, %v4758
    %v4760 = vadd.f32 %v4759, 0.18741608
    %v4761 = vmul.f32 %v4752, %v4760
    %v4762 = vadd.f32 %v4761, 1.1283791
    %v4763 = vmul.f32 %v4706, %v4762
    %v4764 = vmul.f32 %v4752, 3.8918573e-05
    %v4765 = vadd.f32 %v4764, 0.001143296
    %v4766 = vmul.f32 %v4752, %v4765
    %v4767 = vadd.f32 %v4766, 0.014752088
    %v4768 = vmul.f32 %v4752, %v4767
    %v4769 = vadd.f32 %v4768, 0.112945676
    %v4770 = vmul.f32 %v4752, %v4769
    %v4771 = vadd.f32 %v4770, 0.4994258
    %v4772 = vmul.f32 %v4752, %v4771
    %v4773 = vadd.f32 %v4772, 1.0
    %v4774 = vrcp.pop %v4773
    %v4775 = vmul.f32 %v4773, %v4774
    %v4776 = vsub.f32 1.0, %v4775
    %v4777 = vmul.f32 %v4774, %v4776
    %v4778 = vadd.f32 %v4774, %v4777
    %vm4779 = vweird.f32 %v4773
    %vm4780 = vweird.f32 %v4774
    %vm4781 = vmor %vm4779, %vm4780
    %v4782 = vsel %vm4781, %v4774, %v4778
    %v4783 = vand.u32 2147483647, %v4773
    %vm4784 = vcmp.eq.f32.partialorder %v4783, 8.507059e+37
    %v4785 = vand.u32 %v4773, 2147483648
    %v4786 = vor.u32 1.1754944e-38, %v4785
    %v4787 = vsel %vm4784, %v4786, %v4782
    %v4788 = vmul.f32 %v4763, %v4787
    %v4789 = vmin.f32 %v4788, 1.0
    %v4790 = vmax.f32 %v4789, -1.0
    %v4791 = vmul.f32 %v4707, %v4707
    %v4792 = vmin.f32 16.0, %v4791
    %v4793 = vmul.f32 %v4792, 2.1237322e-06
    %v4794 = vadd.f32 %v4793, 0.00028619796
    %v4795 = vmul.f32 %v4792, %v4794
    %v4796 = vadd.f32 %v4795, 0.0036580483
    %v4797 = vmul.f32 %v4792, %v4796
    %v4798 = vadd.f32 %v4797, 0.05243302
    %v4799 = vmul.f32 %v4792, %v4798
    %v4800 = vadd.f32 %v4799, 0.18741608
    %v4801 = vmul.f32 %v4792, %v4800
    %v4802 = vadd.f32 %v4801, 1.1283791
    %v4803 = vmul.f32 %v4707, %v4802
    %v4804 = vmul.f32 %v4792, 3.8918573e-05
    %v4805 = vadd.f32 %v4804, 0.001143296
    %v4806 = vmul.f32 %v4792, %v4805
    %v4807 = vadd.f32 %v4806, 0.014752088
    %v4808 = vmul.f32 %v4792, %v4807
    %v4809 = vadd.f32 %v4808, 0.112945676
    %v4810 = vmul.f32 %v4792, %v4809
    %v4811 = vadd.f32 %v4810, 0.4994258
    %v4812 = vmul.f32 %v4792, %v4811
    %v4813 = vadd.f32 %v4812, 1.0
    %v4814 = vrcp.pop %v4813
    %v4815 = vmul.f32 %v4813, %v4814
    %v4816 = vsub.f32 1.0, %v4815
    %v4817 = vmul.f32 %v4814, %v4816
    %v4818 = vadd.f32 %v4814, %v4817
    %vm4819 = vweird.f32 %v4813
    %vm4820 = vweird.f32 %v4814
    %vm4821 = vmor %vm4819, %vm4820
    %v4822 = vsel %vm4821, %v4814, %v4818
    %v4823 = vand.u32 2147483647, %v4813
    %vm4824 = vcmp.eq.f32.partialorder %v4823, 8.507059e+37
    %v4825 = vand.u32 %v4813, 2147483648
    %v4826 = vor.u32 1.1754944e-38, %v4825
    %v4827 = vsel %vm4824, %v4826, %v4822
    %v4828 = vmul.f32 %v4803, %v4827
    %v4829 = vmin.f32 %v4828, 1.0
    %v4830 = vmax.f32 %v4829, -1.0
    %v4831 = vmul.f32 %v4708, %v4708
    %v4832 = vmin.f32 16.0, %v4831
    %v4833 = vmul.f32 %v4832, 2.1237322e-06
    %v4834 = vadd.f32 %v4833, 0.00028619796
    %v4835 = vmul.f32 %v4832, %v4834
    %v4836 = vadd.f32 %v4835, 0.0036580483
    %v4837 = vmul.f32 %v4832, %v4836
    %v4838 = vadd.f32 %v4837, 0.05243302
    %v4839 = vmul.f32 %v4832, %v4838
    %v4840 = vadd.f32 %v4839, 0.18741608
    %v4841 = vmul.f32 %v4832, %v4840
    %v4842 = vadd.f32 %v4841, 1.1283791
    %v4843 = vmul.f32 %v4708, %v4842
    %v4844 = vmul.f32 %v4832, 3.8918573e-05
    %v4845 = vadd.f32 %v4844, 0.001143296
    %v4846 = vmul.f32 %v4832, %v4845
    %v4847 = vadd.f32 %v4846, 0.014752088
    %v4848 = vmul.f32 %v4832, %v4847
    %v4849 = vadd.f32 %v4848, 0.112945676
    %v4850 = vmul.f32 %v4832, %v4849
    %v4851 = vadd.f32 %v4850, 0.4994258
    %v4852 = vmul.f32 %v4832, %v4851
    %v4853 = vadd.f32 %v4852, 1.0
    %v4854 = vrcp.pop %v4853
    %v4855 = vmul.f32 %v4853, %v4854
    %v4856 = vsub.f32 1.0, %v4855
    %v4857 = vmul.f32 %v4854, %v4856
    %v4858 = vadd.f32 %v4854, %v4857
    %vm4859 = vweird.f32 %v4853
    %vm4860 = vweird.f32 %v4854
    %vm4861 = vmor %vm4859, %vm4860
    %v4862 = vsel %vm4861, %v4854, %v4858
    %v4863 = vand.u32 2147483647, %v4853
    %vm4864 = vcmp.eq.f32.partialorder %v4863, 8.507059e+37
    %v4865 = vand.u32 %v4853, 2147483648
    %v4866 = vor.u32 1.1754944e-38, %v4865
    %v4867 = vsel %vm4864, %v4866, %v4862
    %v4868 = vmul.f32 %v4843, %v4867
    %v4869 = vmin.f32 %v4868, 1.0
    %v4870 = vmax.f32 %v4869, -1.0
    %v4871 = vmul.f32 %v4709, %v4709
    %v4872 = vmin.f32 16.0, %v4871
    %v4873 = vmul.f32 %v4872, 2.1237322e-06
    %v4874 = vadd.f32 %v4873, 0.00028619796
    %v4875 = vmul.f32 %v4872, %v4874
    %v4876 = vadd.f32 %v4875, 0.0036580483
    %v4877 = vmul.f32 %v4872, %v4876
    %v4878 = vadd.f32 %v4877, 0.05243302
    %v4879 = vmul.f32 %v4872, %v4878
    %v4880 = vadd.f32 %v4879, 0.18741608
    %v4881 = vmul.f32 %v4872, %v4880
    %v4882 = vadd.f32 %v4881, 1.1283791
    %v4883 = vmul.f32 %v4709, %v4882
    %v4884 = vmul.f32 %v4872, 3.8918573e-05
    %v4885 = vadd.f32 %v4884, 0.001143296
    %v4886 = vmul.f32 %v4872, %v4885
    %v4887 = vadd.f32 %v4886, 0.014752088
    %v4888 = vmul.f32 %v4872, %v4887
    %v4889 = vadd.f32 %v4888, 0.112945676
    %v4890 = vmul.f32 %v4872, %v4889
    %v4891 = vadd.f32 %v4890, 0.4994258
    %v4892 = vmul.f32 %v4872, %v4891
    %v4893 = vadd.f32 %v4892, 1.0
    %v4894 = vrcp.pop %v4893
    %v4895 = vmul.f32 %v4893, %v4894
    %v4896 = vsub.f32 1.0, %v4895
    %v4897 = vmul.f32 %v4894, %v4896
    %v4898 = vadd.f32 %v4894, %v4897
    %vm4899 = vweird.f32 %v4893
    %vm4900 = vweird.f32 %v4894
    %vm4901 = vmor %vm4899, %vm4900
    %v4902 = vsel %vm4901, %v4894, %v4898
    %v4903 = vand.u32 2147483647, %v4893
    %vm4904 = vcmp.eq.f32.partialorder %v4903, 8.507059e+37
    %v4905 = vand.u32 %v4893, 2147483648
    %v4906 = vor.u32 1.1754944e-38, %v4905
    %v4907 = vsel %vm4904, %v4906, %v4902
    %v4908 = vmul.f32 %v4883, %v4907
    %v4909 = vmin.f32 %v4908, 1.0
    %v4910 = vmax.f32 %v4909, -1.0
    %v4911 = vmul.f32 %v4710, %v4710
    %v4912 = vmin.f32 16.0, %v4911
    %v4913 = vmul.f32 %v4912, 2.1237322e-06
    %v4914 = vadd.f32 %v4913, 0.00028619796
    %v4915 = vmul.f32 %v4912, %v4914
    %v4916 = vadd.f32 %v4915, 0.0036580483
    %v4917 = vmul.f32 %v4912, %v4916
    %v4918 = vadd.f32 %v4917, 0.05243302
    %v4919 = vmul.f32 %v4912, %v4918
    %v4920 = vadd.f32 %v4919, 0.18741608
    %v4921 = vmul.f32 %v4912, %v4920
    %v4922 = vadd.f32 %v4921, 1.1283791
    %v4923 = vmul.f32 %v4710, %v4922
    %v4924 = vmul.f32 %v4912, 3.8918573e-05
    %v4925 = vadd.f32 %v4924, 0.001143296
    %v4926 = vmul.f32 %v4912, %v4925
    %v4927 = vadd.f32 %v4926, 0.014752088
    %v4928 = vmul.f32 %v4912, %v4927
    %v4929 = vadd.f32 %v4928, 0.112945676
    %v4930 = vmul.f32 %v4912, %v4929
    %v4931 = vadd.f32 %v4930, 0.4994258
    %v4932 = vmul.f32 %v4912, %v4931
    %v4933 = vadd.f32 %v4932, 1.0
    %v4934 = vrcp.pop %v4933
    %v4935 = vmul.f32 %v4933, %v4934
    %v4936 = vsub.f32 1.0, %v4935
    %v4937 = vmul.f32 %v4934, %v4936
    %v4938 = vadd.f32 %v4934, %v4937
    %vm4939 = vweird.f32 %v4933
    %vm4940 = vweird.f32 %v4934
    %vm4941 = vmor %vm4939, %vm4940
    %v4942 = vsel %vm4941, %v4934, %v4938
    %v4943 = vand.u32 2147483647, %v4933
    %vm4944 = vcmp.eq.f32.partialorder %v4943, 8.507059e+37
    %v4945 = vand.u32 %v4933, 2147483648
    %v4946 = vor.u32 1.1754944e-38, %v4945
    %v4947 = vsel %vm4944, %v4946, %v4942
    %v4948 = vmul.f32 %v4923, %v4947
    %v4949 = vmin.f32 %v4948, 1.0
    %v4950 = vmax.f32 %v4949, -1.0
    %v4951 = vadd.f32 %v4750, 1.0
    %v4952 = vadd.f32 %v4790, 1.0
    %v4953 = vadd.f32 %v4830, 1.0
    %v4954 = vadd.f32 %v4870, 1.0
    %v4955 = vadd.f32 %v4910, 1.0
    %v4956 = vadd.f32 %v4950, 1.0
    %v4957 = vmul.f32 %v4699, %v4951
    %v4958 = vmul.f32 %v4700, %v4952
    %v4959 = vmul.f32 %v4701, %v4953
    %v4960 = vmul.f32 %v4702, %v4954
    %v4961 = vmul.f32 %v4703, %v4955
    %v4962 = vmul.f32 %v4704, %v4956
    %s4963 = scalar_lea.vmem %s13, 128
    %v4964 = vld [vmem:[%s4963] sm:$0xff]
    %v4965 = vld [vmem:[%s4963 + $0x8] sm:$0xff]
    %v4966 = vld [vmem:[%s4963 + $0x10] sm:$0xff]
    %v4967 = vld [vmem:[%s4963 + $0x18] sm:$0xff]
    %v4968 = vld [vmem:[%s4963 + $0x20] sm:$0xff]
    %v4969 = vld [vmem:[%s4963 + $0x28] sm:$0xff]
    %v4970 = vld [vmem:[%s4963 + $0x30] sm:$0xff]
    %v4971 = vld [vmem:[%s4963 + $0x38] sm:$0xff]
    %v4972 = vld [vmem:[%s4963 + $0x40] sm:$0xff]
    %v4973 = vld [vmem:[%s4963 + $0x48] sm:$0xff]
    %v4974 = vld [vmem:[%s4963 + $0x50] sm:$0xff]
    %v4975 = vld [vmem:[%s4963 + $0x58] sm:$0xff]
    %v4976 = vld [vmem:[%s4963 + $0x60] sm:$0xff]
    %v4977 = vld [vmem:[%s4963 + $0x68] sm:$0xff]
    %v4978 = vld [vmem:[%s4963 + $0x70] sm:$0xff]
    %v4979 = vld [vmem:[%s4963 + $0x78] sm:$0xff]
    %s4980 = scalar_lea.vmem %s14, 1
    %v4981 = vld [vmem:[%s4980] sm:$0x1]
    %v4983 = vperm.slane %v4981, 0
    %4985 = vmatpush.msra.mxu0 %v4979
    %4986 = vmatpush.msra.mxu0 %v4978
    %4987 = vmatpush.msra.mxu0 %v4977
    %4988 = vmatpush.msra.mxu0 %v4976
    %4989 = vmatpush.msra.mxu0 %v4975
    %4990 = vmatpush.msra.mxu0 %v4974
    %4991 = vmatpush.msra.mxu0 %v4973
    %4992 = vmatpush.msra.mxu0 %v4972
    %4993 = vmatpush.msra.mxu0 %v4971
    %4994 = vmatpush.msra.mxu0 %v4970
    %4995 = vmatpush.msra.mxu0 %v4969
    %4996 = vmatpush.msra.mxu0 %v4968
    %4997 = vmatpush.msra.mxu0 %v4967
    %4998 = vmatpush.msra.mxu0 %v4966
    %4999 = vmatpush.msra.mxu0 %v4965
    %5000 = vmatpush.msra.mxu0 %v4964
    %5001 = vmatmul.f32.gmra.mxu0 %v4957
    %v5002 = vpop.f32.mrf.mxu0
    %v5003 = vadd.f32 %v4983, %v5002
    %5004 = vmatmul.f32.gmra.mxu0 %v4958
    %v5005 = vpop.f32.mrf.mxu0
    %5006 = vmatmul.f32.gmra.mxu0 %v4959
    %v5007 = vpop.f32.mrf.mxu0
    %5008 = vmatmul.f32.gmra.mxu0 %v4960
    %v5009 = vpop.f32.mrf.mxu0
    %v5010 = vadd.f32 %v4983, %v5009
    %5011 = vmatmul.f32.gmra.mxu0 %v4961
    %v5012 = vpop.f32.mrf.mxu0
    %5013 = vmatmul.f32.gmra.mxu0 %v4962
    %v5014 = vpop.f32.mrf.mxu0
    %5015 = vdwg.mxu0
    %v5016 = vadd.f32 %v4476, %v5003
    %v5017 = vadd.f32 %v4479, %v5010
    %v5018 = vld [vmem:[%s15] sm:$0x1]
    %v5019 = vld [vmem:[%s16] sm:$0x1]
    %v5020 = vld [vmem:[%s17] sm:$0xff]
    %v5021 = vld [vmem:[%s17 + $0x8] sm:$0xff]
    %v5022 = vld [vmem:[%s17 + $0x10] sm:$0xff]
    %v5023 = vld [vmem:[%s17 + $0x18] sm:$0xff]
    %v5024 = vld [vmem:[%s18] sm:$0x1]
    %vm5025 = vcmask 253952
    %v5026 = vsel %vm5025, %v5016, 0.0
    %5027 = vadd.xlane.f32.xlu0 %v5026
    %v5028 = vpop.xlane.xlu0 %5027
    %v5029 = vmul.f32 %v5028, %v165
    %v5030 = vsub.f32 %v5016, %v5029
    %v5031 = vmul.f32 %v5030, %v5030
    %v5032 = vsel %vm5025, %v5031, 0.0
    %5033 = vadd.xlane.f32.xlu0 %v5032
    %v5034 = vpop.xlane.xlu0 %5033
    %v5035 = vmul.f32 %v5034, %v165
    %v5036 = vadd.f32 %v5035, 1e-06
    %v5037 = vrsqrt.pop %v5036
    %v5038 = vmul.f32 %v5037, %v5036
    %v5039 = vmul.f32 %v5038, %v5037
    %v5040 = vmul.f32 0.5, %v5039
    %v5041 = vsub.f32 1.5, %v5040
    %v5042 = vmul.f32 %v5037, %v5041
    %vm5043 = vweird.f32 %v5036
    %vm5044 = vweird.f32 %v5037
    %vm5045 = vmor %vm5043, %vm5044
    %v5046 = vsel %vm5045, %v5037, %v5042
    %v5047 = vmul.f32 %v5030, %v5046
    %v5048 = vmul.f32 %v5047, %v5018
    %v5049 = vadd.f32 %v5048, %v5019
    %v5051 = vsel %vm140, %v5049, 0
    %5053 = vmatpush.msra.mxu0 0.0
    %5054 = vmatpush.msra.mxu0 0.0
    %5055 = vmatpush.msra.mxu0 0.0
    %5056 = vmatpush.msra.mxu0 0.0
    %5057 = vmatpush.msra.mxu0 0.0
    %5058 = vmatpush.msra.mxu0 0.0
    %5059 = vmatpush.msra.mxu0 0.0
    %5060 = vmatpush.msra.mxu0 0.0
    %5061 = vmatpush.msra.mxu0 0.0
    %5062 = vmatpush.msra.mxu0 0.0
    %5063 = vmatpush.msra.mxu0 0.0
    %5064 = vmatpush.msra.mxu0 0.0
    %5065 = vmatpush.msra.mxu0 %v5023
    %5066 = vmatpush.msra.mxu0 %v5022
    %5067 = vmatpush.msra.mxu0 %v5021
    %5068 = vmatpush.msra.mxu0 %v5020
    %5069 = vmatmul.f32.gmra.mxu0 %v5051
    %v5070 = vpop.f32.mrf.mxu0
    %v5071 = vadd.f32 %v5024, %v5070
    %5072 = vdwg.mxu0
    %vm5073 = vcmask 8192
    %5074 = vst.msk [vmem:[#allocation2] sm:$0x1] %vm5073, %v5071
    %v5075 = vsel %vm5025, %v5017, 0.0
    %5076 = vadd.xlane.f32.xlu0 %v5075
    %v5077 = vpop.xlane.xlu0 %5076
    %v5078 = vmul.f32 %v5077, %v165
    %v5079 = vsub.f32 %v5017, %v5078
    %v5080 = vmul.f32 %v5079, %v5079
    %v5081 = vsel %vm5025, %v5080, 0.0
    %5082 = vadd.xlane.f32.xlu0 %v5081
    %v5083 = vpop.xlane.xlu0 %5082
    %v5084 = vmul.f32 %v5083, %v165
    %v5085 = vadd.f32 %v5084, 1e-06
    %v5086 = vrsqrt.pop %v5085
    %v5087 = vmul.f32 %v5086, %v5085
    %v5088 = vmul.f32 %v5087, %v5086
    %v5089 = vmul.f32 0.5, %v5088
    %v5090 = vsub.f32 1.5, %v5089
    %v5091 = vmul.f32 %v5086, %v5090
    %vm5092 = vweird.f32 %v5085
    %vm5093 = vweird.f32 %v5086
    %vm5094 = vmor %vm5092, %vm5093
    %v5095 = vsel %vm5094, %v5086, %v5091
    %v5096 = vmul.f32 %v5079, %v5095
    %v5097 = vmul.f32 %v5096, %v5018
    %v5098 = vadd.f32 %v5097, %v5019
    %v5100 = vsel %vm140, %v5098, 0
    %5102 = vmatpush.msra.mxu0 0.0
    %5103 = vmatpush.msra.mxu0 0.0
    %5104 = vmatpush.msra.mxu0 0.0
    %5105 = vmatpush.msra.mxu0 0.0
    %5106 = vmatpush.msra.mxu0 0.0
    %5107 = vmatpush.msra.mxu0 0.0
    %5108 = vmatpush.msra.mxu0 0.0
    %5109 = vmatpush.msra.mxu0 0.0
    %5110 = vmatpush.msra.mxu0 0.0
    %5111 = vmatpush.msra.mxu0 0.0
    %5112 = vmatpush.msra.mxu0 0.0
    %5113 = vmatpush.msra.mxu0 0.0
    %5114 = vmatpush.msra.mxu0 %v5023
    %5115 = vmatpush.msra.mxu0 %v5022
    %5116 = vmatpush.msra.mxu0 %v5021
    %5117 = vmatpush.msra.mxu0 %v5020
    %5118 = vmatmul.f32.gmra.mxu0 %v5100
    %v5119 = vpop.f32.mrf.mxu0
    %v5120 = vadd.f32 %v5024, %v5119
    %5121 = vdwg.mxu0
    %5122 = vst.msk [vmem:[#allocation2 + $0x1] sm:$0x1] %vm5073, %v5120
    // Predicated region
    $region78: #{vit_forward.1} parent=1 // pred_check
      _
    $region79: #{vit_forward.1} parent=1 // pred_check_branch
      %5124 = sbr.rel (0) target = $region81
    $region80: #{vit_forward.1} parent=1 // pred_region
      %5126 = vsyncadd [#allocation3], 0
      %s5128 = sshll.u32 [#allocation2], 4
      %s5129 = int_to_ptr.vmem [resolvable:$true] %s5128
      %s5130 = sshll.u32 %s19, 4
      %s5131 = int_to_ptr.hbm [resolvable:$true] %s5130
      %5133 = dma.vmem_to_hbm [thread:$0]  %s5129, 32, %s5131, [#allocation3]
    $region81: #{vit_forward.1} parent=1 // pred_fallthru
      _
    // Predicated region
    $region82: #{vit_forward.1} parent=1 // pred_check
      _
    $region83: #{vit_forward.1} parent=1 // pred_check_branch
      %5135 = sbr.rel (0) target = $region85
    $region84: #{vit_forward.1} parent=1 // pred_region
      %5137 = dma.done [#allocation3], 32
    $region85: #{vit_forward.1} parent=1 // pred_fallthru
      _
    %5138 = vsyncpa [#allocation3], 1

</llo_original>
